<compile_context>
chip_gen: v6e
topology: v6e:2x2x1
jax: 0.10.0
libtpu: 0.0.40
codegen_flags: <defaults>
</compile_context>

<pallas_src>
from functools import partial

import numpy as np

import jax
import jax.numpy as jnp
from jax.experimental import pallas as pl
from jax.experimental.pallas import tpu as pltpu


# ------------------------- architecture constants --------------------------

IMG = 32            # input spatial size (fixed: fc1 expects 16*5*5 features)
CIN = 3             # input channels
C1, C2 = 6, 16      # conv output channels
K1 = CIN * IMG      # conv1 matmul K  (= 96, lane layout ci*32 + xi)
K2 = 128            # conv2 matmul K  (6*14 = 84, zero-padded to 128)
HALF = 128          # lanes per x-parity half (84 / 80 valid, zero padded)
LANES = 2 * HALF    # conv matmul N = 256 (lane dense)
FC1, FC2 = 120, 84
NPAD = 128          # lane-dense padding for all FC dims and the logits
R1, R2 = 28, 10     # conv1 / conv2 output rows
H1, H2 = 14, 5      # pooled rows after pool1 / pool2


# ------------------------------ the kernel ----------------------------------

def _cnn_kernel(x_ref, m1, b1, m2, b2, w1, c1, w2, c2, w3, c3, o_ref, *, tb):
    # x_ref: (32, tb, 96)  rows x batch-tile, lane = c*32 + x
    # m1: (5, 96, 256)  conv1 banded matrices;  b1: (1, 256)  f32
    # m2: (5, 128, 256) conv2 banded matrices;  b2: (1, 256)  f32
    # w1: (640, 128)    fc1 (flatten perm folded in, K = 5*128); c1: (1, 128)
    # w2: (128, 128), c2: (1, 128);  w3: (128, 128), c3: (1, 128)
    f32 = jnp.float32
    wdt = m1.dtype                       # matmul operand dtype (bf16 or f32)

    # Flatten (row, batch) into the MXU M dimension: row index = r*tb + b.
    # Layout-preserving reshape (tb is a multiple of the f32 sublane tile).
    x2 = x_ref[...].reshape(IMG * tb, K1)

    # ---- conv1: 5 banded dots, M = 28*tb, single f32 accumulator chain -----
    acc = jnp.zeros((R1 * tb, LANES), f32)
    for dy in range(5):
        acc = acc + jnp.dot(x2[dy * tb:(dy + R1) * tb, :].astype(wdt), m1[dy],
                            preferred_element_type=f32)
    y = jnp.maximum(acc + b1[...], 0.0)          # bias read once, f32 epilogue

    # ---- fused 2x2 max-pool: y over paired row-blocks, x over lane halves --
    y = y.reshape(H1, 2 * tb, LANES)
    z = jnp.maximum(y[:, :tb, :], y[:, tb:, :])                  # pool over y
    a1 = jnp.maximum(z[:, :, :HALF], z[:, :, HALF:]) \
        .reshape(H1 * tb, HALF)                                  # pool over x

    # ---- conv2: 5 banded dots, M = 10*tb --------------------------------
    acc = jnp.zeros((R2 * tb, LANES), f32)
    for dy in range(5):
        acc = acc + jnp.dot(a1[dy * tb:(dy + R2) * tb, :].astype(wdt), m2[dy],
                            preferred_element_type=f32)
    y = jnp.maximum(acc + b2[...], 0.0)

    y = y.reshape(H2, 2 * tb, LANES)
    z = jnp.maximum(y[:, :tb, :], y[:, tb:, :])
    a2 = jnp.maximum(z[:, :, :HALF], z[:, :, HALF:]) \
        .reshape(H2 * tb, HALF)                                  # (5*tb, 128)

    # ---- fc1 (single wide-K dot) + fc2 + fc3, all M = tb, lane-dense -------
    feats = jnp.concatenate(
        [a2[yh * tb:(yh + 1) * tb, :] for yh in range(H2)], axis=1
    ).astype(wdt)                                                # (tb, 640)
    h = jnp.maximum(jnp.dot(feats, w1[...], preferred_element_type=f32)
                    + c1[...], 0.0)
    h = jnp.maximum(jnp.dot(h.astype(wdt), w2[...], preferred_element_type=f32)
                    + c2[...], 0.0)
    out = jnp.dot(h.astype(wdt), w3[...], preferred_element_type=f32) + c3[...]
    o_ref[...] = out.astype(o_ref.dtype)


# ------------------------- weight preparation (host) ------------------------

def _conv_as_row_matmuls(w, b, w_in, k_pad, half_pad):
    """Banded matrices M[dy] s.t. conv_out_row(y) = sum_dy in_row(y+dy) @ M[dy].

    Input row lane layout: ci*w_in + xi.  Output column layout:
    p*half_pad + co*(w_out//2) + xh with xo = 2*xh + p, so 2x2 x-pooling is
    the max of the two 128-lane halves.  Unused rows/cols are zero."""
    w = np.asarray(w, np.float32)
    b = np.asarray(b, np.float32)
    cout, cin, kh, kw = w.shape
    w_out = w_in - kw + 1
    wh = w_out // 2
    m = np.zeros((kh, k_pad, 2 * half_pad), np.float32)
    brow = np.zeros((1, 2 * half_pad), np.float32)
    co = np.arange(cout)
    for xo in range(w_out):
        p, xh = xo % 2, xo // 2
        cols = p * half_pad + co * wh + xh
        brow[0, cols] = b
        for dy in range(kh):
            for dx in range(kw):
                xi = xo + dx
                for ci in range(cin):
                    m[dy, ci * w_in + xi, cols] = w[:, ci, dy, dx]
    return m, brow


def prepare_params(p, dtype=jnp.bfloat16):
    """Torch-layout params -> kernel-ready arrays (runs once, outside jit).

    `dtype` is the matmul-operand dtype (bf16 for v6e/v7x MXU peak, f32 for a
    bit-tighter numerics); biases stay f32 and accumulation is always f32."""
    m1, b1 = _conv_as_row_matmuls(p["conv1_w"], p["conv1_b"],
                                  w_in=IMG, k_pad=K1, half_pad=HALF)
    m2, b2 = _conv_as_row_matmuls(p["conv2_w"], p["conv2_b"],
                                  w_in=H1, k_pad=K2, half_pad=HALF)
    # fc1: permute torch CHW flatten (c*25 + y*5 + x) into the kernel's
    # per-pooled-row layout (lane block y*128 + c*5 + x); pad K 80->128 per
    # block and N 120->128; stack into one (640, 128) matrix.
    fc1 = np.asarray(p["fc1_w"], np.float32)                     # (120, 400)
    w1 = np.zeros((H2, K2, NPAD), np.float32)
    w1[:, :C2 * H2, :FC1] = fc1.reshape(FC1, C2, H2, H2) \
        .transpose(2, 1, 3, 0).reshape(H2, C2 * H2, FC1)
    w1 = w1.reshape(H2 * K2, NPAD)
    nc = np.asarray(p["fc3_w"]).shape[0]
    assert nc <= NPAD
    c1 = np.zeros((1, NPAD), np.float32)
    c1[0, :FC1] = np.asarray(p["fc1_b"], np.float32)
    w2 = np.zeros((NPAD, NPAD), np.float32)
    w2[:FC1, :FC2] = np.asarray(p["fc2_w"], np.float32).T
    c2 = np.zeros((1, NPAD), np.float32)
    c2[0, :FC2] = np.asarray(p["fc2_b"], np.float32)
    w3 = np.zeros((NPAD, NPAD), np.float32)
    w3[:FC2, :nc] = np.asarray(p["fc3_w"], np.float32).T
    c3 = np.zeros((1, NPAD), np.float32)
    c3[0, :nc] = np.asarray(p["fc3_b"], np.float32)
    return {
        "m1": jnp.asarray(m1, dtype), "b1": jnp.asarray(b1),
        "m2": jnp.asarray(m2, dtype), "b2": jnp.asarray(b2),
        "w1": jnp.asarray(w1, dtype), "c1": jnp.asarray(c1),
        "w2": jnp.asarray(w2, dtype), "c2": jnp.asarray(c2),
        "w3": jnp.asarray(w3, dtype), "c3": jnp.asarray(c3),
    }


# ------------------------------ forward pass --------------------------------

def _choose_tb(batch):
    # Multiple of 8 (f32 sublane tile), capped at 32; keep the grid >= 2
    # blocks when possible so "parallel" can shard across v7x's 2 TensorCores.
    return min(32, max(8, (batch // 2) // 8 * 8))


def cnn_forward(x_nchw, prep, num_classes=10, tb=None):
    B = x_nchw.shape[0]
    if tb is None:
        tb = _choose_tb(B)
    assert tb % 8 == 0 and tb >= 8
    assert num_classes <= NPAD
    bp = pl.cdiv(B, tb) * tb

    # Single host-side relayout: NCHW -> (H, B, C*W), lane = c*32 + x.  The
    # old 4-way row-parity split (separate fusion + 4 tiny per-step DMAs) is
    # gone; the kernel's (row*tb + b) M ordering is a free in-kernel reshape.
    x = jnp.transpose(x_nchw, (2, 0, 1, 3)).reshape(IMG, B, K1)
    if bp != B:
        x = jnp.pad(x, ((0, 0), (0, bp - B), (0, 0)))

    out = pl.pallas_call(
        partial(_cnn_kernel, tb=tb),
        out_shape=jax.ShapeDtypeStruct((bp, NPAD), jnp.float32),
        grid=(bp // tb,),
        in_specs=[
            pl.BlockSpec((IMG, tb, K1), lambda i: (0, i, 0)),      # x
            pl.BlockSpec((5, K1, LANES), lambda i: (0, 0, 0)),     # m1
            pl.BlockSpec((1, LANES), lambda i: (0, 0)),            # b1
            pl.BlockSpec((5, K2, LANES), lambda i: (0, 0, 0)),     # m2
            pl.BlockSpec((1, LANES), lambda i: (0, 0)),            # b2
            pl.BlockSpec((H2 * K2, NPAD), lambda i: (0, 0)),       # w1
            pl.BlockSpec((1, NPAD), lambda i: (0, 0)),             # c1
            pl.BlockSpec((NPAD, NPAD), lambda i: (0, 0)),          # w2
            pl.BlockSpec((1, NPAD), lambda i: (0, 0)),             # c2
            pl.BlockSpec((NPAD, NPAD), lambda i: (0, 0)),          # w3
            pl.BlockSpec((1, NPAD), lambda i: (0, 0)),             # c3
        ],
        out_specs=pl.BlockSpec((tb, NPAD), lambda i: (i, 0)),
        compiler_params=pltpu.CompilerParams(
            dimension_semantics=("parallel",)),
    )(x, prep["m1"], prep["b1"], prep["m2"], prep["b2"],
      prep["w1"], prep["c1"], prep["w2"], prep["c2"],
      prep["w3"], prep["c3"])
    return out[:B, :num_classes]


cnn_forward_jit = jax.jit(cnn_forward, static_argnames=("num_classes", "tb"))


# ----------------------------- reference (JAX) -------------------------------

def cnn_reference(x, p):
    hi = jax.lax.Precision.HIGHEST

    def conv(x, w, b):
        y = jax.lax.conv_general_dilated(
            x, w, window_strides=(1, 1), padding="VALID",
            dimension_numbers=("NCHW", "OIHW", "NCHW"), precision=hi)
        return jax.nn.relu(y + b[None, :, None, None])

    def pool(x):
        return jax.lax.reduce_window(
            x, -jnp.inf, jax.lax.max,
            window_dimensions=(1, 1, 2, 2), window_strides=(1, 1, 2, 2),
            padding="VALID")

    x = pool(conv(x, p["conv1_w"], p["conv1_b"]))
    x = pool(conv(x, p["conv2_w"], p["conv2_b"]))
    x = x.reshape(x.shape[0], -1)                      # torch CHW flatten order
    x = jax.nn.relu(jnp.dot(x, p["fc1_w"].T, precision=hi) + p["fc1_b"])
    x = jax.nn.relu(jnp.dot(x, p["fc2_w"].T, precision=hi) + p["fc2_b"])
    return jnp.dot(x, p["fc3_w"].T, precision=hi) + p["fc3_b"]


# --------------------------------- params ------------------------------------

def init_params(key, num_classes=10):
    ks = jax.random.split(key, 10)

    def w(k, shape, fan_in):
        return jax.random.normal(k, shape, jnp.float32) / jnp.sqrt(
            jnp.float32(fan_in))

    return {
        "conv1_w": w(ks[0], (C1, CIN, 5, 5), CIN * 25),
        "conv1_b": w(ks[1], (C1,), CIN * 25),
        "conv2_w": w(ks[2], (C2, C1, 5, 5), C1 * 25),
        "conv2_b": w(ks[3], (C2,), C1 * 25),
        "fc1_w": w(ks[4], (FC1, C2 * 5 * 5), C2 * 25),
        "fc1_b": w(ks[5], (FC1,), C2 * 25),
        "fc2_w": w(ks[6], (FC2, FC1), FC1),
        "fc2_b": w(ks[7], (FC2,), FC1),
        "fc3_w": w(ks[8], (num_classes, FC2), FC2),
        "fc3_b": w(ks[9], (num_classes,), FC2),
    }


if __name__ == "__main__":
    key = jax.random.PRNGKey(0)
    pkey, xkey = jax.random.split(key)
    params = init_params(pkey, num_classes=10)

    # 32x32 spatial is fixed by fc1's 16*5*5 input; B=18 exercises batch
    # padding (18 -> 24) and a multi-block grid (3 steps of tb=8).
    x = jax.random.normal(xkey, (18, CIN, IMG, IMG), jnp.float32)
    ref = jax.block_until_ready(cnn_reference(x, params))

    # f32-operand path: tight tolerance (catches any layout/permutation bug;
    # in-kernel f32 dots are multi-pass / near-exact, expected err ~1e-5).
    prep_f32 = prepare_params(params, dtype=jnp.float32)
    out_f32 = jax.block_until_ready(cnn_forward_jit(x, prep_f32, num_classes=10))
    assert out_f32.shape == (18, 10), out_f32.shape
    err_f32 = float(jnp.max(jnp.abs(out_f32 - ref)))
    assert err_f32 < 2e-3, f"f32 path max abs error vs reference: {err_f32}"

    # bf16-operand path (v6e/v7x MXU-native; f32 accumulation, f32 epilogues).
    # Typical max abs error vs the f32 reference is ~1e-2 for this net.
    prep_bf16 = prepare_params(params, dtype=jnp.bfloat16)
    out_bf16 = jax.block_until_ready(cnn_forward_jit(x, prep_bf16, num_classes=10))
    err_bf16 = float(jnp.max(jnp.abs(out_bf16 - ref)))
    assert err_bf16 < 1e-1, f"bf16 path max abs error vs reference: {err_bf16}"

    print("KERNEL_OK")
</pallas_src>

<mosaic_0001>
module attributes {stable_mosaic.version = 11 : i64} {
  func.func @_cnn_kernel(%arg0: i32, %arg1: memref<32x8x96xf32, #tpu.memory_space<vmem>>, %arg2: memref<5x96x256xf32, #tpu.memory_space<vmem>>, %arg3: memref<1x256xf32, #tpu.memory_space<vmem>>, %arg4: memref<5x128x256xf32, #tpu.memory_space<vmem>>, %arg5: memref<1x256xf32, #tpu.memory_space<vmem>>, %arg6: memref<640x128xf32, #tpu.memory_space<vmem>>, %arg7: memref<1x128xf32, #tpu.memory_space<vmem>>, %arg8: memref<128x128xf32, #tpu.memory_space<vmem>>, %arg9: memref<1x128xf32, #tpu.memory_space<vmem>>, %arg10: memref<128x128xf32, #tpu.memory_space<vmem>>, %arg11: memref<1x128xf32, #tpu.memory_space<vmem>>, %arg12: memref<8x128xf32, #tpu.memory_space<vmem>>) attributes {dimension_semantics = [#tpu.dimension_semantics<parallel>], iteration_bounds = array<i64: 3>, scalar_prefetch = 0 : i64, scratch_operands = 0 : i64, tpu.core_type = #tpu.core_type<tc>, window_params = [{transform_indices = @transform_0, window_bounds = array<i64: 32, 8, 96>}, {pipeline_mode = #tpu.pipeline_mode<synchronous>, transform_indices = @transform_1, window_bounds = array<i64: 5, 96, 256>}, {pipeline_mode = #tpu.pipeline_mode<synchronous>, transform_indices = @transform_2, window_bounds = array<i64: 1, 256>}, {pipeline_mode = #tpu.pipeline_mode<synchronous>, transform_indices = @transform_3, window_bounds = array<i64: 5, 128, 256>}, {pipeline_mode = #tpu.pipeline_mode<synchronous>, transform_indices = @transform_4, window_bounds = array<i64: 1, 256>}, {pipeline_mode = #tpu.pipeline_mode<synchronous>, transform_indices = @transform_5, window_bounds = array<i64: 640, 128>}, {pipeline_mode = #tpu.pipeline_mode<synchronous>, transform_indices = @transform_6, window_bounds = array<i64: 1, 128>}, {pipeline_mode = #tpu.pipeline_mode<synchronous>, transform_indices = @transform_7, window_bounds = array<i64: 128, 128>}, {pipeline_mode = #tpu.pipeline_mode<synchronous>, transform_indices = @transform_8, window_bounds = array<i64: 1, 128>}, {pipeline_mode = #tpu.pipeline_mode<synchronous>, transform_indices = @transform_9, window_bounds = array<i64: 128, 128>}, {pipeline_mode = #tpu.pipeline_mode<synchronous>, transform_indices = @transform_10, window_bounds = array<i64: 1, 128>}, {transform_indices = @transform_11, window_bounds = array<i64: 8, 128>}]} {
    %c0 = arith.constant 0 : index
    %c0_0 = arith.constant 0 : index
    %c0_1 = arith.constant 0 : index
    %0 = vector.load %arg1[%c0, %c0_0, %c0_1] : memref<32x8x96xf32, #tpu.memory_space<vmem>>, vector<32x8x96xf32>
    %1 = vector.shape_cast %0 : vector<32x8x96xf32> to vector<256x96xf32>
    %cst = arith.constant 0.000000e+00 : f32
    %2 = vector.broadcast %cst : f32 to vector<224x256xf32>
    %3 = vector.extract_strided_slice %1 {offsets = [0, 0], sizes = [224, 96], strides = [1, 1]} : vector<256x96xf32> to vector<224x96xf32>
    %c0_2 = arith.constant 0 : index
    %c0_3 = arith.constant 0 : index
    %c0_4 = arith.constant 0 : index
    %4 = vector.load %arg2[%c0_2, %c0_3, %c0_4] : memref<5x96x256xf32, #tpu.memory_space<vmem>>, vector<1x96x256xf32>
    %5 = vector.shape_cast %4 : vector<1x96x256xf32> to vector<96x256xf32>
    %cst_5 = arith.constant dense<0.000000e+00> : vector<224x256xf32>
    %6 = tpu.matmul %3, %5, %cst_5 {dimension_numbers = #tpu.dot_dimension_numbers<[1], [0], [0], [1], [0, 0, 1, 1], [], []>} : vector<224x96xf32>, vector<96x256xf32>, vector<224x256xf32> -> vector<224x256xf32>
    %7 = arith.addf %2, %6 : vector<224x256xf32>
    %8 = vector.extract_strided_slice %1 {offsets = [8, 0], sizes = [224, 96], strides = [1, 1]} : vector<256x96xf32> to vector<224x96xf32>
    %c1 = arith.constant 1 : index
    %c0_6 = arith.constant 0 : index
    %c0_7 = arith.constant 0 : index
    %9 = vector.load %arg2[%c1, %c0_6, %c0_7] : memref<5x96x256xf32, #tpu.memory_space<vmem>>, vector<1x96x256xf32>
    %10 = vector.shape_cast %9 : vector<1x96x256xf32> to vector<96x256xf32>
    %cst_8 = arith.constant dense<0.000000e+00> : vector<224x256xf32>
    %11 = tpu.matmul %8, %10, %cst_8 {dimension_numbers = #tpu.dot_dimension_numbers<[1], [0], [0], [1], [0, 0, 1, 1], [], []>} : vector<224x96xf32>, vector<96x256xf32>, vector<224x256xf32> -> vector<224x256xf32>
    %12 = arith.addf %7, %11 : vector<224x256xf32>
    %13 = vector.extract_strided_slice %1 {offsets = [16, 0], sizes = [224, 96], strides = [1, 1]} : vector<256x96xf32> to vector<224x96xf32>
    %c2 = arith.constant 2 : index
    %c0_9 = arith.constant 0 : index
    %c0_10 = arith.constant 0 : index
    %14 = vector.load %arg2[%c2, %c0_9, %c0_10] : memref<5x96x256xf32, #tpu.memory_space<vmem>>, vector<1x96x256xf32>
    %15 = vector.shape_cast %14 : vector<1x96x256xf32> to vector<96x256xf32>
    %cst_11 = arith.constant dense<0.000000e+00> : vector<224x256xf32>
    %16 = tpu.matmul %13, %15, %cst_11 {dimension_numbers = #tpu.dot_dimension_numbers<[1], [0], [0], [1], [0, 0, 1, 1], [], []>} : vector<224x96xf32>, vector<96x256xf32>, vector<224x256xf32> -> vector<224x256xf32>
    %17 = arith.addf %12, %16 : vector<224x256xf32>
    %18 = vector.extract_strided_slice %1 {offsets = [24, 0], sizes = [224, 96], strides = [1, 1]} : vector<256x96xf32> to vector<224x96xf32>
    %c3 = arith.constant 3 : index
    %c0_12 = arith.constant 0 : index
    %c0_13 = arith.constant 0 : index
    %19 = vector.load %arg2[%c3, %c0_12, %c0_13] : memref<5x96x256xf32, #tpu.memory_space<vmem>>, vector<1x96x256xf32>
    %20 = vector.shape_cast %19 : vector<1x96x256xf32> to vector<96x256xf32>
    %cst_14 = arith.constant dense<0.000000e+00> : vector<224x256xf32>
    %21 = tpu.matmul %18, %20, %cst_14 {dimension_numbers = #tpu.dot_dimension_numbers<[1], [0], [0], [1], [0, 0, 1, 1], [], []>} : vector<224x96xf32>, vector<96x256xf32>, vector<224x256xf32> -> vector<224x256xf32>
    %22 = arith.addf %17, %21 : vector<224x256xf32>
    %23 = vector.extract_strided_slice %1 {offsets = [32, 0], sizes = [224, 96], strides = [1, 1]} : vector<256x96xf32> to vector<224x96xf32>
    %c4 = arith.constant 4 : index
    %c0_15 = arith.constant 0 : index
    %c0_16 = arith.constant 0 : index
    %24 = vector.load %arg2[%c4, %c0_15, %c0_16] : memref<5x96x256xf32, #tpu.memory_space<vmem>>, vector<1x96x256xf32>
    %25 = vector.shape_cast %24 : vector<1x96x256xf32> to vector<96x256xf32>
    %cst_17 = arith.constant dense<0.000000e+00> : vector<224x256xf32>
    %26 = tpu.matmul %23, %25, %cst_17 {dimension_numbers = #tpu.dot_dimension_numbers<[1], [0], [0], [1], [0, 0, 1, 1], [], []>} : vector<224x96xf32>, vector<96x256xf32>, vector<224x256xf32> -> vector<224x256xf32>
    %27 = arith.addf %22, %26 : vector<224x256xf32>
    %c0_18 = arith.constant 0 : index
    %c0_19 = arith.constant 0 : index
    %28 = vector.load %arg3[%c0_18, %c0_19] : memref<1x256xf32, #tpu.memory_space<vmem>>, vector<1x256xf32>
    %29 = vector.broadcast %28 : vector<1x256xf32> to vector<224x256xf32>
    %30 = arith.addf %27, %29 : vector<224x256xf32>
    %cst_20 = arith.constant 0.000000e+00 : f32
    %31 = vector.broadcast %cst_20 : f32 to vector<224x256xf32>
    %32 = arith.maximumf %30, %31 : vector<224x256xf32>
    %33 = vector.shape_cast %32 : vector<224x256xf32> to vector<14x16x256xf32>
    %34 = vector.extract_strided_slice %33 {offsets = [0, 0, 0], sizes = [14, 8, 256], strides = [1, 1, 1]} : vector<14x16x256xf32> to vector<14x8x256xf32>
    %35 = vector.extract_strided_slice %33 {offsets = [0, 8, 0], sizes = [14, 8, 256], strides = [1, 1, 1]} : vector<14x16x256xf32> to vector<14x8x256xf32>
    %36 = arith.maximumf %34, %35 : vector<14x8x256xf32>
    %37 = vector.extract_strided_slice %36 {offsets = [0, 0, 0], sizes = [14, 8, 128], strides = [1, 1, 1]} : vector<14x8x256xf32> to vector<14x8x128xf32>
    %38 = vector.extract_strided_slice %36 {offsets = [0, 0, 128], sizes = [14, 8, 128], strides = [1, 1, 1]} : vector<14x8x256xf32> to vector<14x8x128xf32>
    %39 = arith.maximumf %37, %38 : vector<14x8x128xf32>
    %40 = vector.shape_cast %39 : vector<14x8x128xf32> to vector<112x128xf32>
    %cst_21 = arith.constant 0.000000e+00 : f32
    %41 = vector.broadcast %cst_21 : f32 to vector<80x256xf32>
    %42 = vector.extract_strided_slice %40 {offsets = [0, 0], sizes = [80, 128], strides = [1, 1]} : vector<112x128xf32> to vector<80x128xf32>
    %c0_22 = arith.constant 0 : index
    %c0_23 = arith.constant 0 : index
    %c0_24 = arith.constant 0 : index
    %43 = vector.load %arg4[%c0_22, %c0_23, %c0_24] : memref<5x128x256xf32, #tpu.memory_space<vmem>>, vector<1x128x256xf32>
    %44 = vector.shape_cast %43 : vector<1x128x256xf32> to vector<128x256xf32>
    %cst_25 = arith.constant dense<0.000000e+00> : vector<80x256xf32>
    %45 = tpu.matmul %42, %44, %cst_25 {dimension_numbers = #tpu.dot_dimension_numbers<[1], [0], [0], [1], [0, 0, 1, 1], [], []>} : vector<80x128xf32>, vector<128x256xf32>, vector<80x256xf32> -> vector<80x256xf32>
    %46 = arith.addf %41, %45 : vector<80x256xf32>
    %47 = vector.extract_strided_slice %40 {offsets = [8, 0], sizes = [80, 128], strides = [1, 1]} : vector<112x128xf32> to vector<80x128xf32>
    %c1_26 = arith.constant 1 : index
    %c0_27 = arith.constant 0 : index
    %c0_28 = arith.constant 0 : index
    %48 = vector.load %arg4[%c1_26, %c0_27, %c0_28] : memref<5x128x256xf32, #tpu.memory_space<vmem>>, vector<1x128x256xf32>
    %49 = vector.shape_cast %48 : vector<1x128x256xf32> to vector<128x256xf32>
    %cst_29 = arith.constant dense<0.000000e+00> : vector<80x256xf32>
    %50 = tpu.matmul %47, %49, %cst_29 {dimension_numbers = #tpu.dot_dimension_numbers<[1], [0], [0], [1], [0, 0, 1, 1], [], []>} : vector<80x128xf32>, vector<128x256xf32>, vector<80x256xf32> -> vector<80x256xf32>
    %51 = arith.addf %46, %50 : vector<80x256xf32>
    %52 = vector.extract_strided_slice %40 {offsets = [16, 0], sizes = [80, 128], strides = [1, 1]} : vector<112x128xf32> to vector<80x128xf32>
    %c2_30 = arith.constant 2 : index
    %c0_31 = arith.constant 0 : index
    %c0_32 = arith.constant 0 : index
    %53 = vector.load %arg4[%c2_30, %c0_31, %c0_32] : memref<5x128x256xf32, #tpu.memory_space<vmem>>, vector<1x128x256xf32>
    %54 = vector.shape_cast %53 : vector<1x128x256xf32> to vector<128x256xf32>
    %cst_33 = arith.constant dense<0.000000e+00> : vector<80x256xf32>
    %55 = tpu.matmul %52, %54, %cst_33 {dimension_numbers = #tpu.dot_dimension_numbers<[1], [0], [0], [1], [0, 0, 1, 1], [], []>} : vector<80x128xf32>, vector<128x256xf32>, vector<80x256xf32> -> vector<80x256xf32>
    %56 = arith.addf %51, %55 : vector<80x256xf32>
    %57 = vector.extract_strided_slice %40 {offsets = [24, 0], sizes = [80, 128], strides = [1, 1]} : vector<112x128xf32> to vector<80x128xf32>
    %c3_34 = arith.constant 3 : index
    %c0_35 = arith.constant 0 : index
    %c0_36 = arith.constant 0 : index
    %58 = vector.load %arg4[%c3_34, %c0_35, %c0_36] : memref<5x128x256xf32, #tpu.memory_space<vmem>>, vector<1x128x256xf32>
    %59 = vector.shape_cast %58 : vector<1x128x256xf32> to vector<128x256xf32>
    %cst_37 = arith.constant dense<0.000000e+00> : vector<80x256xf32>
    %60 = tpu.matmul %57, %59, %cst_37 {dimension_numbers = #tpu.dot_dimension_numbers<[1], [0], [0], [1], [0, 0, 1, 1], [], []>} : vector<80x128xf32>, vector<128x256xf32>, vector<80x256xf32> -> vector<80x256xf32>
    %61 = arith.addf %56, %60 : vector<80x256xf32>
    %62 = vector.extract_strided_slice %40 {offsets = [32, 0], sizes = [80, 128], strides = [1, 1]} : vector<112x128xf32> to vector<80x128xf32>
    %c4_38 = arith.constant 4 : index
    %c0_39 = arith.constant 0 : index
    %c0_40 = arith.constant 0 : index
    %63 = vector.load %arg4[%c4_38, %c0_39, %c0_40] : memref<5x128x256xf32, #tpu.memory_space<vmem>>, vector<1x128x256xf32>
    %64 = vector.shape_cast %63 : vector<1x128x256xf32> to vector<128x256xf32>
    %cst_41 = arith.constant dense<0.000000e+00> : vector<80x256xf32>
    %65 = tpu.matmul %62, %64, %cst_41 {dimension_numbers = #tpu.dot_dimension_numbers<[1], [0], [0], [1], [0, 0, 1, 1], [], []>} : vector<80x128xf32>, vector<128x256xf32>, vector<80x256xf32> -> vector<80x256xf32>
    %66 = arith.addf %61, %65 : vector<80x256xf32>
    %c0_42 = arith.constant 0 : index
    %c0_43 = arith.constant 0 : index
    %67 = vector.load %arg5[%c0_42, %c0_43] : memref<1x256xf32, #tpu.memory_space<vmem>>, vector<1x256xf32>
    %68 = vector.broadcast %67 : vector<1x256xf32> to vector<80x256xf32>
    %69 = arith.addf %66, %68 : vector<80x256xf32>
    %cst_44 = arith.constant 0.000000e+00 : f32
    %70 = vector.broadcast %cst_44 : f32 to vector<80x256xf32>
    %71 = arith.maximumf %69, %70 : vector<80x256xf32>
    %72 = vector.shape_cast %71 : vector<80x256xf32> to vector<5x16x256xf32>
    %73 = vector.extract_strided_slice %72 {offsets = [0, 0, 0], sizes = [5, 8, 256], strides = [1, 1, 1]} : vector<5x16x256xf32> to vector<5x8x256xf32>
    %74 = vector.extract_strided_slice %72 {offsets = [0, 8, 0], sizes = [5, 8, 256], strides = [1, 1, 1]} : vector<5x16x256xf32> to vector<5x8x256xf32>
    %75 = arith.maximumf %73, %74 : vector<5x8x256xf32>
    %76 = vector.extract_strided_slice %75 {offsets = [0, 0, 0], sizes = [5, 8, 128], strides = [1, 1, 1]} : vector<5x8x256xf32> to vector<5x8x128xf32>
    %77 = vector.extract_strided_slice %75 {offsets = [0, 0, 128], sizes = [5, 8, 128], strides = [1, 1, 1]} : vector<5x8x256xf32> to vector<5x8x128xf32>
    %78 = arith.maximumf %76, %77 : vector<5x8x128xf32>
    %79 = vector.shape_cast %78 : vector<5x8x128xf32> to vector<40x128xf32>
    %80 = vector.extract_strided_slice %79 {offsets = [0, 0], sizes = [8, 128], strides = [1, 1]} : vector<40x128xf32> to vector<8x128xf32>
    %81 = vector.extract_strided_slice %79 {offsets = [8, 0], sizes = [8, 128], strides = [1, 1]} : vector<40x128xf32> to vector<8x128xf32>
    %82 = vector.extract_strided_slice %79 {offsets = [16, 0], sizes = [8, 128], strides = [1, 1]} : vector<40x128xf32> to vector<8x128xf32>
    %83 = vector.extract_strided_slice %79 {offsets = [24, 0], sizes = [8, 128], strides = [1, 1]} : vector<40x128xf32> to vector<8x128xf32>
    %84 = vector.extract_strided_slice %79 {offsets = [32, 0], sizes = [8, 128], strides = [1, 1]} : vector<40x128xf32> to vector<8x128xf32>
    %85 = tpu.concatenate %80, %81, %82, %83, %84 in 1 : vector<8x128xf32>, vector<8x128xf32>, vector<8x128xf32>, vector<8x128xf32>, vector<8x128xf32> -> vector<8x640xf32>
    %c0_45 = arith.constant 0 : index
    %c0_46 = arith.constant 0 : index
    %86 = vector.load %arg6[%c0_45, %c0_46] : memref<640x128xf32, #tpu.memory_space<vmem>>, vector<640x128xf32>
    %cst_47 = arith.constant dense<0.000000e+00> : vector<8x128xf32>
    %87 = tpu.matmul %85, %86, %cst_47 {dimension_numbers = #tpu.dot_dimension_numbers<[1], [0], [0], [1], [0, 0, 1, 1], [], []>} : vector<8x640xf32>, vector<640x128xf32>, vector<8x128xf32> -> vector<8x128xf32>
    %c0_48 = arith.constant 0 : index
    %c0_49 = arith.constant 0 : index
    %88 = vector.load %arg7[%c0_48, %c0_49] : memref<1x128xf32, #tpu.memory_space<vmem>>, vector<1x128xf32>
    %89 = vector.broadcast %88 : vector<1x128xf32> to vector<8x128xf32>
    %90 = arith.addf %87, %89 : vector<8x128xf32>
    %cst_50 = arith.constant 0.000000e+00 : f32
    %91 = vector.broadcast %cst_50 : f32 to vector<8x128xf32>
    %92 = arith.maximumf %90, %91 : vector<8x128xf32>
    %c0_51 = arith.constant 0 : index
    %c0_52 = arith.constant 0 : index
    %93 = vector.load %arg8[%c0_51, %c0_52] : memref<128x128xf32, #tpu.memory_space<vmem>>, vector<128x128xf32>
    %cst_53 = arith.constant dense<0.000000e+00> : vector<8x128xf32>
    %94 = tpu.matmul %92, %93, %cst_53 {dimension_numbers = #tpu.dot_dimension_numbers<[1], [0], [0], [1], [0, 0, 1, 1], [], []>} : vector<8x128xf32>, vector<128x128xf32>, vector<8x128xf32> -> vector<8x128xf32>
    %c0_54 = arith.constant 0 : index
    %c0_55 = arith.constant 0 : index
    %95 = vector.load %arg9[%c0_54, %c0_55] : memref<1x128xf32, #tpu.memory_space<vmem>>, vector<1x128xf32>
    %96 = vector.broadcast %95 : vector<1x128xf32> to vector<8x128xf32>
    %97 = arith.addf %94, %96 : vector<8x128xf32>
    %cst_56 = arith.constant 0.000000e+00 : f32
    %98 = vector.broadcast %cst_56 : f32 to vector<8x128xf32>
    %99 = arith.maximumf %97, %98 : vector<8x128xf32>
    %c0_57 = arith.constant 0 : index
    %c0_58 = arith.constant 0 : index
    %100 = vector.load %arg10[%c0_57, %c0_58] : memref<128x128xf32, #tpu.memory_space<vmem>>, vector<128x128xf32>
    %cst_59 = arith.constant dense<0.000000e+00> : vector<8x128xf32>
    %101 = tpu.matmul %99, %100, %cst_59 {dimension_numbers = #tpu.dot_dimension_numbers<[1], [0], [0], [1], [0, 0, 1, 1], [], []>} : vector<8x128xf32>, vector<128x128xf32>, vector<8x128xf32> -> vector<8x128xf32>
    %c0_60 = arith.constant 0 : index
    %c0_61 = arith.constant 0 : index
    %102 = vector.load %arg11[%c0_60, %c0_61] : memref<1x128xf32, #tpu.memory_space<vmem>>, vector<1x128xf32>
    %103 = vector.broadcast %102 : vector<1x128xf32> to vector<8x128xf32>
    %104 = arith.addf %101, %103 : vector<8x128xf32>
    %c0_62 = arith.constant 0 : index
    %c0_63 = arith.constant 0 : index
    %105 = vector.load %arg12[%c0_62, %c0_63] : memref<8x128xf32, #tpu.memory_space<vmem>>, vector<8x128xf32>
    tpu.vector_store %arg12[%c0_62, %c0_63], %104 {strides = array<i32>} : memref<8x128xf32, #tpu.memory_space<vmem>>, vector<8x128xf32>,
    return
  }
  func.func @transform_0(%arg0: i32) -> (i32, i32, i32) {
    %c0_i32 = arith.constant 0 : i32
    %c0_i32_0 = arith.constant 0 : i32
    %c0_i32_1 = arith.constant 0 : i32
    return %c0_i32, %arg0, %c0_i32_0 : i32, i32, i32
  }
  func.func @transform_1(%arg0: i32) -> (i32, i32, i32) {
    %c0_i32 = arith.constant 0 : i32
    %c0_i32_0 = arith.constant 0 : i32
    %c0_i32_1 = arith.constant 0 : i32
    %c0_i32_2 = arith.constant 0 : i32
    return %c0_i32, %c0_i32_0, %c0_i32_1 : i32, i32, i32
  }
  func.func @transform_2(%arg0: i32) -> (i32, i32) {
    %c0_i32 = arith.constant 0 : i32
    %c0_i32_0 = arith.constant 0 : i32
    %c0_i32_1 = arith.constant 0 : i32
    return %c0_i32, %c0_i32_0 : i32, i32
  }
  func.func @transform_3(%arg0: i32) -> (i32, i32, i32) {
    %c0_i32 = arith.constant 0 : i32
    %c0_i32_0 = arith.constant 0 : i32
    %c0_i32_1 = arith.constant 0 : i32
    %c0_i32_2 = arith.constant 0 : i32
    return %c0_i32, %c0_i32_0, %c0_i32_1 : i32, i32, i32
  }
  func.func @transform_4(%arg0: i32) -> (i32, i32) {
    %c0_i32 = arith.constant 0 : i32
    %c0_i32_0 = arith.constant 0 : i32
    %c0_i32_1 = arith.constant 0 : i32
    return %c0_i32, %c0_i32_0 : i32, i32
  }
  func.func @transform_5(%arg0: i32) -> (i32, i32) {
    %c0_i32 = arith.constant 0 : i32
    %c0_i32_0 = arith.constant 0 : i32
    %c0_i32_1 = arith.constant 0 : i32
    return %c0_i32, %c0_i32_0 : i32, i32
  }
  func.func @transform_6(%arg0: i32) -> (i32, i32) {
    %c0_i32 = arith.constant 0 : i32
    %c0_i32_0 = arith.constant 0 : i32
    %c0_i32_1 = arith.constant 0 : i32
    return %c0_i32, %c0_i32_0 : i32, i32
  }
  func.func @transform_7(%arg0: i32) -> (i32, i32) {
    %c0_i32 = arith.constant 0 : i32
    %c0_i32_0 = arith.constant 0 : i32
    %c0_i32_1 = arith.constant 0 : i32
    return %c0_i32, %c0_i32_0 : i32, i32
  }
  func.func @transform_8(%arg0: i32) -> (i32, i32) {
    %c0_i32 = arith.constant 0 : i32
    %c0_i32_0 = arith.constant 0 : i32
    %c0_i32_1 = arith.constant 0 : i32
    return %c0_i32, %c0_i32_0 : i32, i32
  }
  func.func @transform_9(%arg0: i32) -> (i32, i32) {
    %c0_i32 = arith.constant 0 : i32
    %c0_i32_0 = arith.constant 0 : i32
    %c0_i32_1 = arith.constant 0 : i32
    return %c0_i32, %c0_i32_0 : i32, i32
  }
  func.func @transform_10(%arg0: i32) -> (i32, i32) {
    %c0_i32 = arith.constant 0 : i32
    %c0_i32_0 = arith.constant 0 : i32
    %c0_i32_1 = arith.constant 0 : i32
    return %c0_i32, %c0_i32_0 : i32, i32
  }
  func.func @transform_11(%arg0: i32) -> (i32, i32) {
    %c0_i32 = arith.constant 0 : i32
    %c0_i32_0 = arith.constant 0 : i32
    return %arg0, %c0_i32 : i32, i32
  }
}

</mosaic_0001>

<llo_original>
// kernel: cnn_forward.1
$region0: #{cnn_forward.1}
  #allocation0 [shape = 'u32[]', space=smem, size = 0x4, offset = 0x4, fixed_abs, tag = 'smem constant byte address 0x4 - core index']
  #allocation1 [shape = 'u32[144,128]{1,0:T(1,128)}', space=vmem, size = 0x12000, scoped, tag = 'internal scratch']
  %s0 = inlined_call_operand.vmem [shape: f32[32,24,96], index: 0, kind: input, shape index: {}]
  %s1 = inlined_call_operand.vmem [shape: f32[5,96,256], index: 1, kind: input, shape index: {}]
  %s2 = inlined_call_operand.vmem [shape: f32[1,256], index: 2, kind: input, shape index: {}]
  %s3 = inlined_call_operand.vmem [shape: f32[5,128,256], index: 3, kind: input, shape index: {}]
  %s4 = inlined_call_operand.vmem [shape: f32[1,256], index: 4, kind: input, shape index: {}]
  %s5 = inlined_call_operand.vmem [shape: f32[640,128], index: 5, kind: input, shape index: {}]
  %s6 = inlined_call_operand.vmem [shape: f32[1,128], index: 6, kind: input, shape index: {}]
  %s7 = inlined_call_operand.vmem [shape: f32[128,128], index: 7, kind: input, shape index: {}]
  %s8 = inlined_call_operand.vmem [shape: f32[1,128], index: 8, kind: input, shape index: {}]
  %s9 = inlined_call_operand.vmem [shape: f32[128,128], index: 9, kind: input, shape index: {}]
  %s10 = inlined_call_operand.vmem [shape: f32[1,128], index: 10, kind: input, shape index: {}]
  %s11 = inlined_call_operand.vmem [shape: f32[24,128], index: 11, kind: output, shape index: {}]
  %s12 = sld [smem:[#allocation0]]
  $region115: #{cnn_forward.1} parent=0
    _
  %s14 = ssub.s32 1, %s12
  %s15 = scalar_select 0, %s14, %s12
  $region1: #{cnn_forward.1} parent=0
    #allocation2 [shape = 'u8[262144]{0}', space=vmem, size = 0x40000, scoped, tag = 'input window, operand 0']
    loop: start=0, step=1, limit=5
    $region2: #{cnn_forward.1} parent=1 // loop_pre_header
      _
    $region3: #{cnn_forward.1} parent=1 // loop_header
      %s17 = sphi 0, %s21
      %p18 = scmp.ge.s32.totalorder %s17, 5
      %s27 = sphi 0, %s29
      %s30 = sphi 0, %s27
      %s31 = sphi 0, %s30
      %s47 = sphi 0, %s31
      %s51 = sphi 0, %s51
      %s53 = sphi 0, %s51
      %s54 = sphi 0, %s53
      %s68 = sphi 0, %s54
      %s72 = sphi 0, %s72
      %s74 = sphi 0, %s72
      %s75 = sphi 0, %s74
      %s89 = sphi 0, %s75
      %s93 = sphi 0, %s93
      %s95 = sphi 0, %s93
      %s96 = sphi 0, %s95
      %s110 = sphi 0, %s96
      %s114 = sphi 0, %s114
      %s116 = sphi 0, %s114
      %s117 = sphi 0, %s116
      %s131 = sphi 0, %s117
      %s135 = sphi 0, %s135
      %s137 = sphi 0, %s135
      %s138 = sphi 0, %s137
      %s152 = sphi 0, %s138
      %s156 = sphi 0, %s156
      %s158 = sphi 0, %s156
      %s159 = sphi 0, %s158
      %s173 = sphi 0, %s159
      %s177 = sphi 0, %s177
      %s179 = sphi 0, %s177
      %s180 = sphi 0, %s179
      %s194 = sphi 0, %s180
      %s198 = sphi 0, %s198
      %s200 = sphi 0, %s198
      %s201 = sphi 0, %s200
      %s215 = sphi 0, %s201
      %s219 = sphi 0, %s219
      %s221 = sphi 0, %s219
      %s222 = sphi 0, %s221
      %s236 = sphi 0, %s222
      %s240 = sphi 0, %s240
      %s242 = sphi 0, %s240
      %s243 = sphi 0, %s242
      %s257 = sphi 0, %s243
      %s263 = sphi 0, %s265
      %s266 = sphi 0, %s263
      %s267 = sphi 0, %s266
      %s283 = sphi 0, %s267
    $region4: #{cnn_forward.1} parent=1 // loop_header_branch
      %20 = sbr.rel (%p18) target = $region8
    $region5: #{cnn_forward.1} parent=1 // loop_body
      %s22 = ssub.s32 %s17, 1
      %s23 = ssub.s32 %s17, 2
      %s24 = sadd.s32 %s17, 1
      %s25 = ssub.s32 %s17, %s24
      %p26 = scmp.eq.s32.totalorder %s25, 0
      %s28 = sadd.s32 %s27, 1
      %s29 = scalar_select %p26, %s27, %s28
      %p32 = pneg %p26
      %p33 = scmp.eq.s32.totalorder %s17, 2
      %p34 = por %p32, %p33
      %p35 = scmp.ne.s32.totalorder %s27, %s30
      %p36 = scmp.eq.s32.totalorder %s17, 0
      %p37 = por %p35, %p36
      %p38 = scmp.ne.s32.totalorder %s27, %s30
      %p39 = scmp.eq.s32.totalorder %s22, 2
      %p40 = por %p38, %p39
      %p41 = scmp.ne.s32.totalorder %s30, %s31
      %p42 = scmp.eq.s32.totalorder %s22, 0
      %p43 = por %p41, %p42
      %p44 = scmp.ne.s32.totalorder %s30, %s31
      %p45 = scmp.eq.s32.totalorder %s23, 2
      %p46 = por %p44, %p45
      %p48 = scmp.ne.s32.totalorder %s31, %s47
      %p49 = scmp.eq.s32.totalorder %s23, 0
      %p50 = por %p48, %p49
      %s52 = sadd.s32 %s51, 1
      %p55 = scmp.eq.s32.totalorder %s17, 2
      %p56 = scmp.ne.s32.totalorder %s51, %s53
      %p57 = scmp.eq.s32.totalorder %s17, 0
      %p58 = por %p56, %p57
      %p59 = scmp.ne.s32.totalorder %s51, %s53
      %p60 = scmp.eq.s32.totalorder %s22, 2
      %p61 = por %p59, %p60
      %p62 = scmp.ne.s32.totalorder %s53, %s54
      %p63 = scmp.eq.s32.totalorder %s22, 0
      %p64 = por %p62, %p63
      %p65 = scmp.ne.s32.totalorder %s53, %s54
      %p66 = scmp.eq.s32.totalorder %s23, 2
      %p67 = por %p65, %p66
      %p69 = scmp.ne.s32.totalorder %s54, %s68
      %p70 = scmp.eq.s32.totalorder %s23, 0
      %p71 = por %p69, %p70
      %s73 = sadd.s32 %s72, 1
      %p76 = scmp.eq.s32.totalorder %s17, 2
      %p77 = scmp.ne.s32.totalorder %s72, %s74
      %p78 = scmp.eq.s32.totalorder %s17, 0
      %p79 = por %p77, %p78
      %p80 = scmp.ne.s32.totalorder %s72, %s74
      %p81 = scmp.eq.s32.totalorder %s22, 2
      %p82 = por %p80, %p81
      %p83 = scmp.ne.s32.totalorder %s74, %s75
      %p84 = scmp.eq.s32.totalorder %s22, 0
      %p85 = por %p83, %p84
      %p86 = scmp.ne.s32.totalorder %s74, %s75
      %p87 = scmp.eq.s32.totalorder %s23, 2
      %p88 = por %p86, %p87
      %p90 = scmp.ne.s32.totalorder %s75, %s89
      %p91 = scmp.eq.s32.totalorder %s23, 0
      %p92 = por %p90, %p91
      %s94 = sadd.s32 %s93, 1
      %p97 = scmp.eq.s32.totalorder %s17, 2
      %p98 = scmp.ne.s32.totalorder %s93, %s95
      %p99 = scmp.eq.s32.totalorder %s17, 0
      %p100 = por %p98, %p99
      %p101 = scmp.ne.s32.totalorder %s93, %s95
      %p102 = scmp.eq.s32.totalorder %s22, 2
      %p103 = por %p101, %p102
      %p104 = scmp.ne.s32.totalorder %s95, %s96
      %p105 = scmp.eq.s32.totalorder %s22, 0
      %p106 = por %p104, %p105
      %p107 = scmp.ne.s32.totalorder %s95, %s96
      %p108 = scmp.eq.s32.totalorder %s23, 2
      %p109 = por %p107, %p108
      %p111 = scmp.ne.s32.totalorder %s96, %s110
      %p112 = scmp.eq.s32.totalorder %s23, 0
      %p113 = por %p111, %p112
      %s115 = sadd.s32 %s114, 1
      %p118 = scmp.eq.s32.totalorder %s17, 2
      %p119 = scmp.ne.s32.totalorder %s114, %s116
      %p120 = scmp.eq.s32.totalorder %s17, 0
      %p121 = por %p119, %p120
      %p122 = scmp.ne.s32.totalorder %s114, %s116
      %p123 = scmp.eq.s32.totalorder %s22, 2
      %p124 = por %p122, %p123
      %p125 = scmp.ne.s32.totalorder %s116, %s117
      %p126 = scmp.eq.s32.totalorder %s22, 0
      %p127 = por %p125, %p126
      %p128 = scmp.ne.s32.totalorder %s116, %s117
      %p129 = scmp.eq.s32.totalorder %s23, 2
      %p130 = por %p128, %p129
      %p132 = scmp.ne.s32.totalorder %s117, %s131
      %p133 = scmp.eq.s32.totalorder %s23, 0
      %p134 = por %p132, %p133
      %s136 = sadd.s32 %s135, 1
      %p139 = scmp.eq.s32.totalorder %s17, 2
      %p140 = scmp.ne.s32.totalorder %s135, %s137
      %p141 = scmp.eq.s32.totalorder %s17, 0
      %p142 = por %p140, %p141
      %p143 = scmp.ne.s32.totalorder %s135, %s137
      %p144 = scmp.eq.s32.totalorder %s22, 2
      %p145 = por %p143, %p144
      %p146 = scmp.ne.s32.totalorder %s137, %s138
      %p147 = scmp.eq.s32.totalorder %s22, 0
      %p148 = por %p146, %p147
      %p149 = scmp.ne.s32.totalorder %s137, %s138
      %p150 = scmp.eq.s32.totalorder %s23, 2
      %p151 = por %p149, %p150
      %p153 = scmp.ne.s32.totalorder %s138, %s152
      %p154 = scmp.eq.s32.totalorder %s23, 0
      %p155 = por %p153, %p154
      %s157 = sadd.s32 %s156, 1
      %p160 = scmp.eq.s32.totalorder %s17, 2
      %p161 = scmp.ne.s32.totalorder %s156, %s158
      %p162 = scmp.eq.s32.totalorder %s17, 0
      %p163 = por %p161, %p162
      %p164 = scmp.ne.s32.totalorder %s156, %s158
      %p165 = scmp.eq.s32.totalorder %s22, 2
      %p166 = por %p164, %p165
      %p167 = scmp.ne.s32.totalorder %s158, %s159
      %p168 = scmp.eq.s32.totalorder %s22, 0
      %p169 = por %p167, %p168
      %p170 = scmp.ne.s32.totalorder %s158, %s159
      %p171 = scmp.eq.s32.totalorder %s23, 2
      %p172 = por %p170, %p171
      %p174 = scmp.ne.s32.totalorder %s159, %s173
      %p175 = scmp.eq.s32.totalorder %s23, 0
      %p176 = por %p174, %p175
      %s178 = sadd.s32 %s177, 1
      %p181 = scmp.eq.s32.totalorder %s17, 2
      %p182 = scmp.ne.s32.totalorder %s177, %s179
      %p183 = scmp.eq.s32.totalorder %s17, 0
      %p184 = por %p182, %p183
      %p185 = scmp.ne.s32.totalorder %s177, %s179
      %p186 = scmp.eq.s32.totalorder %s22, 2
      %p187 = por %p185, %p186
      %p188 = scmp.ne.s32.totalorder %s179, %s180
      %p189 = scmp.eq.s32.totalorder %s22, 0
      %p190 = por %p188, %p189
      %p191 = scmp.ne.s32.totalorder %s179, %s180
      %p192 = scmp.eq.s32.totalorder %s23, 2
      %p193 = por %p191, %p192
      %p195 = scmp.ne.s32.totalorder %s180, %s194
      %p196 = scmp.eq.s32.totalorder %s23, 0
      %p197 = por %p195, %p196
      %s199 = sadd.s32 %s198, 1
      %p202 = scmp.eq.s32.totalorder %s17, 2
      %p203 = scmp.ne.s32.totalorder %s198, %s200
      %p204 = scmp.eq.s32.totalorder %s17, 0
      %p205 = por %p203, %p204
      %p206 = scmp.ne.s32.totalorder %s198, %s200
      %p207 = scmp.eq.s32.totalorder %s22, 2
      %p208 = por %p206, %p207
      %p209 = scmp.ne.s32.totalorder %s200, %s201
      %p210 = scmp.eq.s32.totalorder %s22, 0
      %p211 = por %p209, %p210
      %p212 = scmp.ne.s32.totalorder %s200, %s201
      %p213 = scmp.eq.s32.totalorder %s23, 2
      %p214 = por %p212, %p213
      %p216 = scmp.ne.s32.totalorder %s201, %s215
      %p217 = scmp.eq.s32.totalorder %s23, 0
      %p218 = por %p216, %p217
      %s220 = sadd.s32 %s219, 1
      %p223 = scmp.eq.s32.totalorder %s17, 2
      %p224 = scmp.ne.s32.totalorder %s219, %s221
      %p225 = scmp.eq.s32.totalorder %s17, 0
      %p226 = por %p224, %p225
      %p227 = scmp.ne.s32.totalorder %s219, %s221
      %p228 = scmp.eq.s32.totalorder %s22, 2
      %p229 = por %p227, %p228
      %p230 = scmp.ne.s32.totalorder %s221, %s222
      %p231 = scmp.eq.s32.totalorder %s22, 0
      %p232 = por %p230, %p231
      %p233 = scmp.ne.s32.totalorder %s221, %s222
      %p234 = scmp.eq.s32.totalorder %s23, 2
      %p235 = por %p233, %p234
      %p237 = scmp.ne.s32.totalorder %s222, %s236
      %p238 = scmp.eq.s32.totalorder %s23, 0
      %p239 = por %p237, %p238
      %s241 = sadd.s32 %s240, 1
      %p244 = scmp.eq.s32.totalorder %s17, 2
      %p245 = scmp.ne.s32.totalorder %s240, %s242
      %p246 = scmp.eq.s32.totalorder %s17, 0
      %p247 = por %p245, %p246
      %p248 = scmp.ne.s32.totalorder %s240, %s242
      %p249 = scmp.eq.s32.totalorder %s22, 2
      %p250 = por %p248, %p249
      %p251 = scmp.ne.s32.totalorder %s242, %s243
      %p252 = scmp.eq.s32.totalorder %s22, 0
      %p253 = por %p251, %p252
      %p254 = scmp.ne.s32.totalorder %s242, %s243
      %p255 = scmp.eq.s32.totalorder %s23, 2
      %p256 = por %p254, %p255
      %p258 = scmp.ne.s32.totalorder %s243, %s257
      %p259 = scmp.eq.s32.totalorder %s23, 0
      %p260 = por %p258, %p259
      %s261 = ssub.s32 %s17, %s24
      %p262 = scmp.eq.s32.totalorder %s261, 0
      %s264 = sadd.s32 %s263, 1
      %s265 = scalar_select %p262, %s263, %s264
      %p268 = pneg %p262
      %p269 = scmp.eq.s32.totalorder %s17, 2
      %p270 = por %p268, %p269
      %p271 = scmp.ne.s32.totalorder %s263, %s266
      %p272 = scmp.eq.s32.totalorder %s17, 0
      %p273 = por %p271, %p272
      %p274 = scmp.ne.s32.totalorder %s263, %s266
      %p275 = scmp.eq.s32.totalorder %s22, 2
      %p276 = por %p274, %p275
      %p277 = scmp.ne.s32.totalorder %s266, %s267
      %p278 = scmp.eq.s32.totalorder %s22, 0
      %p279 = por %p277, %p278
      %p280 = scmp.ne.s32.totalorder %s266, %s267
      %p281 = scmp.eq.s32.totalorder %s23, 2
      %p282 = por %p280, %p281
      %p284 = scmp.ne.s32.totalorder %s267, %s283
      %p285 = scmp.eq.s32.totalorder %s23, 0
      %p286 = por %p284, %p285
      %p287 = scmp.le.s32.totalorder 1, %s17
      %p288 = scmp.lt.s32.totalorder %s17, 4
      %p289 = pnand %p287, %p288
      %p290 = pneg %p289
      // Predicated region
      $region9: #{cnn_forward.1} parent=5 // pred_check
        _
      $region10: #{cnn_forward.1} parent=5 // pred_check_branch
        %292 = sbr.rel (%p289) target = $region12
      $region11: #{cnn_forward.1} parent=5 // pred_region
        %s293 = ssub.s32 %s17, 1
        // Predicated region
        $region13: #{cnn_forward.1} parent=11 // pred_check
          %p294 = pneg %p64
        $region14: #{cnn_forward.1} parent=11 // pred_check_branch
          %296 = sbr.rel (%p294) target = $region16
        $region15: #{cnn_forward.1} parent=11 // pred_region
          _
        $region16: #{cnn_forward.1} parent=11 // pred_fallthru
          _
        // Predicated region
        $region17: #{cnn_forward.1} parent=11 // pred_check
          %p297 = pneg %p85
        $region18: #{cnn_forward.1} parent=11 // pred_check_branch
          %299 = sbr.rel (%p297) target = $region20
        $region19: #{cnn_forward.1} parent=11 // pred_region
          _
        $region20: #{cnn_forward.1} parent=11 // pred_fallthru
          _
        // Predicated region
        $region21: #{cnn_forward.1} parent=11 // pred_check
          %p300 = pneg %p106
        $region22: #{cnn_forward.1} parent=11 // pred_check_branch
          %302 = sbr.rel (%p300) target = $region24
        $region23: #{cnn_forward.1} parent=11 // pred_region
          _
        $region24: #{cnn_forward.1} parent=11 // pred_fallthru
          _
        // Predicated region
        $region25: #{cnn_forward.1} parent=11 // pred_check
          %p303 = pneg %p127
        $region26: #{cnn_forward.1} parent=11 // pred_check_branch
          %305 = sbr.rel (%p303) target = $region28
        $region27: #{cnn_forward.1} parent=11 // pred_region
          _
        $region28: #{cnn_forward.1} parent=11 // pred_fallthru
          _
        // Predicated region
        $region29: #{cnn_forward.1} parent=11 // pred_check
          %p306 = pneg %p148
        $region30: #{cnn_forward.1} parent=11 // pred_check_branch
          %308 = sbr.rel (%p306) target = $region32
        $region31: #{cnn_forward.1} parent=11 // pred_region
          _
        $region32: #{cnn_forward.1} parent=11 // pred_fallthru
          _
        // Predicated region
        $region33: #{cnn_forward.1} parent=11 // pred_check
          %p309 = pneg %p169
        $region34: #{cnn_forward.1} parent=11 // pred_check_branch
          %311 = sbr.rel (%p309) target = $region36
        $region35: #{cnn_forward.1} parent=11 // pred_region
          _
        $region36: #{cnn_forward.1} parent=11 // pred_fallthru
          _
        // Predicated region
        $region37: #{cnn_forward.1} parent=11 // pred_check
          %p312 = pneg %p190
        $region38: #{cnn_forward.1} parent=11 // pred_check_branch
          %314 = sbr.rel (%p312) target = $region40
        $region39: #{cnn_forward.1} parent=11 // pred_region
          _
        $region40: #{cnn_forward.1} parent=11 // pred_fallthru
          _
        // Predicated region
        $region41: #{cnn_forward.1} parent=11 // pred_check
          %p315 = pneg %p211
        $region42: #{cnn_forward.1} parent=11 // pred_check_branch
          %317 = sbr.rel (%p315) target = $region44
        $region43: #{cnn_forward.1} parent=11 // pred_region
          _
        $region44: #{cnn_forward.1} parent=11 // pred_fallthru
          _
        // Predicated region
        $region45: #{cnn_forward.1} parent=11 // pred_check
          %p318 = pneg %p232
        $region46: #{cnn_forward.1} parent=11 // pred_check_branch
          %320 = sbr.rel (%p318) target = $region48
        $region47: #{cnn_forward.1} parent=11 // pred_region
          _
        $region48: #{cnn_forward.1} parent=11 // pred_fallthru
          _
        // Predicated region
        $region49: #{cnn_forward.1} parent=11 // pred_check
          %p321 = pneg %p253
        $region50: #{cnn_forward.1} parent=11 // pred_check_branch
          %323 = sbr.rel (%p321) target = $region52
        $region51: #{cnn_forward.1} parent=11 // pred_region
          _
        $region52: #{cnn_forward.1} parent=11 // pred_fallthru
          _
      $region12: #{cnn_forward.1} parent=5 // pred_fallthru
        _
      %p324 = scmp.lt.s32.totalorder %s17, 3
      // Predicated region
      $region53: #{cnn_forward.1} parent=5 // pred_check
        %p325 = pneg %p324
      $region54: #{cnn_forward.1} parent=5 // pred_check_branch
        %327 = sbr.rel (%p325) target = $region56
      $region55: #{cnn_forward.1} parent=5 // pred_region
        // Predicated region
        $region57: #{cnn_forward.1} parent=55 // pred_check
          %p328 = pneg %p37
        $region58: #{cnn_forward.1} parent=55 // pred_check_branch
          %330 = sbr.rel (%p328) target = $region60
        $region59: #{cnn_forward.1} parent=55 // pred_region
          %s331 = sand.u32 %s27, 1
          %s332 = sand.u32 %s27, 1
          %s333 = smul.addr %s332, 256
          %s334 = scalar_lea.vmem [#allocation2], %s333
          %s335 = smul.addr %s17, 8
          %s336 = scalar_lea.vmem %s0, %s335
          // Predicated region
          $region61: #{cnn_forward.1} parent=59 // pred_check
            _
          $region62: #{cnn_forward.1} parent=59 // pred_check_branch
            %338 = sbr.rel (0) target = $region64
          $region63: #{cnn_forward.1} parent=59 // pred_region
            // Predicated region
            $region65: #{cnn_forward.1} parent=63 // pred_check
              _
            $region66: #{cnn_forward.1} parent=63 // pred_check_branch
              %340 = sbr.rel (0) target = $region68
            $region67: #{cnn_forward.1} parent=63 // pred_region
              // Predicated region
              $region80: #{cnn_forward.1} parent=67 // pred_check
                _
              $region81: #{cnn_forward.1} parent=67 // pred_check_branch
                %418 = sbr.rel (0) target = $region83
              $region82: #{cnn_forward.1} parent=67 // pred_region
                loop: start=0, step=1, limit=1
                $region84: #{cnn_forward.1} parent=82 // loop_pre_header
                  _
                $region85: #{cnn_forward.1} parent=82 // loop_header
                  %s420 = sphi 0, %s424
                  %p421 = scmp.ge.s32.totalorder %s420, 1
                  %s425 = sphi %s336, %s336
                  %s426 = sphi %s334, %s334
                $region86: #{cnn_forward.1} parent=82 // loop_header_branch
                  %423 = sbr.rel (%p421) target = $region90
                $region87: #{cnn_forward.1} parent=82 // loop_body
                  %v427 = vld [vmem:[%s425] sm:$0xff]
                  %428 = vst [vmem:[%s426] sm:$0xff] %v427
                  %v429 = vld [vmem:[%s425 + $0x18] sm:$0xff]
                  %430 = vst [vmem:[%s426 + $0x8] sm:$0xff] %v429
                  %v431 = vld [vmem:[%s425 + $0x30] sm:$0xff]
                  %432 = vst [vmem:[%s426 + $0x10] sm:$0xff] %v431
                  %v433 = vld [vmem:[%s425 + $0x48] sm:$0xff]
                  %434 = vst [vmem:[%s426 + $0x18] sm:$0xff] %v433
                  %v435 = vld [vmem:[%s425 + $0x60] sm:$0xff]
                  %436 = vst [vmem:[%s426 + $0x20] sm:$0xff] %v435
                  %v437 = vld [vmem:[%s425 + $0x78] sm:$0xff]
                  %438 = vst [vmem:[%s426 + $0x28] sm:$0xff] %v437
                  %v439 = vld [vmem:[%s425 + $0x90] sm:$0xff]
                  %440 = vst [vmem:[%s426 + $0x30] sm:$0xff] %v439
                  %v441 = vld [vmem:[%s425 + $0xa8] sm:$0xff]
                  %442 = vst [vmem:[%s426 + $0x38] sm:$0xff] %v441
                  %v443 = vld [vmem:[%s425 + $0xc0] sm:$0xff]
                  %444 = vst [vmem:[%s426 + $0x40] sm:$0xff] %v443
                  %v445 = vld [vmem:[%s425 + $0xd8] sm:$0xff]
                  %446 = vst [vmem:[%s426 + $0x48] sm:$0xff] %v445
                  %v447 = vld [vmem:[%s425 + $0xf0] sm:$0xff]
                  %448 = vst [vmem:[%s426 + $0x50] sm:$0xff] %v447
                  %v449 = vld [vmem:[%s425 + $0x108] sm:$0xff]
                  %450 = vst [vmem:[%s426 + $0x58] sm:$0xff] %v449
                  %v451 = vld [vmem:[%s425 + $0x120] sm:$0xff]
                  %452 = vst [vmem:[%s426 + $0x60] sm:$0xff] %v451
                  %v453 = vld [vmem:[%s425 + $0x138] sm:$0xff]
                  %454 = vst [vmem:[%s426 + $0x68] sm:$0xff] %v453
                  %v455 = vld [vmem:[%s425 + $0x150] sm:$0xff]
                  %456 = vst [vmem:[%s426 + $0x70] sm:$0xff] %v455
                  %v457 = vld [vmem:[%s425 + $0x168] sm:$0xff]
                  %458 = vst [vmem:[%s426 + $0x78] sm:$0xff] %v457
                  %v459 = vld [vmem:[%s425 + $0x180] sm:$0xff]
                  %460 = vst [vmem:[%s426 + $0x80] sm:$0xff] %v459
                  %v461 = vld [vmem:[%s425 + $0x198] sm:$0xff]
                  %462 = vst [vmem:[%s426 + $0x88] sm:$0xff] %v461
                  %v463 = vld [vmem:[%s425 + $0x1b0] sm:$0xff]
                  %464 = vst [vmem:[%s426 + $0x90] sm:$0xff] %v463
                  %v465 = vld [vmem:[%s425 + $0x1c8] sm:$0xff]
                  %466 = vst [vmem:[%s426 + $0x98] sm:$0xff] %v465
                  %v467 = vld [vmem:[%s425 + $0x1e0] sm:$0xff]
                  %468 = vst [vmem:[%s426 + $0xa0] sm:$0xff] %v467
                  %v469 = vld [vmem:[%s425 + $0x1f8] sm:$0xff]
                  %470 = vst [vmem:[%s426 + $0xa8] sm:$0xff] %v469
                  %v471 = vld [vmem:[%s425 + $0x210] sm:$0xff]
                  %472 = vst [vmem:[%s426 + $0xb0] sm:$0xff] %v471
                  %v473 = vld [vmem:[%s425 + $0x228] sm:$0xff]
                  %474 = vst [vmem:[%s426 + $0xb8] sm:$0xff] %v473
                  %v475 = vld [vmem:[%s425 + $0x240] sm:$0xff]
                  %476 = vst [vmem:[%s426 + $0xc0] sm:$0xff] %v475
                  %v477 = vld [vmem:[%s425 + $0x258] sm:$0xff]
                  %478 = vst [vmem:[%s426 + $0xc8] sm:$0xff] %v477
                  %v479 = vld [vmem:[%s425 + $0x270] sm:$0xff]
                  %480 = vst [vmem:[%s426 + $0xd0] sm:$0xff] %v479
                  %v481 = vld [vmem:[%s425 + $0x288] sm:$0xff]
                  %482 = vst [vmem:[%s426 + $0xd8] sm:$0xff] %v481
                  %v483 = vld [vmem:[%s425 + $0x2a0] sm:$0xff]
                  %484 = vst [vmem:[%s426 + $0xe0] sm:$0xff] %v483
                  %v485 = vld [vmem:[%s425 + $0x2b8] sm:$0xff]
                  %486 = vst [vmem:[%s426 + $0xe8] sm:$0xff] %v485
                  %v487 = vld [vmem:[%s425 + $0x2d0] sm:$0xff]
                  %488 = vst [vmem:[%s426 + $0xf0] sm:$0xff] %v487
                  %v489 = vld [vmem:[%s425 + $0x2e8] sm:$0xff]
                  %490 = vst [vmem:[%s426 + $0xf8] sm:$0xff] %v489
                $region88: #{cnn_forward.1} parent=82 // loop_footer
                  %s424 = sadd.s32 1, %s420
                $region89: #{cnn_forward.1} parent=82 // loop_footer_branch
                  %419 = sbr.rel target = $region85
                $region90: #{cnn_forward.1} parent=82 // loop_exit
                  _
              $region83: #{cnn_forward.1} parent=67 // pred_fallthru
                _
              // Predicated region
              $region91: #{cnn_forward.1} parent=67 // pred_check
                _
              $region92: #{cnn_forward.1} parent=67 // pred_check_branch
                %492 = sbr.rel target = $region94
              $region93: #{cnn_forward.1} parent=67 // pred_region
                _
              $region94: #{cnn_forward.1} parent=67 // pred_fallthru
                _
            $region68: #{cnn_forward.1} parent=63 // pred_fallthru
              _
            // Predicated region
            $region69: #{cnn_forward.1} parent=63 // pred_check
              _
            $region70: #{cnn_forward.1} parent=63 // pred_check_branch
              %342 = sbr.rel target = $region72
            $region71: #{cnn_forward.1} parent=63 // pred_region
              %s344 = ssub.s32 256, 1
              loop: start=0, step=1, limit=1
              $region73: #{cnn_forward.1} parent=71 // loop_pre_header
                _
              $region74: #{cnn_forward.1} parent=71 // loop_header
                %s346 = sphi 0, %s350
                %p347 = scmp.ge.s32.totalorder %s346, 1
                %s351 = sphi %s336, %s336
                %s352 = sphi %s334, %s334
              $region75: #{cnn_forward.1} parent=71 // loop_header_branch
                %349 = sbr.rel (%p347) target = $region79
              $region76: #{cnn_forward.1} parent=71 // loop_body
                %v353 = vld [vmem:[%s351] sm:%s344]
                %354 = vst [vmem:[%s352] sm:%s344] %v353
                %v355 = vld [vmem:[%s351 + $0x18] sm:%s344]
                %356 = vst [vmem:[%s352 + $0x8] sm:%s344] %v355
                %v357 = vld [vmem:[%s351 + $0x30] sm:%s344]
                %358 = vst [vmem:[%s352 + $0x10] sm:%s344] %v357
                %v359 = vld [vmem:[%s351 + $0x48] sm:%s344]
                %360 = vst [vmem:[%s352 + $0x18] sm:%s344] %v359
                %v361 = vld [vmem:[%s351 + $0x60] sm:%s344]
                %362 = vst [vmem:[%s352 + $0x20] sm:%s344] %v361
                %v363 = vld [vmem:[%s351 + $0x78] sm:%s344]
                %364 = vst [vmem:[%s352 + $0x28] sm:%s344] %v363
                %v365 = vld [vmem:[%s351 + $0x90] sm:%s344]
                %366 = vst [vmem:[%s352 + $0x30] sm:%s344] %v365
                %v367 = vld [vmem:[%s351 + $0xa8] sm:%s344]
                %368 = vst [vmem:[%s352 + $0x38] sm:%s344] %v367
                %v369 = vld [vmem:[%s351 + $0xc0] sm:%s344]
                %370 = vst [vmem:[%s352 + $0x40] sm:%s344] %v369
                %v371 = vld [vmem:[%s351 + $0xd8] sm:%s344]
                %372 = vst [vmem:[%s352 + $0x48] sm:%s344] %v371
                %v373 = vld [vmem:[%s351 + $0xf0] sm:%s344]
                %374 = vst [vmem:[%s352 + $0x50] sm:%s344] %v373
                %v375 = vld [vmem:[%s351 + $0x108] sm:%s344]
                %376 = vst [vmem:[%s352 + $0x58] sm:%s344] %v375
                %v377 = vld [vmem:[%s351 + $0x120] sm:%s344]
                %378 = vst [vmem:[%s352 + $0x60] sm:%s344] %v377
                %v379 = vld [vmem:[%s351 + $0x138] sm:%s344]
                %380 = vst [vmem:[%s352 + $0x68] sm:%s344] %v379
                %v381 = vld [vmem:[%s351 + $0x150] sm:%s344]
                %382 = vst [vmem:[%s352 + $0x70] sm:%s344] %v381
                %v383 = vld [vmem:[%s351 + $0x168] sm:%s344]
                %384 = vst [vmem:[%s352 + $0x78] sm:%s344] %v383
                %v385 = vld [vmem:[%s351 + $0x180] sm:%s344]
                %386 = vst [vmem:[%s352 + $0x80] sm:%s344] %v385
                %v387 = vld [vmem:[%s351 + $0x198] sm:%s344]
                %388 = vst [vmem:[%s352 + $0x88] sm:%s344] %v387
                %v389 = vld [vmem:[%s351 + $0x1b0] sm:%s344]
                %390 = vst [vmem:[%s352 + $0x90] sm:%s344] %v389
                %v391 = vld [vmem:[%s351 + $0x1c8] sm:%s344]
                %392 = vst [vmem:[%s352 + $0x98] sm:%s344] %v391
                %v393 = vld [vmem:[%s351 + $0x1e0] sm:%s344]
                %394 = vst [vmem:[%s352 + $0xa0] sm:%s344] %v393
                %v395 = vld [vmem:[%s351 + $0x1f8] sm:%s344]
                %396 = vst [vmem:[%s352 + $0xa8] sm:%s344] %v395
                %v397 = vld [vmem:[%s351 + $0x210] sm:%s344]
                %398 = vst [vmem:[%s352 + $0xb0] sm:%s344] %v397
                %v399 = vld [vmem:[%s351 + $0x228] sm:%s344]
                %400 = vst [vmem:[%s352 + $0xb8] sm:%s344] %v399
                %v401 = vld [vmem:[%s351 + $0x240] sm:%s344]
                %402 = vst [vmem:[%s352 + $0xc0] sm:%s344] %v401
                %v403 = vld [vmem:[%s351 + $0x258] sm:%s344]
                %404 = vst [vmem:[%s352 + $0xc8] sm:%s344] %v403
                %v405 = vld [vmem:[%s351 + $0x270] sm:%s344]
                %406 = vst [vmem:[%s352 + $0xd0] sm:%s344] %v405
                %v407 = vld [vmem:[%s351 + $0x288] sm:%s344]
                %408 = vst [vmem:[%s352 + $0xd8] sm:%s344] %v407
                %v409 = vld [vmem:[%s351 + $0x2a0] sm:%s344]
                %410 = vst [vmem:[%s352 + $0xe0] sm:%s344] %v409
                %v411 = vld [vmem:[%s351 + $0x2b8] sm:%s344]
                %412 = vst [vmem:[%s352 + $0xe8] sm:%s344] %v411
                %v413 = vld [vmem:[%s351 + $0x2d0] sm:%s344]
                %414 = vst [vmem:[%s352 + $0xf0] sm:%s344] %v413
                %v415 = vld [vmem:[%s351 + $0x2e8] sm:%s344]
                %416 = vst [vmem:[%s352 + $0xf8] sm:%s344] %v415
              $region77: #{cnn_forward.1} parent=71 // loop_footer
                %s350 = sadd.s32 1, %s346
              $region78: #{cnn_forward.1} parent=71 // loop_footer_branch
                %345 = sbr.rel target = $region74
              $region79: #{cnn_forward.1} parent=71 // loop_exit
                _
            $region72: #{cnn_forward.1} parent=63 // pred_fallthru
              _
          $region64: #{cnn_forward.1} parent=59 // pred_fallthru
            _
          %493 = vnop
        $region60: #{cnn_forward.1} parent=55 // pred_fallthru
          _
      $region56: #{cnn_forward.1} parent=5 // pred_fallthru
        _
      %p494 = scmp.le.s32.totalorder 1, %s17
      %p495 = scmp.lt.s32.totalorder %s17, 4
      %p496 = pnand %p494, %p495
      %p497 = pneg %p496
      // Predicated region
      $region95: #{cnn_forward.1} parent=5 // pred_check
        _
      $region96: #{cnn_forward.1} parent=5 // pred_check_branch
        %499 = sbr.rel (%p496) target = $region98
      $region97: #{cnn_forward.1} parent=5 // pred_region
        %s500 = ssub.s32 %s17, 1
        %s501 = sand.u32 %s30, 1
        %s502 = sand.u32 %s30, 1
        %s503 = smul.addr %s502, 256
        %s504 = scalar_lea.vmem [#allocation2], %s503
        // Predicated region
        $region99: #{cnn_forward.1} parent=97 // pred_check
          %p505 = pneg %p43
        $region100: #{cnn_forward.1} parent=97 // pred_check_branch
          %507 = sbr.rel (%p505) target = $region102
        $region101: #{cnn_forward.1} parent=97 // pred_region
          _
        $region102: #{cnn_forward.1} parent=97 // pred_fallthru
          _
        %s508 = sand.u32 %s30, 1
        %s509 = sand.u32 %s30, 1
        %s510 = smul.addr %s509, 256
        %s511 = scalar_lea.vmem [#allocation2], %s510
        %p512 = pneg %p43
        %p513 = pneg %p40
        %p514 = pneg %p64
        %p515 = pneg %p61
        %p516 = pneg %p85
        %p517 = pneg %p82
        %p518 = pneg %p106
        %p519 = pneg %p103
        %p520 = pneg %p127
        %p521 = pneg %p124
        %p522 = pneg %p148
        %p523 = pneg %p145
        %p524 = pneg %p169
        %p525 = pneg %p166
        %p526 = pneg %p190
        %p527 = pneg %p187
        %p528 = pneg %p211
        %p529 = pneg %p208
        %p530 = pneg %p232
        %p531 = pneg %p229
        %p532 = pneg %p253
        %p533 = pneg %p250
        %p534 = pneg %p279
        %p535 = pneg %p276
        %p536 = scmp.lt.s32.totalorder %s22, 2
        %s537 = scalar_select %p536, %s22, 2
        %s538 = smul.addr %s537, 8
        %s539 = scalar_lea.vmem %s11, %s538
        %p540 = scmp.lt.s32.totalorder %s22, 2
        %s541 = scalar_select %p540, %s22, 2
        %s542 = smul.addr %s541, 8
        %s543 = scalar_lea.vmem %s11, %s542
        %v544 = vld [vmem:[%s504] sm:$0xff]
        %v545 = vld [vmem:[%s504 + $0x8] sm:$0xff]
        %v546 = vld [vmem:[%s504 + $0x10] sm:$0xff]
        %v547 = vld [vmem:[%s504 + $0x18] sm:$0xff]
        %v548 = vld [vmem:[%s504 + $0x20] sm:$0xff]
        %v549 = vld [vmem:[%s504 + $0x28] sm:$0xff]
        %v550 = vld [vmem:[%s504 + $0x30] sm:$0xff]
        %v551 = vld [vmem:[%s504 + $0x38] sm:$0xff]
        %v552 = vld [vmem:[%s504 + $0x40] sm:$0xff]
        %v553 = vld [vmem:[%s504 + $0x48] sm:$0xff]
        %v554 = vld [vmem:[%s504 + $0x50] sm:$0xff]
        %v555 = vld [vmem:[%s504 + $0x58] sm:$0xff]
        %v556 = vld [vmem:[%s504 + $0x60] sm:$0xff]
        %v557 = vld [vmem:[%s504 + $0x68] sm:$0xff]
        %v558 = vld [vmem:[%s504 + $0x70] sm:$0xff]
        %v559 = vld [vmem:[%s504 + $0x78] sm:$0xff]
        %v560 = vld [vmem:[%s504 + $0x80] sm:$0xff]
        %v561 = vld [vmem:[%s504 + $0x88] sm:$0xff]
        %v562 = vld [vmem:[%s504 + $0x90] sm:$0xff]
        %v563 = vld [vmem:[%s504 + $0x98] sm:$0xff]
        %v564 = vld [vmem:[%s504 + $0xa0] sm:$0xff]
        %v565 = vld [vmem:[%s504 + $0xa8] sm:$0xff]
        %v566 = vld [vmem:[%s504 + $0xb0] sm:$0xff]
        %v567 = vld [vmem:[%s504 + $0xb8] sm:$0xff]
        %v568 = vld [vmem:[%s504 + $0xc0] sm:$0xff]
        %v569 = vld [vmem:[%s504 + $0xc8] sm:$0xff]
        %v570 = vld [vmem:[%s504 + $0xd0] sm:$0xff]
        %v571 = vld [vmem:[%s504 + $0xd8] sm:$0xff]
        %v572 = vld [vmem:[%s504 + $0xe0] sm:$0xff]
        %v573 = vld [vmem:[%s504 + $0xe8] sm:$0xff]
        %v574 = vld [vmem:[%s504 + $0xf0] sm:$0xff]
        %v575 = vld [vmem:[%s504 + $0xf8] sm:$0xff]
        %v576 = vld [vmem:[%s1] sm:$0xff]
        %v577 = vld [vmem:[%s1 + $0x8] sm:$0xff]
        %v578 = vld [vmem:[%s1 + $0x10] sm:$0xff]
        %v579 = vld [vmem:[%s1 + $0x18] sm:$0xff]
        %v580 = vld [vmem:[%s1 + $0x20] sm:$0xff]
        %v581 = vld [vmem:[%s1 + $0x28] sm:$0xff]
        %v582 = vld [vmem:[%s1 + $0x30] sm:$0xff]
        %v583 = vld [vmem:[%s1 + $0x38] sm:$0xff]
        %v584 = vld [vmem:[%s1 + $0x40] sm:$0xff]
        %v585 = vld [vmem:[%s1 + $0x48] sm:$0xff]
        %v586 = vld [vmem:[%s1 + $0x50] sm:$0xff]
        %v587 = vld [vmem:[%s1 + $0x58] sm:$0xff]
        %v588 = vld [vmem:[%s1 + $0x60] sm:$0xff]
        %v589 = vld [vmem:[%s1 + $0x68] sm:$0xff]
        %v590 = vld [vmem:[%s1 + $0x70] sm:$0xff]
        %v591 = vld [vmem:[%s1 + $0x78] sm:$0xff]
        %v592 = vld [vmem:[%s1 + $0x80] sm:$0xff]
        %v593 = vld [vmem:[%s1 + $0x88] sm:$0xff]
        %v594 = vld [vmem:[%s1 + $0x90] sm:$0xff]
        %v595 = vld [vmem:[%s1 + $0x98] sm:$0xff]
        %v596 = vld [vmem:[%s1 + $0xa0] sm:$0xff]
        %v597 = vld [vmem:[%s1 + $0xa8] sm:$0xff]
        %v598 = vld [vmem:[%s1 + $0xb0] sm:$0xff]
        %v599 = vld [vmem:[%s1 + $0xb8] sm:$0xff]
        %s600 = scalar_lea.vmem %s1, 192
        %v601 = vld [vmem:[%s600] sm:$0xff]
        %v602 = vld [vmem:[%s600 + $0x8] sm:$0xff]
        %v603 = vld [vmem:[%s600 + $0x10] sm:$0xff]
        %v604 = vld [vmem:[%s600 + $0x18] sm:$0xff]
        %v605 = vld [vmem:[%s600 + $0x20] sm:$0xff]
        %v606 = vld [vmem:[%s600 + $0x28] sm:$0xff]
        %v607 = vld [vmem:[%s600 + $0x30] sm:$0xff]
        %v608 = vld [vmem:[%s600 + $0x38] sm:$0xff]
        %v609 = vld [vmem:[%s600 + $0x40] sm:$0xff]
        %v610 = vld [vmem:[%s600 + $0x48] sm:$0xff]
        %v611 = vld [vmem:[%s600 + $0x50] sm:$0xff]
        %v612 = vld [vmem:[%s600 + $0x58] sm:$0xff]
        %v613 = vld [vmem:[%s600 + $0x60] sm:$0xff]
        %v614 = vld [vmem:[%s600 + $0x68] sm:$0xff]
        %v615 = vld [vmem:[%s600 + $0x70] sm:$0xff]
        %v616 = vld [vmem:[%s600 + $0x78] sm:$0xff]
        %v617 = vld [vmem:[%s600 + $0x80] sm:$0xff]
        %v618 = vld [vmem:[%s600 + $0x88] sm:$0xff]
        %v619 = vld [vmem:[%s600 + $0x90] sm:$0xff]
        %v620 = vld [vmem:[%s600 + $0x98] sm:$0xff]
        %v621 = vld [vmem:[%s600 + $0xa0] sm:$0xff]
        %v622 = vld [vmem:[%s600 + $0xa8] sm:$0xff]
        %v623 = vld [vmem:[%s600 + $0xb0] sm:$0xff]
        %v624 = vld [vmem:[%s600 + $0xb8] sm:$0xff]
        %vm625 = vcmask 785408
        %v627 = vsel %vm625, %v545, 0
        %v630 = vsel %vm625, %v546, 0
        %v633 = vsel %vm625, %v547, 0
        %v636 = vsel %vm625, %v548, 0
        %v639 = vsel %vm625, %v549, 0
        %v642 = vsel %vm625, %v550, 0
        %v645 = vsel %vm625, %v551, 0
        %v648 = vsel %vm625, %v552, 0
        %v651 = vsel %vm625, %v553, 0
        %v654 = vsel %vm625, %v554, 0
        %v657 = vsel %vm625, %v555, 0
        %v660 = vsel %vm625, %v556, 0
        %v663 = vsel %vm625, %v557, 0
        %v666 = vsel %vm625, %v558, 0
        %v669 = vsel %vm625, %v559, 0
        %v672 = vsel %vm625, %v560, 0
        %v675 = vsel %vm625, %v561, 0
        %v678 = vsel %vm625, %v562, 0
        %v681 = vsel %vm625, %v563, 0
        %v684 = vsel %vm625, %v564, 0
        %v687 = vsel %vm625, %v565, 0
        %v690 = vsel %vm625, %v566, 0
        %v693 = vsel %vm625, %v567, 0
        %v696 = vsel %vm625, %v568, 0
        %v699 = vsel %vm625, %v569, 0
        %v702 = vsel %vm625, %v570, 0
        %v705 = vsel %vm625, %v571, 0
        %v708 = vsel %vm625, %v572, 0
        %710 = vmatprep.subr.mxu0 0.0
        %711 = vmatpush1.msra.mxu0 0.0
        %712 = vmatprep.subr.mxu0 0.0
        %713 = vmatpush1.msra.mxu0 0.0
        %714 = vmatprep.subr.mxu0 0.0
        %715 = vmatpush1.msra.mxu0 0.0
        %716 = vmatprep.subr.mxu0 0.0
        %717 = vmatpush1.msra.mxu0 0.0
        %718 = vmatprep.subr.mxu0 %v624
        %719 = vmatpush1.msra.mxu0 %v623
        %720 = vmatprep.subr.mxu0 %v622
        %721 = vmatpush1.msra.mxu0 %v621
        %722 = vmatprep.subr.mxu0 %v620
        %723 = vmatpush1.msra.mxu0 %v619
        %724 = vmatprep.subr.mxu0 %v618
        %725 = vmatpush1.msra.mxu0 %v617
        %726 = vmatprep.subr.mxu0 %v616
        %727 = vmatpush1.msra.mxu0 %v615
        %728 = vmatprep.subr.mxu0 %v614
        %729 = vmatpush1.msra.mxu0 %v613
        %730 = vmatprep.subr.mxu0 %v612
        %731 = vmatpush1.msra.mxu0 %v611
        %732 = vmatprep.subr.mxu0 %v610
        %733 = vmatpush1.msra.mxu0 %v609
        %734 = vmatprep.subr.mxu0 %v608
        %735 = vmatpush1.msra.mxu0 %v607
        %736 = vmatprep.subr.mxu0 %v606
        %737 = vmatpush1.msra.mxu0 %v605
        %738 = vmatprep.subr.mxu0 %v604
        %739 = vmatpush1.msra.mxu0 %v603
        %740 = vmatprep.subr.mxu0 %v602
        %741 = vmatpush1.msra.mxu0 %v601
        %742 = vmatprep.subr.mxu0 0.0
        %743 = vmatpush2.msra.mxu0 0.0
        %744 = vmatprep.subr.mxu0 0.0
        %745 = vmatpush2.msra.mxu0 0.0
        %746 = vmatprep.subr.mxu0 0.0
        %747 = vmatpush2.msra.mxu0 0.0
        %748 = vmatprep.subr.mxu0 0.0
        %749 = vmatpush2.msra.mxu0 0.0
        %750 = vmatprep.subr.mxu0 0.0
        %751 = vmatpush2.msra.mxu0 0.0
        %752 = vmatprep.subr.mxu0 0.0
        %753 = vmatpush2.msra.mxu0 0.0
        %754 = vmatprep.subr.mxu0 0.0
        %755 = vmatpush2.msra.mxu0 0.0
        %756 = vmatprep.subr.mxu0 0.0
        %757 = vmatpush2.msra.mxu0 0.0
        %758 = vmatprep.subr.mxu0 0.0
        %759 = vmatpush2.msra.mxu0 0.0
        %760 = vmatprep.subr.mxu0 0.0
        %761 = vmatpush2.msra.mxu0 0.0
        %762 = vmatprep.subr.mxu0 0.0
        %763 = vmatpush2.msra.mxu0 0.0
        %764 = vmatprep.subr.mxu0 0.0
        %765 = vmatpush2.msra.mxu0 0.0
        %766 = vmatprep.subr.mxu0 0.0
        %767 = vmatpush2.msra.mxu0 0.0
        %768 = vmatprep.subr.mxu0 0.0
        %769 = vmatpush2.msra.mxu0 0.0
        %770 = vmatprep.subr.mxu0 0.0
        %771 = vmatpush2.msra.mxu0 0.0
        %772 = vmatprep.subr.mxu0 0.0
        %773 = vmatpush2.msra.mxu0 0.0
        %774 = vmatprep.mubr.f32.mxu0 0.0
        %775 = vmatmul.mubr.f32.gmra.mxu0 %v627
        %v776 = vpop.f32.mrf.mxu0
        %v777 = vadd.f32 0.0, %v776
        %v778 = vpop.f32.mrf.mxu0
        %v779 = vadd.f32 0.0, %v778
        %780 = vmatprep.mubr.f32.mxu0 0.0
        %781 = vmatmul.mubr.f32.gmra.mxu0 %v630
        %v782 = vpop.f32.mrf.mxu0
        %v783 = vadd.f32 0.0, %v782
        %v784 = vpop.f32.mrf.mxu0
        %v785 = vadd.f32 0.0, %v784
        %786 = vmatprep.mubr.f32.mxu0 0.0
        %787 = vmatmul.mubr.f32.gmra.mxu0 %v633
        %v788 = vpop.f32.mrf.mxu0
        %v789 = vadd.f32 0.0, %v788
        %v790 = vpop.f32.mrf.mxu0
        %v791 = vadd.f32 0.0, %v790
        %792 = vmatprep.mubr.f32.mxu0 0.0
        %793 = vmatmul.mubr.f32.gmra.mxu0 %v636
        %v794 = vpop.f32.mrf.mxu0
        %v795 = vadd.f32 0.0, %v794
        %v796 = vpop.f32.mrf.mxu0
        %v797 = vadd.f32 0.0, %v796
        %798 = vmatprep.mubr.f32.mxu0 0.0
        %799 = vmatmul.mubr.f32.gmra.mxu0 %v639
        %v800 = vpop.f32.mrf.mxu0
        %v801 = vadd.f32 0.0, %v800
        %v802 = vpop.f32.mrf.mxu0
        %v803 = vadd.f32 0.0, %v802
        %804 = vmatprep.mubr.f32.mxu0 0.0
        %805 = vmatmul.mubr.f32.gmra.mxu0 %v642
        %v806 = vpop.f32.mrf.mxu0
        %v807 = vadd.f32 0.0, %v806
        %v808 = vpop.f32.mrf.mxu0
        %v809 = vadd.f32 0.0, %v808
        %810 = vmatprep.mubr.f32.mxu0 0.0
        %811 = vmatmul.mubr.f32.gmra.mxu0 %v645
        %v812 = vpop.f32.mrf.mxu0
        %v813 = vadd.f32 0.0, %v812
        %v814 = vpop.f32.mrf.mxu0
        %v815 = vadd.f32 0.0, %v814
        %816 = vmatprep.mubr.f32.mxu0 0.0
        %817 = vmatmul.mubr.f32.gmra.mxu0 %v648
        %v818 = vpop.f32.mrf.mxu0
        %v819 = vadd.f32 0.0, %v818
        %v820 = vpop.f32.mrf.mxu0
        %v821 = vadd.f32 0.0, %v820
        %822 = vmatprep.mubr.f32.mxu0 0.0
        %823 = vmatmul.mubr.f32.gmra.mxu0 %v651
        %v824 = vpop.f32.mrf.mxu0
        %v825 = vadd.f32 0.0, %v824
        %v826 = vpop.f32.mrf.mxu0
        %v827 = vadd.f32 0.0, %v826
        %828 = vmatprep.mubr.f32.mxu0 0.0
        %829 = vmatmul.mubr.f32.gmra.mxu0 %v654
        %v830 = vpop.f32.mrf.mxu0
        %v831 = vadd.f32 0.0, %v830
        %v832 = vpop.f32.mrf.mxu0
        %v833 = vadd.f32 0.0, %v832
        %834 = vmatprep.mubr.f32.mxu0 0.0
        %835 = vmatmul.mubr.f32.gmra.mxu0 %v657
        %v836 = vpop.f32.mrf.mxu0
        %v837 = vadd.f32 0.0, %v836
        %v838 = vpop.f32.mrf.mxu0
        %v839 = vadd.f32 0.0, %v838
        %840 = vmatprep.mubr.f32.mxu0 0.0
        %841 = vmatmul.mubr.f32.gmra.mxu0 %v660
        %v842 = vpop.f32.mrf.mxu0
        %v843 = vadd.f32 0.0, %v842
        %v844 = vpop.f32.mrf.mxu0
        %v845 = vadd.f32 0.0, %v844
        %846 = vmatprep.mubr.f32.mxu0 0.0
        %847 = vmatmul.mubr.f32.gmra.mxu0 %v663
        %v848 = vpop.f32.mrf.mxu0
        %v849 = vadd.f32 0.0, %v848
        %v850 = vpop.f32.mrf.mxu0
        %v851 = vadd.f32 0.0, %v850
        %852 = vmatprep.mubr.f32.mxu0 0.0
        %853 = vmatmul.mubr.f32.gmra.mxu0 %v666
        %v854 = vpop.f32.mrf.mxu0
        %v855 = vadd.f32 0.0, %v854
        %v856 = vpop.f32.mrf.mxu0
        %v857 = vadd.f32 0.0, %v856
        %858 = vmatprep.mubr.f32.mxu0 0.0
        %859 = vmatmul.mubr.f32.gmra.mxu0 %v669
        %v860 = vpop.f32.mrf.mxu0
        %v861 = vadd.f32 0.0, %v860
        %v862 = vpop.f32.mrf.mxu0
        %v863 = vadd.f32 0.0, %v862
        %864 = vmatprep.mubr.f32.mxu0 0.0
        %865 = vmatmul.mubr.f32.gmra.mxu0 %v672
        %v866 = vpop.f32.mrf.mxu0
        %v867 = vadd.f32 0.0, %v866
        %v868 = vpop.f32.mrf.mxu0
        %v869 = vadd.f32 0.0, %v868
        %870 = vmatprep.mubr.f32.mxu0 0.0
        %871 = vmatmul.mubr.f32.gmra.mxu0 %v675
        %v872 = vpop.f32.mrf.mxu0
        %v873 = vadd.f32 0.0, %v872
        %v874 = vpop.f32.mrf.mxu0
        %v875 = vadd.f32 0.0, %v874
        %876 = vmatprep.mubr.f32.mxu0 0.0
        %877 = vmatmul.mubr.f32.gmra.mxu0 %v678
        %v878 = vpop.f32.mrf.mxu0
        %v879 = vadd.f32 0.0, %v878
        %v880 = vpop.f32.mrf.mxu0
        %v881 = vadd.f32 0.0, %v880
        %882 = vmatprep.mubr.f32.mxu0 0.0
        %883 = vmatmul.mubr.f32.gmra.mxu0 %v681
        %v884 = vpop.f32.mrf.mxu0
        %v885 = vadd.f32 0.0, %v884
        %v886 = vpop.f32.mrf.mxu0
        %v887 = vadd.f32 0.0, %v886
        %888 = vmatprep.mubr.f32.mxu0 0.0
        %889 = vmatmul.mubr.f32.gmra.mxu0 %v684
        %v890 = vpop.f32.mrf.mxu0
        %v891 = vadd.f32 0.0, %v890
        %v892 = vpop.f32.mrf.mxu0
        %v893 = vadd.f32 0.0, %v892
        %894 = vmatprep.mubr.f32.mxu0 0.0
        %895 = vmatmul.mubr.f32.gmra.mxu0 %v687
        %v896 = vpop.f32.mrf.mxu0
        %v897 = vadd.f32 0.0, %v896
        %v898 = vpop.f32.mrf.mxu0
        %v899 = vadd.f32 0.0, %v898
        %900 = vmatprep.mubr.f32.mxu0 0.0
        %901 = vmatmul.mubr.f32.gmra.mxu0 %v690
        %v902 = vpop.f32.mrf.mxu0
        %v903 = vadd.f32 0.0, %v902
        %v904 = vpop.f32.mrf.mxu0
        %v905 = vadd.f32 0.0, %v904
        %906 = vmatprep.mubr.f32.mxu0 0.0
        %907 = vmatmul.mubr.f32.gmra.mxu0 %v693
        %v908 = vpop.f32.mrf.mxu0
        %v909 = vadd.f32 0.0, %v908
        %v910 = vpop.f32.mrf.mxu0
        %v911 = vadd.f32 0.0, %v910
        %912 = vmatprep.mubr.f32.mxu0 0.0
        %913 = vmatmul.mubr.f32.gmra.mxu0 %v696
        %v914 = vpop.f32.mrf.mxu0
        %v915 = vadd.f32 0.0, %v914
        %v916 = vpop.f32.mrf.mxu0
        %v917 = vadd.f32 0.0, %v916
        %918 = vmatprep.mubr.f32.mxu0 0.0
        %919 = vmatmul.mubr.f32.gmra.mxu0 %v699
        %v920 = vpop.f32.mrf.mxu0
        %v921 = vadd.f32 0.0, %v920
        %v922 = vpop.f32.mrf.mxu0
        %v923 = vadd.f32 0.0, %v922
        %924 = vmatprep.mubr.f32.mxu0 0.0
        %925 = vmatmul.mubr.f32.gmra.mxu0 %v702
        %v926 = vpop.f32.mrf.mxu0
        %v927 = vadd.f32 0.0, %v926
        %v928 = vpop.f32.mrf.mxu0
        %v929 = vadd.f32 0.0, %v928
        %930 = vmatprep.mubr.f32.mxu0 0.0
        %931 = vmatmul.mubr.f32.gmra.mxu0 %v705
        %v932 = vpop.f32.mrf.mxu0
        %v933 = vadd.f32 0.0, %v932
        %v934 = vpop.f32.mrf.mxu0
        %v935 = vadd.f32 0.0, %v934
        %936 = vmatprep.mubr.f32.mxu0 0.0
        %937 = vmatmul.mubr.f32.gmra.mxu0 %v708
        %v938 = vpop.f32.mrf.mxu0
        %v939 = vadd.f32 0.0, %v938
        %v940 = vpop.f32.mrf.mxu0
        %v941 = vadd.f32 0.0, %v940
        %942 = vdwg.mxu0
        %v944 = vsel %vm625, %v544, 0
        %946 = vmatprep.subr.mxu0 0.0
        %947 = vmatpush1.msra.mxu0 0.0
        %948 = vmatprep.subr.mxu0 0.0
        %949 = vmatpush1.msra.mxu0 0.0
        %950 = vmatprep.subr.mxu0 0.0
        %951 = vmatpush1.msra.mxu0 0.0
        %952 = vmatprep.subr.mxu0 0.0
        %953 = vmatpush1.msra.mxu0 0.0
        %954 = vmatprep.subr.mxu0 %v599
        %955 = vmatpush1.msra.mxu0 %v598
        %956 = vmatprep.subr.mxu0 %v597
        %957 = vmatpush1.msra.mxu0 %v596
        %958 = vmatprep.subr.mxu0 %v595
        %959 = vmatpush1.msra.mxu0 %v594
        %960 = vmatprep.subr.mxu0 %v593
        %961 = vmatpush1.msra.mxu0 %v592
        %962 = vmatprep.subr.mxu0 %v591
        %963 = vmatpush1.msra.mxu0 %v590
        %964 = vmatprep.subr.mxu0 %v589
        %965 = vmatpush1.msra.mxu0 %v588
        %966 = vmatprep.subr.mxu0 %v587
        %967 = vmatpush1.msra.mxu0 %v586
        %968 = vmatprep.subr.mxu0 %v585
        %969 = vmatpush1.msra.mxu0 %v584
        %970 = vmatprep.subr.mxu0 %v583
        %971 = vmatpush1.msra.mxu0 %v582
        %972 = vmatprep.subr.mxu0 %v581
        %973 = vmatpush1.msra.mxu0 %v580
        %974 = vmatprep.subr.mxu0 %v579
        %975 = vmatpush1.msra.mxu0 %v578
        %976 = vmatprep.subr.mxu0 %v577
        %977 = vmatpush1.msra.mxu0 %v576
        %978 = vmatprep.subr.mxu0 0.0
        %979 = vmatpush2.msra.mxu0 0.0
        %980 = vmatprep.subr.mxu0 0.0
        %981 = vmatpush2.msra.mxu0 0.0
        %982 = vmatprep.subr.mxu0 0.0
        %983 = vmatpush2.msra.mxu0 0.0
        %984 = vmatprep.subr.mxu0 0.0
        %985 = vmatpush2.msra.mxu0 0.0
        %986 = vmatprep.subr.mxu0 0.0
        %987 = vmatpush2.msra.mxu0 0.0
        %988 = vmatprep.subr.mxu0 0.0
        %989 = vmatpush2.msra.mxu0 0.0
        %990 = vmatprep.subr.mxu0 0.0
        %991 = vmatpush2.msra.mxu0 0.0
        %992 = vmatprep.subr.mxu0 0.0
        %993 = vmatpush2.msra.mxu0 0.0
        %994 = vmatprep.subr.mxu0 0.0
        %995 = vmatpush2.msra.mxu0 0.0
        %996 = vmatprep.subr.mxu0 0.0
        %997 = vmatpush2.msra.mxu0 0.0
        %998 = vmatprep.subr.mxu0 0.0
        %999 = vmatpush2.msra.mxu0 0.0
        %1000 = vmatprep.subr.mxu0 0.0
        %1001 = vmatpush2.msra.mxu0 0.0
        %1002 = vmatprep.subr.mxu0 0.0
        %1003 = vmatpush2.msra.mxu0 0.0
        %1004 = vmatprep.subr.mxu0 0.0
        %1005 = vmatpush2.msra.mxu0 0.0
        %1006 = vmatprep.subr.mxu0 0.0
        %1007 = vmatpush2.msra.mxu0 0.0
        %1008 = vmatprep.subr.mxu0 0.0
        %1009 = vmatpush2.msra.mxu0 0.0
        %1010 = vmatprep.mubr.f32.mxu0 0.0
        %1011 = vmatmul.mubr.f32.gmra.mxu0 %v944
        %v1012 = vpop.f32.mrf.mxu0
        %v1013 = vadd.f32 %v777, %v1012
        %v1014 = vpop.f32.mrf.mxu0
        %v1015 = vadd.f32 %v779, %v1014
        %1016 = vmatprep.mubr.f32.mxu0 0.0
        %1017 = vmatmul.mubr.f32.gmra.mxu0 %v627
        %v1018 = vpop.f32.mrf.mxu0
        %v1019 = vadd.f32 %v783, %v1018
        %v1020 = vpop.f32.mrf.mxu0
        %v1021 = vadd.f32 %v785, %v1020
        %1022 = vmatprep.mubr.f32.mxu0 0.0
        %1023 = vmatmul.mubr.f32.gmra.mxu0 %v630
        %v1024 = vpop.f32.mrf.mxu0
        %v1025 = vadd.f32 %v789, %v1024
        %v1026 = vpop.f32.mrf.mxu0
        %v1027 = vadd.f32 %v791, %v1026
        %1028 = vmatprep.mubr.f32.mxu0 0.0
        %1029 = vmatmul.mubr.f32.gmra.mxu0 %v633
        %v1030 = vpop.f32.mrf.mxu0
        %v1031 = vadd.f32 %v795, %v1030
        %v1032 = vpop.f32.mrf.mxu0
        %v1033 = vadd.f32 %v797, %v1032
        %1034 = vmatprep.mubr.f32.mxu0 0.0
        %1035 = vmatmul.mubr.f32.gmra.mxu0 %v636
        %v1036 = vpop.f32.mrf.mxu0
        %v1037 = vadd.f32 %v801, %v1036
        %v1038 = vpop.f32.mrf.mxu0
        %v1039 = vadd.f32 %v803, %v1038
        %1040 = vmatprep.mubr.f32.mxu0 0.0
        %1041 = vmatmul.mubr.f32.gmra.mxu0 %v639
        %v1042 = vpop.f32.mrf.mxu0
        %v1043 = vadd.f32 %v807, %v1042
        %v1044 = vpop.f32.mrf.mxu0
        %v1045 = vadd.f32 %v809, %v1044
        %1046 = vmatprep.mubr.f32.mxu0 0.0
        %1047 = vmatmul.mubr.f32.gmra.mxu0 %v642
        %v1048 = vpop.f32.mrf.mxu0
        %v1049 = vadd.f32 %v813, %v1048
        %v1050 = vpop.f32.mrf.mxu0
        %v1051 = vadd.f32 %v815, %v1050
        %1052 = vmatprep.mubr.f32.mxu0 0.0
        %1053 = vmatmul.mubr.f32.gmra.mxu0 %v645
        %v1054 = vpop.f32.mrf.mxu0
        %v1055 = vadd.f32 %v819, %v1054
        %v1056 = vpop.f32.mrf.mxu0
        %v1057 = vadd.f32 %v821, %v1056
        %1058 = vmatprep.mubr.f32.mxu0 0.0
        %1059 = vmatmul.mubr.f32.gmra.mxu0 %v648
        %v1060 = vpop.f32.mrf.mxu0
        %v1061 = vadd.f32 %v825, %v1060
        %v1062 = vpop.f32.mrf.mxu0
        %v1063 = vadd.f32 %v827, %v1062
        %1064 = vmatprep.mubr.f32.mxu0 0.0
        %1065 = vmatmul.mubr.f32.gmra.mxu0 %v651
        %v1066 = vpop.f32.mrf.mxu0
        %v1067 = vadd.f32 %v831, %v1066
        %v1068 = vpop.f32.mrf.mxu0
        %v1069 = vadd.f32 %v833, %v1068
        %1070 = vmatprep.mubr.f32.mxu0 0.0
        %1071 = vmatmul.mubr.f32.gmra.mxu0 %v654
        %v1072 = vpop.f32.mrf.mxu0
        %v1073 = vadd.f32 %v837, %v1072
        %v1074 = vpop.f32.mrf.mxu0
        %v1075 = vadd.f32 %v839, %v1074
        %1076 = vmatprep.mubr.f32.mxu0 0.0
        %1077 = vmatmul.mubr.f32.gmra.mxu0 %v657
        %v1078 = vpop.f32.mrf.mxu0
        %v1079 = vadd.f32 %v843, %v1078
        %v1080 = vpop.f32.mrf.mxu0
        %v1081 = vadd.f32 %v845, %v1080
        %1082 = vmatprep.mubr.f32.mxu0 0.0
        %1083 = vmatmul.mubr.f32.gmra.mxu0 %v660
        %v1084 = vpop.f32.mrf.mxu0
        %v1085 = vadd.f32 %v849, %v1084
        %v1086 = vpop.f32.mrf.mxu0
        %v1087 = vadd.f32 %v851, %v1086
        %1088 = vmatprep.mubr.f32.mxu0 0.0
        %1089 = vmatmul.mubr.f32.gmra.mxu0 %v663
        %v1090 = vpop.f32.mrf.mxu0
        %v1091 = vadd.f32 %v855, %v1090
        %v1092 = vpop.f32.mrf.mxu0
        %v1093 = vadd.f32 %v857, %v1092
        %1094 = vmatprep.mubr.f32.mxu0 0.0
        %1095 = vmatmul.mubr.f32.gmra.mxu0 %v666
        %v1096 = vpop.f32.mrf.mxu0
        %v1097 = vadd.f32 %v861, %v1096
        %v1098 = vpop.f32.mrf.mxu0
        %v1099 = vadd.f32 %v863, %v1098
        %1100 = vmatprep.mubr.f32.mxu0 0.0
        %1101 = vmatmul.mubr.f32.gmra.mxu0 %v669
        %v1102 = vpop.f32.mrf.mxu0
        %v1103 = vadd.f32 %v867, %v1102
        %v1104 = vpop.f32.mrf.mxu0
        %v1105 = vadd.f32 %v869, %v1104
        %1106 = vmatprep.mubr.f32.mxu0 0.0
        %1107 = vmatmul.mubr.f32.gmra.mxu0 %v672
        %v1108 = vpop.f32.mrf.mxu0
        %v1109 = vadd.f32 %v873, %v1108
        %v1110 = vpop.f32.mrf.mxu0
        %v1111 = vadd.f32 %v875, %v1110
        %1112 = vmatprep.mubr.f32.mxu0 0.0
        %1113 = vmatmul.mubr.f32.gmra.mxu0 %v675
        %v1114 = vpop.f32.mrf.mxu0
        %v1115 = vadd.f32 %v879, %v1114
        %v1116 = vpop.f32.mrf.mxu0
        %v1117 = vadd.f32 %v881, %v1116
        %1118 = vmatprep.mubr.f32.mxu0 0.0
        %1119 = vmatmul.mubr.f32.gmra.mxu0 %v678
        %v1120 = vpop.f32.mrf.mxu0
        %v1121 = vadd.f32 %v885, %v1120
        %v1122 = vpop.f32.mrf.mxu0
        %v1123 = vadd.f32 %v887, %v1122
        %1124 = vmatprep.mubr.f32.mxu0 0.0
        %1125 = vmatmul.mubr.f32.gmra.mxu0 %v681
        %v1126 = vpop.f32.mrf.mxu0
        %v1127 = vadd.f32 %v891, %v1126
        %v1128 = vpop.f32.mrf.mxu0
        %v1129 = vadd.f32 %v893, %v1128
        %1130 = vmatprep.mubr.f32.mxu0 0.0
        %1131 = vmatmul.mubr.f32.gmra.mxu0 %v684
        %v1132 = vpop.f32.mrf.mxu0
        %v1133 = vadd.f32 %v897, %v1132
        %v1134 = vpop.f32.mrf.mxu0
        %v1135 = vadd.f32 %v899, %v1134
        %1136 = vmatprep.mubr.f32.mxu0 0.0
        %1137 = vmatmul.mubr.f32.gmra.mxu0 %v687
        %v1138 = vpop.f32.mrf.mxu0
        %v1139 = vadd.f32 %v903, %v1138
        %v1140 = vpop.f32.mrf.mxu0
        %v1141 = vadd.f32 %v905, %v1140
        %1142 = vmatprep.mubr.f32.mxu0 0.0
        %1143 = vmatmul.mubr.f32.gmra.mxu0 %v690
        %v1144 = vpop.f32.mrf.mxu0
        %v1145 = vadd.f32 %v909, %v1144
        %v1146 = vpop.f32.mrf.mxu0
        %v1147 = vadd.f32 %v911, %v1146
        %1148 = vmatprep.mubr.f32.mxu0 0.0
        %1149 = vmatmul.mubr.f32.gmra.mxu0 %v693
        %v1150 = vpop.f32.mrf.mxu0
        %v1151 = vadd.f32 %v915, %v1150
        %v1152 = vpop.f32.mrf.mxu0
        %v1153 = vadd.f32 %v917, %v1152
        %1154 = vmatprep.mubr.f32.mxu0 0.0
        %1155 = vmatmul.mubr.f32.gmra.mxu0 %v696
        %v1156 = vpop.f32.mrf.mxu0
        %v1157 = vadd.f32 %v921, %v1156
        %v1158 = vpop.f32.mrf.mxu0
        %v1159 = vadd.f32 %v923, %v1158
        %1160 = vmatprep.mubr.f32.mxu0 0.0
        %1161 = vmatmul.mubr.f32.gmra.mxu0 %v699
        %v1162 = vpop.f32.mrf.mxu0
        %v1163 = vadd.f32 %v927, %v1162
        %v1164 = vpop.f32.mrf.mxu0
        %v1165 = vadd.f32 %v929, %v1164
        %1166 = vmatprep.mubr.f32.mxu0 0.0
        %1167 = vmatmul.mubr.f32.gmra.mxu0 %v702
        %v1168 = vpop.f32.mrf.mxu0
        %v1169 = vadd.f32 %v933, %v1168
        %v1170 = vpop.f32.mrf.mxu0
        %v1171 = vadd.f32 %v935, %v1170
        %1172 = vmatprep.mubr.f32.mxu0 0.0
        %1173 = vmatmul.mubr.f32.gmra.mxu0 %v705
        %v1174 = vpop.f32.mrf.mxu0
        %v1175 = vadd.f32 %v939, %v1174
        %v1176 = vpop.f32.mrf.mxu0
        %v1177 = vadd.f32 %v941, %v1176
        %1178 = vdwg.mxu0
        %s1179 = scalar_lea.vmem %s1, 384
        %v1180 = vld [vmem:[%s1179] sm:$0xff]
        %v1181 = vld [vmem:[%s1179 + $0x8] sm:$0xff]
        %v1182 = vld [vmem:[%s1179 + $0x10] sm:$0xff]
        %v1183 = vld [vmem:[%s1179 + $0x18] sm:$0xff]
        %v1184 = vld [vmem:[%s1179 + $0x20] sm:$0xff]
        %v1185 = vld [vmem:[%s1179 + $0x28] sm:$0xff]
        %v1186 = vld [vmem:[%s1179 + $0x30] sm:$0xff]
        %v1187 = vld [vmem:[%s1179 + $0x38] sm:$0xff]
        %v1188 = vld [vmem:[%s1179 + $0x40] sm:$0xff]
        %v1189 = vld [vmem:[%s1179 + $0x48] sm:$0xff]
        %v1190 = vld [vmem:[%s1179 + $0x50] sm:$0xff]
        %v1191 = vld [vmem:[%s1179 + $0x58] sm:$0xff]
        %v1192 = vld [vmem:[%s1179 + $0x60] sm:$0xff]
        %v1193 = vld [vmem:[%s1179 + $0x68] sm:$0xff]
        %v1194 = vld [vmem:[%s1179 + $0x70] sm:$0xff]
        %v1195 = vld [vmem:[%s1179 + $0x78] sm:$0xff]
        %v1196 = vld [vmem:[%s1179 + $0x80] sm:$0xff]
        %v1197 = vld [vmem:[%s1179 + $0x88] sm:$0xff]
        %v1198 = vld [vmem:[%s1179 + $0x90] sm:$0xff]
        %v1199 = vld [vmem:[%s1179 + $0x98] sm:$0xff]
        %v1200 = vld [vmem:[%s1179 + $0xa0] sm:$0xff]
        %v1201 = vld [vmem:[%s1179 + $0xa8] sm:$0xff]
        %v1202 = vld [vmem:[%s1179 + $0xb0] sm:$0xff]
        %v1203 = vld [vmem:[%s1179 + $0xb8] sm:$0xff]
        %v1205 = vsel %vm625, %v573, 0
        %1207 = vmatprep.subr.mxu0 0.0
        %1208 = vmatpush1.msra.mxu0 0.0
        %1209 = vmatprep.subr.mxu0 0.0
        %1210 = vmatpush1.msra.mxu0 0.0
        %1211 = vmatprep.subr.mxu0 0.0
        %1212 = vmatpush1.msra.mxu0 0.0
        %1213 = vmatprep.subr.mxu0 0.0
        %1214 = vmatpush1.msra.mxu0 0.0
        %1215 = vmatprep.subr.mxu0 %v1203
        %1216 = vmatpush1.msra.mxu0 %v1202
        %1217 = vmatprep.subr.mxu0 %v1201
        %1218 = vmatpush1.msra.mxu0 %v1200
        %1219 = vmatprep.subr.mxu0 %v1199
        %1220 = vmatpush1.msra.mxu0 %v1198
        %1221 = vmatprep.subr.mxu0 %v1197
        %1222 = vmatpush1.msra.mxu0 %v1196
        %1223 = vmatprep.subr.mxu0 %v1195
        %1224 = vmatpush1.msra.mxu0 %v1194
        %1225 = vmatprep.subr.mxu0 %v1193
        %1226 = vmatpush1.msra.mxu0 %v1192
        %1227 = vmatprep.subr.mxu0 %v1191
        %1228 = vmatpush1.msra.mxu0 %v1190
        %1229 = vmatprep.subr.mxu0 %v1189
        %1230 = vmatpush1.msra.mxu0 %v1188
        %1231 = vmatprep.subr.mxu0 %v1187
        %1232 = vmatpush1.msra.mxu0 %v1186
        %1233 = vmatprep.subr.mxu0 %v1185
        %1234 = vmatpush1.msra.mxu0 %v1184
        %1235 = vmatprep.subr.mxu0 %v1183
        %1236 = vmatpush1.msra.mxu0 %v1182
        %1237 = vmatprep.subr.mxu0 %v1181
        %1238 = vmatpush1.msra.mxu0 %v1180
        %1239 = vmatprep.subr.mxu0 0.0
        %1240 = vmatpush2.msra.mxu0 0.0
        %1241 = vmatprep.subr.mxu0 0.0
        %1242 = vmatpush2.msra.mxu0 0.0
        %1243 = vmatprep.subr.mxu0 0.0
        %1244 = vmatpush2.msra.mxu0 0.0
        %1245 = vmatprep.subr.mxu0 0.0
        %1246 = vmatpush2.msra.mxu0 0.0
        %1247 = vmatprep.subr.mxu0 0.0
        %1248 = vmatpush2.msra.mxu0 0.0
        %1249 = vmatprep.subr.mxu0 0.0
        %1250 = vmatpush2.msra.mxu0 0.0
        %1251 = vmatprep.subr.mxu0 0.0
        %1252 = vmatpush2.msra.mxu0 0.0
        %1253 = vmatprep.subr.mxu0 0.0
        %1254 = vmatpush2.msra.mxu0 0.0
        %1255 = vmatprep.subr.mxu0 0.0
        %1256 = vmatpush2.msra.mxu0 0.0
        %1257 = vmatprep.subr.mxu0 0.0
        %1258 = vmatpush2.msra.mxu0 0.0
        %1259 = vmatprep.subr.mxu0 0.0
        %1260 = vmatpush2.msra.mxu0 0.0
        %1261 = vmatprep.subr.mxu0 0.0
        %1262 = vmatpush2.msra.mxu0 0.0
        %1263 = vmatprep.subr.mxu0 0.0
        %1264 = vmatpush2.msra.mxu0 0.0
        %1265 = vmatprep.subr.mxu0 0.0
        %1266 = vmatpush2.msra.mxu0 0.0
        %1267 = vmatprep.subr.mxu0 0.0
        %1268 = vmatpush2.msra.mxu0 0.0
        %1269 = vmatprep.subr.mxu0 0.0
        %1270 = vmatpush2.msra.mxu0 0.0
        %1271 = vmatprep.mubr.f32.mxu0 0.0
        %1272 = vmatmul.mubr.f32.gmra.mxu0 %v630
        %v1273 = vpop.f32.mrf.mxu0
        %v1274 = vadd.f32 0.0, %v1273
        %v1275 = vpop.f32.mrf.mxu0
        %v1276 = vadd.f32 0.0, %v1275
        %1277 = vmatprep.mubr.f32.mxu0 0.0
        %1278 = vmatmul.mubr.f32.gmra.mxu0 %v633
        %v1279 = vpop.f32.mrf.mxu0
        %v1280 = vadd.f32 0.0, %v1279
        %v1281 = vpop.f32.mrf.mxu0
        %v1282 = vadd.f32 0.0, %v1281
        %1283 = vmatprep.mubr.f32.mxu0 0.0
        %1284 = vmatmul.mubr.f32.gmra.mxu0 %v636
        %v1285 = vpop.f32.mrf.mxu0
        %v1286 = vadd.f32 0.0, %v1285
        %v1287 = vpop.f32.mrf.mxu0
        %v1288 = vadd.f32 0.0, %v1287
        %1289 = vmatprep.mubr.f32.mxu0 0.0
        %1290 = vmatmul.mubr.f32.gmra.mxu0 %v639
        %v1291 = vpop.f32.mrf.mxu0
        %v1292 = vadd.f32 0.0, %v1291
        %v1293 = vpop.f32.mrf.mxu0
        %v1294 = vadd.f32 0.0, %v1293
        %1295 = vmatprep.mubr.f32.mxu0 0.0
        %1296 = vmatmul.mubr.f32.gmra.mxu0 %v642
        %v1297 = vpop.f32.mrf.mxu0
        %v1298 = vadd.f32 0.0, %v1297
        %v1299 = vpop.f32.mrf.mxu0
        %v1300 = vadd.f32 0.0, %v1299
        %1301 = vmatprep.mubr.f32.mxu0 0.0
        %1302 = vmatmul.mubr.f32.gmra.mxu0 %v645
        %v1303 = vpop.f32.mrf.mxu0
        %v1304 = vadd.f32 0.0, %v1303
        %v1305 = vpop.f32.mrf.mxu0
        %v1306 = vadd.f32 0.0, %v1305
        %1307 = vmatprep.mubr.f32.mxu0 0.0
        %1308 = vmatmul.mubr.f32.gmra.mxu0 %v648
        %v1309 = vpop.f32.mrf.mxu0
        %v1310 = vadd.f32 0.0, %v1309
        %v1311 = vpop.f32.mrf.mxu0
        %v1312 = vadd.f32 0.0, %v1311
        %1313 = vmatprep.mubr.f32.mxu0 0.0
        %1314 = vmatmul.mubr.f32.gmra.mxu0 %v651
        %v1315 = vpop.f32.mrf.mxu0
        %v1316 = vadd.f32 0.0, %v1315
        %v1317 = vpop.f32.mrf.mxu0
        %v1318 = vadd.f32 0.0, %v1317
        %1319 = vmatprep.mubr.f32.mxu0 0.0
        %1320 = vmatmul.mubr.f32.gmra.mxu0 %v654
        %v1321 = vpop.f32.mrf.mxu0
        %v1322 = vadd.f32 0.0, %v1321
        %v1323 = vpop.f32.mrf.mxu0
        %v1324 = vadd.f32 0.0, %v1323
        %1325 = vmatprep.mubr.f32.mxu0 0.0
        %1326 = vmatmul.mubr.f32.gmra.mxu0 %v657
        %v1327 = vpop.f32.mrf.mxu0
        %v1328 = vadd.f32 0.0, %v1327
        %v1329 = vpop.f32.mrf.mxu0
        %v1330 = vadd.f32 0.0, %v1329
        %1331 = vmatprep.mubr.f32.mxu0 0.0
        %1332 = vmatmul.mubr.f32.gmra.mxu0 %v660
        %v1333 = vpop.f32.mrf.mxu0
        %v1334 = vadd.f32 0.0, %v1333
        %v1335 = vpop.f32.mrf.mxu0
        %v1336 = vadd.f32 0.0, %v1335
        %1337 = vmatprep.mubr.f32.mxu0 0.0
        %1338 = vmatmul.mubr.f32.gmra.mxu0 %v663
        %v1339 = vpop.f32.mrf.mxu0
        %v1340 = vadd.f32 0.0, %v1339
        %v1341 = vpop.f32.mrf.mxu0
        %v1342 = vadd.f32 0.0, %v1341
        %1343 = vmatprep.mubr.f32.mxu0 0.0
        %1344 = vmatmul.mubr.f32.gmra.mxu0 %v666
        %v1345 = vpop.f32.mrf.mxu0
        %v1346 = vadd.f32 0.0, %v1345
        %v1347 = vpop.f32.mrf.mxu0
        %v1348 = vadd.f32 0.0, %v1347
        %1349 = vmatprep.mubr.f32.mxu0 0.0
        %1350 = vmatmul.mubr.f32.gmra.mxu0 %v669
        %v1351 = vpop.f32.mrf.mxu0
        %v1352 = vadd.f32 0.0, %v1351
        %v1353 = vpop.f32.mrf.mxu0
        %v1354 = vadd.f32 0.0, %v1353
        %1355 = vmatprep.mubr.f32.mxu0 0.0
        %1356 = vmatmul.mubr.f32.gmra.mxu0 %v672
        %v1357 = vpop.f32.mrf.mxu0
        %v1358 = vadd.f32 0.0, %v1357
        %v1359 = vpop.f32.mrf.mxu0
        %v1360 = vadd.f32 0.0, %v1359
        %1361 = vmatprep.mubr.f32.mxu0 0.0
        %1362 = vmatmul.mubr.f32.gmra.mxu0 %v675
        %v1363 = vpop.f32.mrf.mxu0
        %v1364 = vadd.f32 0.0, %v1363
        %v1365 = vpop.f32.mrf.mxu0
        %v1366 = vadd.f32 0.0, %v1365
        %1367 = vmatprep.mubr.f32.mxu0 0.0
        %1368 = vmatmul.mubr.f32.gmra.mxu0 %v678
        %v1369 = vpop.f32.mrf.mxu0
        %v1370 = vadd.f32 0.0, %v1369
        %v1371 = vpop.f32.mrf.mxu0
        %v1372 = vadd.f32 0.0, %v1371
        %1373 = vmatprep.mubr.f32.mxu0 0.0
        %1374 = vmatmul.mubr.f32.gmra.mxu0 %v681
        %v1375 = vpop.f32.mrf.mxu0
        %v1376 = vadd.f32 0.0, %v1375
        %v1377 = vpop.f32.mrf.mxu0
        %v1378 = vadd.f32 0.0, %v1377
        %1379 = vmatprep.mubr.f32.mxu0 0.0
        %1380 = vmatmul.mubr.f32.gmra.mxu0 %v684
        %v1381 = vpop.f32.mrf.mxu0
        %v1382 = vadd.f32 0.0, %v1381
        %v1383 = vpop.f32.mrf.mxu0
        %v1384 = vadd.f32 0.0, %v1383
        %1385 = vmatprep.mubr.f32.mxu0 0.0
        %1386 = vmatmul.mubr.f32.gmra.mxu0 %v687
        %v1387 = vpop.f32.mrf.mxu0
        %v1388 = vadd.f32 0.0, %v1387
        %v1389 = vpop.f32.mrf.mxu0
        %v1390 = vadd.f32 0.0, %v1389
        %1391 = vmatprep.mubr.f32.mxu0 0.0
        %1392 = vmatmul.mubr.f32.gmra.mxu0 %v690
        %v1393 = vpop.f32.mrf.mxu0
        %v1394 = vadd.f32 0.0, %v1393
        %v1395 = vpop.f32.mrf.mxu0
        %v1396 = vadd.f32 0.0, %v1395
        %1397 = vmatprep.mubr.f32.mxu0 0.0
        %1398 = vmatmul.mubr.f32.gmra.mxu0 %v693
        %v1399 = vpop.f32.mrf.mxu0
        %v1400 = vadd.f32 0.0, %v1399
        %v1401 = vpop.f32.mrf.mxu0
        %v1402 = vadd.f32 0.0, %v1401
        %1403 = vmatprep.mubr.f32.mxu0 0.0
        %1404 = vmatmul.mubr.f32.gmra.mxu0 %v696
        %v1405 = vpop.f32.mrf.mxu0
        %v1406 = vadd.f32 0.0, %v1405
        %v1407 = vpop.f32.mrf.mxu0
        %v1408 = vadd.f32 0.0, %v1407
        %1409 = vmatprep.mubr.f32.mxu0 0.0
        %1410 = vmatmul.mubr.f32.gmra.mxu0 %v699
        %v1411 = vpop.f32.mrf.mxu0
        %v1412 = vadd.f32 0.0, %v1411
        %v1413 = vpop.f32.mrf.mxu0
        %v1414 = vadd.f32 0.0, %v1413
        %1415 = vmatprep.mubr.f32.mxu0 0.0
        %1416 = vmatmul.mubr.f32.gmra.mxu0 %v702
        %v1417 = vpop.f32.mrf.mxu0
        %v1418 = vadd.f32 0.0, %v1417
        %v1419 = vpop.f32.mrf.mxu0
        %v1420 = vadd.f32 0.0, %v1419
        %1421 = vmatprep.mubr.f32.mxu0 0.0
        %1422 = vmatmul.mubr.f32.gmra.mxu0 %v705
        %v1423 = vpop.f32.mrf.mxu0
        %v1424 = vadd.f32 0.0, %v1423
        %v1425 = vpop.f32.mrf.mxu0
        %v1426 = vadd.f32 0.0, %v1425
        %1427 = vmatprep.mubr.f32.mxu0 0.0
        %1428 = vmatmul.mubr.f32.gmra.mxu0 %v708
        %v1429 = vpop.f32.mrf.mxu0
        %v1430 = vadd.f32 0.0, %v1429
        %v1431 = vpop.f32.mrf.mxu0
        %v1432 = vadd.f32 0.0, %v1431
        %1433 = vmatprep.mubr.f32.mxu0 0.0
        %1434 = vmatmul.mubr.f32.gmra.mxu0 %v1205
        %v1435 = vpop.f32.mrf.mxu0
        %v1436 = vadd.f32 0.0, %v1435
        %v1437 = vpop.f32.mrf.mxu0
        %v1438 = vadd.f32 0.0, %v1437
        %1439 = vdwg.mxu0
        %v1440 = vadd.f32 %v1013, %v1274
        %v1441 = vadd.f32 %v1015, %v1276
        %v1442 = vadd.f32 %v1019, %v1280
        %v1443 = vadd.f32 %v1021, %v1282
        %v1444 = vadd.f32 %v1025, %v1286
        %v1445 = vadd.f32 %v1027, %v1288
        %v1446 = vadd.f32 %v1031, %v1292
        %v1447 = vadd.f32 %v1033, %v1294
        %v1448 = vadd.f32 %v1037, %v1298
        %v1449 = vadd.f32 %v1039, %v1300
        %v1450 = vadd.f32 %v1043, %v1304
        %v1451 = vadd.f32 %v1045, %v1306
        %v1452 = vadd.f32 %v1049, %v1310
        %v1453 = vadd.f32 %v1051, %v1312
        %v1454 = vadd.f32 %v1055, %v1316
        %v1455 = vadd.f32 %v1057, %v1318
        %v1456 = vadd.f32 %v1061, %v1322
        %v1457 = vadd.f32 %v1063, %v1324
        %v1458 = vadd.f32 %v1067, %v1328
        %v1459 = vadd.f32 %v1069, %v1330
        %v1460 = vadd.f32 %v1073, %v1334
        %v1461 = vadd.f32 %v1075, %v1336
        %v1462 = vadd.f32 %v1079, %v1340
        %v1463 = vadd.f32 %v1081, %v1342
        %v1464 = vadd.f32 %v1085, %v1346
        %v1465 = vadd.f32 %v1087, %v1348
        %v1466 = vadd.f32 %v1091, %v1352
        %v1467 = vadd.f32 %v1093, %v1354
        %v1468 = vadd.f32 %v1097, %v1358
        %v1469 = vadd.f32 %v1099, %v1360
        %v1470 = vadd.f32 %v1103, %v1364
        %v1471 = vadd.f32 %v1105, %v1366
        %v1472 = vadd.f32 %v1109, %v1370
        %v1473 = vadd.f32 %v1111, %v1372
        %v1474 = vadd.f32 %v1115, %v1376
        %v1475 = vadd.f32 %v1117, %v1378
        %v1476 = vadd.f32 %v1121, %v1382
        %v1477 = vadd.f32 %v1123, %v1384
        %v1478 = vadd.f32 %v1127, %v1388
        %v1479 = vadd.f32 %v1129, %v1390
        %v1480 = vadd.f32 %v1133, %v1394
        %v1481 = vadd.f32 %v1135, %v1396
        %v1482 = vadd.f32 %v1139, %v1400
        %v1483 = vadd.f32 %v1141, %v1402
        %v1484 = vadd.f32 %v1145, %v1406
        %v1485 = vadd.f32 %v1147, %v1408
        %v1486 = vadd.f32 %v1151, %v1412
        %v1487 = vadd.f32 %v1153, %v1414
        %v1488 = vadd.f32 %v1157, %v1418
        %v1489 = vadd.f32 %v1159, %v1420
        %v1490 = vadd.f32 %v1163, %v1424
        %v1491 = vadd.f32 %v1165, %v1426
        %v1492 = vadd.f32 %v1169, %v1430
        %v1493 = vadd.f32 %v1171, %v1432
        %v1494 = vadd.f32 %v1175, %v1436
        %v1495 = vadd.f32 %v1177, %v1438
        %s1496 = scalar_lea.vmem %s1, 576
        %v1497 = vld [vmem:[%s1496] sm:$0xff]
        %v1498 = vld [vmem:[%s1496 + $0x8] sm:$0xff]
        %v1499 = vld [vmem:[%s1496 + $0x10] sm:$0xff]
        %v1500 = vld [vmem:[%s1496 + $0x18] sm:$0xff]
        %v1501 = vld [vmem:[%s1496 + $0x20] sm:$0xff]
        %v1502 = vld [vmem:[%s1496 + $0x28] sm:$0xff]
        %v1503 = vld [vmem:[%s1496 + $0x30] sm:$0xff]
        %v1504 = vld [vmem:[%s1496 + $0x38] sm:$0xff]
        %v1505 = vld [vmem:[%s1496 + $0x40] sm:$0xff]
        %v1506 = vld [vmem:[%s1496 + $0x48] sm:$0xff]
        %v1507 = vld [vmem:[%s1496 + $0x50] sm:$0xff]
        %v1508 = vld [vmem:[%s1496 + $0x58] sm:$0xff]
        %v1509 = vld [vmem:[%s1496 + $0x60] sm:$0xff]
        %v1510 = vld [vmem:[%s1496 + $0x68] sm:$0xff]
        %v1511 = vld [vmem:[%s1496 + $0x70] sm:$0xff]
        %v1512 = vld [vmem:[%s1496 + $0x78] sm:$0xff]
        %v1513 = vld [vmem:[%s1496 + $0x80] sm:$0xff]
        %v1514 = vld [vmem:[%s1496 + $0x88] sm:$0xff]
        %v1515 = vld [vmem:[%s1496 + $0x90] sm:$0xff]
        %v1516 = vld [vmem:[%s1496 + $0x98] sm:$0xff]
        %v1517 = vld [vmem:[%s1496 + $0xa0] sm:$0xff]
        %v1518 = vld [vmem:[%s1496 + $0xa8] sm:$0xff]
        %v1519 = vld [vmem:[%s1496 + $0xb0] sm:$0xff]
        %v1520 = vld [vmem:[%s1496 + $0xb8] sm:$0xff]
        %v1522 = vsel %vm625, %v574, 0
        %1524 = vmatprep.subr.mxu0 0.0
        %1525 = vmatpush1.msra.mxu0 0.0
        %1526 = vmatprep.subr.mxu0 0.0
        %1527 = vmatpush1.msra.mxu0 0.0
        %1528 = vmatprep.subr.mxu0 0.0
        %1529 = vmatpush1.msra.mxu0 0.0
        %1530 = vmatprep.subr.mxu0 0.0
        %1531 = vmatpush1.msra.mxu0 0.0
        %1532 = vmatprep.subr.mxu0 %v1520
        %1533 = vmatpush1.msra.mxu0 %v1519
        %1534 = vmatprep.subr.mxu0 %v1518
        %1535 = vmatpush1.msra.mxu0 %v1517
        %1536 = vmatprep.subr.mxu0 %v1516
        %1537 = vmatpush1.msra.mxu0 %v1515
        %1538 = vmatprep.subr.mxu0 %v1514
        %1539 = vmatpush1.msra.mxu0 %v1513
        %1540 = vmatprep.subr.mxu0 %v1512
        %1541 = vmatpush1.msra.mxu0 %v1511
        %1542 = vmatprep.subr.mxu0 %v1510
        %1543 = vmatpush1.msra.mxu0 %v1509
        %1544 = vmatprep.subr.mxu0 %v1508
        %1545 = vmatpush1.msra.mxu0 %v1507
        %1546 = vmatprep.subr.mxu0 %v1506
        %1547 = vmatpush1.msra.mxu0 %v1505
        %1548 = vmatprep.subr.mxu0 %v1504
        %1549 = vmatpush1.msra.mxu0 %v1503
        %1550 = vmatprep.subr.mxu0 %v1502
        %1551 = vmatpush1.msra.mxu0 %v1501
        %1552 = vmatprep.subr.mxu0 %v1500
        %1553 = vmatpush1.msra.mxu0 %v1499
        %1554 = vmatprep.subr.mxu0 %v1498
        %1555 = vmatpush1.msra.mxu0 %v1497
        %1556 = vmatprep.subr.mxu0 0.0
        %1557 = vmatpush2.msra.mxu0 0.0
        %1558 = vmatprep.subr.mxu0 0.0
        %1559 = vmatpush2.msra.mxu0 0.0
        %1560 = vmatprep.subr.mxu0 0.0
        %1561 = vmatpush2.msra.mxu0 0.0
        %1562 = vmatprep.subr.mxu0 0.0
        %1563 = vmatpush2.msra.mxu0 0.0
        %1564 = vmatprep.subr.mxu0 0.0
        %1565 = vmatpush2.msra.mxu0 0.0
        %1566 = vmatprep.subr.mxu0 0.0
        %1567 = vmatpush2.msra.mxu0 0.0
        %1568 = vmatprep.subr.mxu0 0.0
        %1569 = vmatpush2.msra.mxu0 0.0
        %1570 = vmatprep.subr.mxu0 0.0
        %1571 = vmatpush2.msra.mxu0 0.0
        %1572 = vmatprep.subr.mxu0 0.0
        %1573 = vmatpush2.msra.mxu0 0.0
        %1574 = vmatprep.subr.mxu0 0.0
        %1575 = vmatpush2.msra.mxu0 0.0
        %1576 = vmatprep.subr.mxu0 0.0
        %1577 = vmatpush2.msra.mxu0 0.0
        %1578 = vmatprep.subr.mxu0 0.0
        %1579 = vmatpush2.msra.mxu0 0.0
        %1580 = vmatprep.subr.mxu0 0.0
        %1581 = vmatpush2.msra.mxu0 0.0
        %1582 = vmatprep.subr.mxu0 0.0
        %1583 = vmatpush2.msra.mxu0 0.0
        %1584 = vmatprep.subr.mxu0 0.0
        %1585 = vmatpush2.msra.mxu0 0.0
        %1586 = vmatprep.subr.mxu0 0.0
        %1587 = vmatpush2.msra.mxu0 0.0
        %1588 = vmatprep.mubr.f32.mxu0 0.0
        %1589 = vmatmul.mubr.f32.gmra.mxu0 %v633
        %v1590 = vpop.f32.mrf.mxu0
        %v1591 = vadd.f32 0.0, %v1590
        %v1592 = vpop.f32.mrf.mxu0
        %v1593 = vadd.f32 0.0, %v1592
        %1594 = vmatprep.mubr.f32.mxu0 0.0
        %1595 = vmatmul.mubr.f32.gmra.mxu0 %v636
        %v1596 = vpop.f32.mrf.mxu0
        %v1597 = vadd.f32 0.0, %v1596
        %v1598 = vpop.f32.mrf.mxu0
        %v1599 = vadd.f32 0.0, %v1598
        %1600 = vmatprep.mubr.f32.mxu0 0.0
        %1601 = vmatmul.mubr.f32.gmra.mxu0 %v639
        %v1602 = vpop.f32.mrf.mxu0
        %v1603 = vadd.f32 0.0, %v1602
        %v1604 = vpop.f32.mrf.mxu0
        %v1605 = vadd.f32 0.0, %v1604
        %1606 = vmatprep.mubr.f32.mxu0 0.0
        %1607 = vmatmul.mubr.f32.gmra.mxu0 %v642
        %v1608 = vpop.f32.mrf.mxu0
        %v1609 = vadd.f32 0.0, %v1608
        %v1610 = vpop.f32.mrf.mxu0
        %v1611 = vadd.f32 0.0, %v1610
        %1612 = vmatprep.mubr.f32.mxu0 0.0
        %1613 = vmatmul.mubr.f32.gmra.mxu0 %v645
        %v1614 = vpop.f32.mrf.mxu0
        %v1615 = vadd.f32 0.0, %v1614
        %v1616 = vpop.f32.mrf.mxu0
        %v1617 = vadd.f32 0.0, %v1616
        %1618 = vmatprep.mubr.f32.mxu0 0.0
        %1619 = vmatmul.mubr.f32.gmra.mxu0 %v648
        %v1620 = vpop.f32.mrf.mxu0
        %v1621 = vadd.f32 0.0, %v1620
        %v1622 = vpop.f32.mrf.mxu0
        %v1623 = vadd.f32 0.0, %v1622
        %1624 = vmatprep.mubr.f32.mxu0 0.0
        %1625 = vmatmul.mubr.f32.gmra.mxu0 %v651
        %v1626 = vpop.f32.mrf.mxu0
        %v1627 = vadd.f32 0.0, %v1626
        %v1628 = vpop.f32.mrf.mxu0
        %v1629 = vadd.f32 0.0, %v1628
        %1630 = vmatprep.mubr.f32.mxu0 0.0
        %1631 = vmatmul.mubr.f32.gmra.mxu0 %v654
        %v1632 = vpop.f32.mrf.mxu0
        %v1633 = vadd.f32 0.0, %v1632
        %v1634 = vpop.f32.mrf.mxu0
        %v1635 = vadd.f32 0.0, %v1634
        %1636 = vmatprep.mubr.f32.mxu0 0.0
        %1637 = vmatmul.mubr.f32.gmra.mxu0 %v657
        %v1638 = vpop.f32.mrf.mxu0
        %v1639 = vadd.f32 0.0, %v1638
        %v1640 = vpop.f32.mrf.mxu0
        %v1641 = vadd.f32 0.0, %v1640
        %1642 = vmatprep.mubr.f32.mxu0 0.0
        %1643 = vmatmul.mubr.f32.gmra.mxu0 %v660
        %v1644 = vpop.f32.mrf.mxu0
        %v1645 = vadd.f32 0.0, %v1644
        %v1646 = vpop.f32.mrf.mxu0
        %v1647 = vadd.f32 0.0, %v1646
        %1648 = vmatprep.mubr.f32.mxu0 0.0
        %1649 = vmatmul.mubr.f32.gmra.mxu0 %v663
        %v1650 = vpop.f32.mrf.mxu0
        %v1651 = vadd.f32 0.0, %v1650
        %v1652 = vpop.f32.mrf.mxu0
        %v1653 = vadd.f32 0.0, %v1652
        %1654 = vmatprep.mubr.f32.mxu0 0.0
        %1655 = vmatmul.mubr.f32.gmra.mxu0 %v666
        %v1656 = vpop.f32.mrf.mxu0
        %v1657 = vadd.f32 0.0, %v1656
        %v1658 = vpop.f32.mrf.mxu0
        %v1659 = vadd.f32 0.0, %v1658
        %1660 = vmatprep.mubr.f32.mxu0 0.0
        %1661 = vmatmul.mubr.f32.gmra.mxu0 %v669
        %v1662 = vpop.f32.mrf.mxu0
        %v1663 = vadd.f32 0.0, %v1662
        %v1664 = vpop.f32.mrf.mxu0
        %v1665 = vadd.f32 0.0, %v1664
        %1666 = vmatprep.mubr.f32.mxu0 0.0
        %1667 = vmatmul.mubr.f32.gmra.mxu0 %v672
        %v1668 = vpop.f32.mrf.mxu0
        %v1669 = vadd.f32 0.0, %v1668
        %v1670 = vpop.f32.mrf.mxu0
        %v1671 = vadd.f32 0.0, %v1670
        %1672 = vmatprep.mubr.f32.mxu0 0.0
        %1673 = vmatmul.mubr.f32.gmra.mxu0 %v675
        %v1674 = vpop.f32.mrf.mxu0
        %v1675 = vadd.f32 0.0, %v1674
        %v1676 = vpop.f32.mrf.mxu0
        %v1677 = vadd.f32 0.0, %v1676
        %1678 = vmatprep.mubr.f32.mxu0 0.0
        %1679 = vmatmul.mubr.f32.gmra.mxu0 %v678
        %v1680 = vpop.f32.mrf.mxu0
        %v1681 = vadd.f32 0.0, %v1680
        %v1682 = vpop.f32.mrf.mxu0
        %v1683 = vadd.f32 0.0, %v1682
        %1684 = vmatprep.mubr.f32.mxu0 0.0
        %1685 = vmatmul.mubr.f32.gmra.mxu0 %v681
        %v1686 = vpop.f32.mrf.mxu0
        %v1687 = vadd.f32 0.0, %v1686
        %v1688 = vpop.f32.mrf.mxu0
        %v1689 = vadd.f32 0.0, %v1688
        %1690 = vmatprep.mubr.f32.mxu0 0.0
        %1691 = vmatmul.mubr.f32.gmra.mxu0 %v684
        %v1692 = vpop.f32.mrf.mxu0
        %v1693 = vadd.f32 0.0, %v1692
        %v1694 = vpop.f32.mrf.mxu0
        %v1695 = vadd.f32 0.0, %v1694
        %1696 = vmatprep.mubr.f32.mxu0 0.0
        %1697 = vmatmul.mubr.f32.gmra.mxu0 %v687
        %v1698 = vpop.f32.mrf.mxu0
        %v1699 = vadd.f32 0.0, %v1698
        %v1700 = vpop.f32.mrf.mxu0
        %v1701 = vadd.f32 0.0, %v1700
        %1702 = vmatprep.mubr.f32.mxu0 0.0
        %1703 = vmatmul.mubr.f32.gmra.mxu0 %v690
        %v1704 = vpop.f32.mrf.mxu0
        %v1705 = vadd.f32 0.0, %v1704
        %v1706 = vpop.f32.mrf.mxu0
        %v1707 = vadd.f32 0.0, %v1706
        %1708 = vmatprep.mubr.f32.mxu0 0.0
        %1709 = vmatmul.mubr.f32.gmra.mxu0 %v693
        %v1710 = vpop.f32.mrf.mxu0
        %v1711 = vadd.f32 0.0, %v1710
        %v1712 = vpop.f32.mrf.mxu0
        %v1713 = vadd.f32 0.0, %v1712
        %1714 = vmatprep.mubr.f32.mxu0 0.0
        %1715 = vmatmul.mubr.f32.gmra.mxu0 %v696
        %v1716 = vpop.f32.mrf.mxu0
        %v1717 = vadd.f32 0.0, %v1716
        %v1718 = vpop.f32.mrf.mxu0
        %v1719 = vadd.f32 0.0, %v1718
        %1720 = vmatprep.mubr.f32.mxu0 0.0
        %1721 = vmatmul.mubr.f32.gmra.mxu0 %v699
        %v1722 = vpop.f32.mrf.mxu0
        %v1723 = vadd.f32 0.0, %v1722
        %v1724 = vpop.f32.mrf.mxu0
        %v1725 = vadd.f32 0.0, %v1724
        %1726 = vmatprep.mubr.f32.mxu0 0.0
        %1727 = vmatmul.mubr.f32.gmra.mxu0 %v702
        %v1728 = vpop.f32.mrf.mxu0
        %v1729 = vadd.f32 0.0, %v1728
        %v1730 = vpop.f32.mrf.mxu0
        %v1731 = vadd.f32 0.0, %v1730
        %1732 = vmatprep.mubr.f32.mxu0 0.0
        %1733 = vmatmul.mubr.f32.gmra.mxu0 %v705
        %v1734 = vpop.f32.mrf.mxu0
        %v1735 = vadd.f32 0.0, %v1734
        %v1736 = vpop.f32.mrf.mxu0
        %v1737 = vadd.f32 0.0, %v1736
        %1738 = vmatprep.mubr.f32.mxu0 0.0
        %1739 = vmatmul.mubr.f32.gmra.mxu0 %v708
        %v1740 = vpop.f32.mrf.mxu0
        %v1741 = vadd.f32 0.0, %v1740
        %v1742 = vpop.f32.mrf.mxu0
        %v1743 = vadd.f32 0.0, %v1742
        %1744 = vmatprep.mubr.f32.mxu0 0.0
        %1745 = vmatmul.mubr.f32.gmra.mxu0 %v1205
        %v1746 = vpop.f32.mrf.mxu0
        %v1747 = vadd.f32 0.0, %v1746
        %v1748 = vpop.f32.mrf.mxu0
        %v1749 = vadd.f32 0.0, %v1748
        %1750 = vmatprep.mubr.f32.mxu0 0.0
        %1751 = vmatmul.mubr.f32.gmra.mxu0 %v1522
        %v1752 = vpop.f32.mrf.mxu0
        %v1753 = vadd.f32 0.0, %v1752
        %v1754 = vpop.f32.mrf.mxu0
        %v1755 = vadd.f32 0.0, %v1754
        %1756 = vdwg.mxu0
        %v1757 = vadd.f32 %v1440, %v1591
        %v1758 = vadd.f32 %v1441, %v1593
        %v1759 = vadd.f32 %v1442, %v1597
        %v1760 = vadd.f32 %v1443, %v1599
        %v1761 = vadd.f32 %v1444, %v1603
        %v1762 = vadd.f32 %v1445, %v1605
        %v1763 = vadd.f32 %v1446, %v1609
        %v1764 = vadd.f32 %v1447, %v1611
        %v1765 = vadd.f32 %v1448, %v1615
        %v1766 = vadd.f32 %v1449, %v1617
        %v1767 = vadd.f32 %v1450, %v1621
        %v1768 = vadd.f32 %v1451, %v1623
        %v1769 = vadd.f32 %v1452, %v1627
        %v1770 = vadd.f32 %v1453, %v1629
        %v1771 = vadd.f32 %v1454, %v1633
        %v1772 = vadd.f32 %v1455, %v1635
        %v1773 = vadd.f32 %v1456, %v1639
        %v1774 = vadd.f32 %v1457, %v1641
        %v1775 = vadd.f32 %v1458, %v1645
        %v1776 = vadd.f32 %v1459, %v1647
        %v1777 = vadd.f32 %v1460, %v1651
        %v1778 = vadd.f32 %v1461, %v1653
        %v1779 = vadd.f32 %v1462, %v1657
        %v1780 = vadd.f32 %v1463, %v1659
        %v1781 = vadd.f32 %v1464, %v1663
        %v1782 = vadd.f32 %v1465, %v1665
        %v1783 = vadd.f32 %v1466, %v1669
        %v1784 = vadd.f32 %v1467, %v1671
        %v1785 = vadd.f32 %v1468, %v1675
        %v1786 = vadd.f32 %v1469, %v1677
        %v1787 = vadd.f32 %v1470, %v1681
        %v1788 = vadd.f32 %v1471, %v1683
        %v1789 = vadd.f32 %v1472, %v1687
        %v1790 = vadd.f32 %v1473, %v1689
        %v1791 = vadd.f32 %v1474, %v1693
        %v1792 = vadd.f32 %v1475, %v1695
        %v1793 = vadd.f32 %v1476, %v1699
        %v1794 = vadd.f32 %v1477, %v1701
        %v1795 = vadd.f32 %v1478, %v1705
        %v1796 = vadd.f32 %v1479, %v1707
        %v1797 = vadd.f32 %v1480, %v1711
        %v1798 = vadd.f32 %v1481, %v1713
        %v1799 = vadd.f32 %v1482, %v1717
        %v1800 = vadd.f32 %v1483, %v1719
        %v1801 = vadd.f32 %v1484, %v1723
        %v1802 = vadd.f32 %v1485, %v1725
        %v1803 = vadd.f32 %v1486, %v1729
        %v1804 = vadd.f32 %v1487, %v1731
        %v1805 = vadd.f32 %v1488, %v1735
        %v1806 = vadd.f32 %v1489, %v1737
        %v1807 = vadd.f32 %v1490, %v1741
        %v1808 = vadd.f32 %v1491, %v1743
        %v1809 = vadd.f32 %v1492, %v1747
        %v1810 = vadd.f32 %v1493, %v1749
        %v1811 = vadd.f32 %v1494, %v1753
        %v1812 = vadd.f32 %v1495, %v1755
        %s1813 = scalar_lea.vmem %s1, 768
        %v1814 = vld [vmem:[%s1813] sm:$0xff]
        %v1815 = vld [vmem:[%s1813 + $0x8] sm:$0xff]
        %v1816 = vld [vmem:[%s1813 + $0x10] sm:$0xff]
        %v1817 = vld [vmem:[%s1813 + $0x18] sm:$0xff]
        %v1818 = vld [vmem:[%s1813 + $0x20] sm:$0xff]
        %v1819 = vld [vmem:[%s1813 + $0x28] sm:$0xff]
        %v1820 = vld [vmem:[%s1813 + $0x30] sm:$0xff]
        %v1821 = vld [vmem:[%s1813 + $0x38] sm:$0xff]
        %v1822 = vld [vmem:[%s1813 + $0x40] sm:$0xff]
        %v1823 = vld [vmem:[%s1813 + $0x48] sm:$0xff]
        %v1824 = vld [vmem:[%s1813 + $0x50] sm:$0xff]
        %v1825 = vld [vmem:[%s1813 + $0x58] sm:$0xff]
        %v1826 = vld [vmem:[%s1813 + $0x60] sm:$0xff]
        %v1827 = vld [vmem:[%s1813 + $0x68] sm:$0xff]
        %v1828 = vld [vmem:[%s1813 + $0x70] sm:$0xff]
        %v1829 = vld [vmem:[%s1813 + $0x78] sm:$0xff]
        %v1830 = vld [vmem:[%s1813 + $0x80] sm:$0xff]
        %v1831 = vld [vmem:[%s1813 + $0x88] sm:$0xff]
        %v1832 = vld [vmem:[%s1813 + $0x90] sm:$0xff]
        %v1833 = vld [vmem:[%s1813 + $0x98] sm:$0xff]
        %v1834 = vld [vmem:[%s1813 + $0xa0] sm:$0xff]
        %v1835 = vld [vmem:[%s1813 + $0xa8] sm:$0xff]
        %v1836 = vld [vmem:[%s1813 + $0xb0] sm:$0xff]
        %v1837 = vld [vmem:[%s1813 + $0xb8] sm:$0xff]
        %v1839 = vsel %vm625, %v575, 0
        %1841 = vmatprep.subr.mxu0 0.0
        %1842 = vmatpush1.msra.mxu0 0.0
        %1843 = vmatprep.subr.mxu0 0.0
        %1844 = vmatpush1.msra.mxu0 0.0
        %1845 = vmatprep.subr.mxu0 0.0
        %1846 = vmatpush1.msra.mxu0 0.0
        %1847 = vmatprep.subr.mxu0 0.0
        %1848 = vmatpush1.msra.mxu0 0.0
        %1849 = vmatprep.subr.mxu0 %v1837
        %1850 = vmatpush1.msra.mxu0 %v1836
        %1851 = vmatprep.subr.mxu0 %v1835
        %1852 = vmatpush1.msra.mxu0 %v1834
        %1853 = vmatprep.subr.mxu0 %v1833
        %1854 = vmatpush1.msra.mxu0 %v1832
        %1855 = vmatprep.subr.mxu0 %v1831
        %1856 = vmatpush1.msra.mxu0 %v1830
        %1857 = vmatprep.subr.mxu0 %v1829
        %1858 = vmatpush1.msra.mxu0 %v1828
        %1859 = vmatprep.subr.mxu0 %v1827
        %1860 = vmatpush1.msra.mxu0 %v1826
        %1861 = vmatprep.subr.mxu0 %v1825
        %1862 = vmatpush1.msra.mxu0 %v1824
        %1863 = vmatprep.subr.mxu0 %v1823
        %1864 = vmatpush1.msra.mxu0 %v1822
        %1865 = vmatprep.subr.mxu0 %v1821
        %1866 = vmatpush1.msra.mxu0 %v1820
        %1867 = vmatprep.subr.mxu0 %v1819
        %1868 = vmatpush1.msra.mxu0 %v1818
        %1869 = vmatprep.subr.mxu0 %v1817
        %1870 = vmatpush1.msra.mxu0 %v1816
        %1871 = vmatprep.subr.mxu0 %v1815
        %1872 = vmatpush1.msra.mxu0 %v1814
        %1873 = vmatprep.subr.mxu0 0.0
        %1874 = vmatpush2.msra.mxu0 0.0
        %1875 = vmatprep.subr.mxu0 0.0
        %1876 = vmatpush2.msra.mxu0 0.0
        %1877 = vmatprep.subr.mxu0 0.0
        %1878 = vmatpush2.msra.mxu0 0.0
        %1879 = vmatprep.subr.mxu0 0.0
        %1880 = vmatpush2.msra.mxu0 0.0
        %1881 = vmatprep.subr.mxu0 0.0
        %1882 = vmatpush2.msra.mxu0 0.0
        %1883 = vmatprep.subr.mxu0 0.0
        %1884 = vmatpush2.msra.mxu0 0.0
        %1885 = vmatprep.subr.mxu0 0.0
        %1886 = vmatpush2.msra.mxu0 0.0
        %1887 = vmatprep.subr.mxu0 0.0
        %1888 = vmatpush2.msra.mxu0 0.0
        %1889 = vmatprep.subr.mxu0 0.0
        %1890 = vmatpush2.msra.mxu0 0.0
        %1891 = vmatprep.subr.mxu0 0.0
        %1892 = vmatpush2.msra.mxu0 0.0
        %1893 = vmatprep.subr.mxu0 0.0
        %1894 = vmatpush2.msra.mxu0 0.0
        %1895 = vmatprep.subr.mxu0 0.0
        %1896 = vmatpush2.msra.mxu0 0.0
        %1897 = vmatprep.subr.mxu0 0.0
        %1898 = vmatpush2.msra.mxu0 0.0
        %1899 = vmatprep.subr.mxu0 0.0
        %1900 = vmatpush2.msra.mxu0 0.0
        %1901 = vmatprep.subr.mxu0 0.0
        %1902 = vmatpush2.msra.mxu0 0.0
        %1903 = vmatprep.subr.mxu0 0.0
        %1904 = vmatpush2.msra.mxu0 0.0
        %1905 = vmatprep.mubr.f32.mxu0 0.0
        %1906 = vmatmul.mubr.f32.gmra.mxu0 %v636
        %v1907 = vpop.f32.mrf.mxu0
        %v1908 = vadd.f32 0.0, %v1907
        %v1909 = vpop.f32.mrf.mxu0
        %v1910 = vadd.f32 0.0, %v1909
        %1911 = vmatprep.mubr.f32.mxu0 0.0
        %1912 = vmatmul.mubr.f32.gmra.mxu0 %v639
        %v1913 = vpop.f32.mrf.mxu0
        %v1914 = vadd.f32 0.0, %v1913
        %v1915 = vpop.f32.mrf.mxu0
        %v1916 = vadd.f32 0.0, %v1915
        %1917 = vmatprep.mubr.f32.mxu0 0.0
        %1918 = vmatmul.mubr.f32.gmra.mxu0 %v642
        %v1919 = vpop.f32.mrf.mxu0
        %v1920 = vadd.f32 0.0, %v1919
        %v1921 = vpop.f32.mrf.mxu0
        %v1922 = vadd.f32 0.0, %v1921
        %1923 = vmatprep.mubr.f32.mxu0 0.0
        %1924 = vmatmul.mubr.f32.gmra.mxu0 %v645
        %v1925 = vpop.f32.mrf.mxu0
        %v1926 = vadd.f32 0.0, %v1925
        %v1927 = vpop.f32.mrf.mxu0
        %v1928 = vadd.f32 0.0, %v1927
        %1929 = vmatprep.mubr.f32.mxu0 0.0
        %1930 = vmatmul.mubr.f32.gmra.mxu0 %v648
        %v1931 = vpop.f32.mrf.mxu0
        %v1932 = vadd.f32 0.0, %v1931
        %v1933 = vpop.f32.mrf.mxu0
        %v1934 = vadd.f32 0.0, %v1933
        %1935 = vmatprep.mubr.f32.mxu0 0.0
        %1936 = vmatmul.mubr.f32.gmra.mxu0 %v651
        %v1937 = vpop.f32.mrf.mxu0
        %v1938 = vadd.f32 0.0, %v1937
        %v1939 = vpop.f32.mrf.mxu0
        %v1940 = vadd.f32 0.0, %v1939
        %1941 = vmatprep.mubr.f32.mxu0 0.0
        %1942 = vmatmul.mubr.f32.gmra.mxu0 %v654
        %v1943 = vpop.f32.mrf.mxu0
        %v1944 = vadd.f32 0.0, %v1943
        %v1945 = vpop.f32.mrf.mxu0
        %v1946 = vadd.f32 0.0, %v1945
        %1947 = vmatprep.mubr.f32.mxu0 0.0
        %1948 = vmatmul.mubr.f32.gmra.mxu0 %v657
        %v1949 = vpop.f32.mrf.mxu0
        %v1950 = vadd.f32 0.0, %v1949
        %v1951 = vpop.f32.mrf.mxu0
        %v1952 = vadd.f32 0.0, %v1951
        %1953 = vmatprep.mubr.f32.mxu0 0.0
        %1954 = vmatmul.mubr.f32.gmra.mxu0 %v660
        %v1955 = vpop.f32.mrf.mxu0
        %v1956 = vadd.f32 0.0, %v1955
        %v1957 = vpop.f32.mrf.mxu0
        %v1958 = vadd.f32 0.0, %v1957
        %1959 = vmatprep.mubr.f32.mxu0 0.0
        %1960 = vmatmul.mubr.f32.gmra.mxu0 %v663
        %v1961 = vpop.f32.mrf.mxu0
        %v1962 = vadd.f32 0.0, %v1961
        %v1963 = vpop.f32.mrf.mxu0
        %v1964 = vadd.f32 0.0, %v1963
        %1965 = vmatprep.mubr.f32.mxu0 0.0
        %1966 = vmatmul.mubr.f32.gmra.mxu0 %v666
        %v1967 = vpop.f32.mrf.mxu0
        %v1968 = vadd.f32 0.0, %v1967
        %v1969 = vpop.f32.mrf.mxu0
        %v1970 = vadd.f32 0.0, %v1969
        %1971 = vmatprep.mubr.f32.mxu0 0.0
        %1972 = vmatmul.mubr.f32.gmra.mxu0 %v669
        %v1973 = vpop.f32.mrf.mxu0
        %v1974 = vadd.f32 0.0, %v1973
        %v1975 = vpop.f32.mrf.mxu0
        %v1976 = vadd.f32 0.0, %v1975
        %1977 = vmatprep.mubr.f32.mxu0 0.0
        %1978 = vmatmul.mubr.f32.gmra.mxu0 %v672
        %v1979 = vpop.f32.mrf.mxu0
        %v1980 = vadd.f32 0.0, %v1979
        %v1981 = vpop.f32.mrf.mxu0
        %v1982 = vadd.f32 0.0, %v1981
        %1983 = vmatprep.mubr.f32.mxu0 0.0
        %1984 = vmatmul.mubr.f32.gmra.mxu0 %v675
        %v1985 = vpop.f32.mrf.mxu0
        %v1986 = vadd.f32 0.0, %v1985
        %v1987 = vpop.f32.mrf.mxu0
        %v1988 = vadd.f32 0.0, %v1987
        %1989 = vmatprep.mubr.f32.mxu0 0.0
        %1990 = vmatmul.mubr.f32.gmra.mxu0 %v678
        %v1991 = vpop.f32.mrf.mxu0
        %v1992 = vadd.f32 0.0, %v1991
        %v1993 = vpop.f32.mrf.mxu0
        %v1994 = vadd.f32 0.0, %v1993
        %1995 = vmatprep.mubr.f32.mxu0 0.0
        %1996 = vmatmul.mubr.f32.gmra.mxu0 %v681
        %v1997 = vpop.f32.mrf.mxu0
        %v1998 = vadd.f32 0.0, %v1997
        %v1999 = vpop.f32.mrf.mxu0
        %v2000 = vadd.f32 0.0, %v1999
        %2001 = vmatprep.mubr.f32.mxu0 0.0
        %2002 = vmatmul.mubr.f32.gmra.mxu0 %v684
        %v2003 = vpop.f32.mrf.mxu0
        %v2004 = vadd.f32 0.0, %v2003
        %v2005 = vpop.f32.mrf.mxu0
        %v2006 = vadd.f32 0.0, %v2005
        %2007 = vmatprep.mubr.f32.mxu0 0.0
        %2008 = vmatmul.mubr.f32.gmra.mxu0 %v687
        %v2009 = vpop.f32.mrf.mxu0
        %v2010 = vadd.f32 0.0, %v2009
        %v2011 = vpop.f32.mrf.mxu0
        %v2012 = vadd.f32 0.0, %v2011
        %2013 = vmatprep.mubr.f32.mxu0 0.0
        %2014 = vmatmul.mubr.f32.gmra.mxu0 %v690
        %v2015 = vpop.f32.mrf.mxu0
        %v2016 = vadd.f32 0.0, %v2015
        %v2017 = vpop.f32.mrf.mxu0
        %v2018 = vadd.f32 0.0, %v2017
        %2019 = vmatprep.mubr.f32.mxu0 0.0
        %2020 = vmatmul.mubr.f32.gmra.mxu0 %v693
        %v2021 = vpop.f32.mrf.mxu0
        %v2022 = vadd.f32 0.0, %v2021
        %v2023 = vpop.f32.mrf.mxu0
        %v2024 = vadd.f32 0.0, %v2023
        %2025 = vmatprep.mubr.f32.mxu0 0.0
        %2026 = vmatmul.mubr.f32.gmra.mxu0 %v696
        %v2027 = vpop.f32.mrf.mxu0
        %v2028 = vadd.f32 0.0, %v2027
        %v2029 = vpop.f32.mrf.mxu0
        %v2030 = vadd.f32 0.0, %v2029
        %2031 = vmatprep.mubr.f32.mxu0 0.0
        %2032 = vmatmul.mubr.f32.gmra.mxu0 %v699
        %v2033 = vpop.f32.mrf.mxu0
        %v2034 = vadd.f32 0.0, %v2033
        %v2035 = vpop.f32.mrf.mxu0
        %v2036 = vadd.f32 0.0, %v2035
        %2037 = vmatprep.mubr.f32.mxu0 0.0
        %2038 = vmatmul.mubr.f32.gmra.mxu0 %v702
        %v2039 = vpop.f32.mrf.mxu0
        %v2040 = vadd.f32 0.0, %v2039
        %v2041 = vpop.f32.mrf.mxu0
        %v2042 = vadd.f32 0.0, %v2041
        %2043 = vmatprep.mubr.f32.mxu0 0.0
        %2044 = vmatmul.mubr.f32.gmra.mxu0 %v705
        %v2045 = vpop.f32.mrf.mxu0
        %v2046 = vadd.f32 0.0, %v2045
        %v2047 = vpop.f32.mrf.mxu0
        %v2048 = vadd.f32 0.0, %v2047
        %2049 = vmatprep.mubr.f32.mxu0 0.0
        %2050 = vmatmul.mubr.f32.gmra.mxu0 %v708
        %v2051 = vpop.f32.mrf.mxu0
        %v2052 = vadd.f32 0.0, %v2051
        %v2053 = vpop.f32.mrf.mxu0
        %v2054 = vadd.f32 0.0, %v2053
        %2055 = vmatprep.mubr.f32.mxu0 0.0
        %2056 = vmatmul.mubr.f32.gmra.mxu0 %v1205
        %v2057 = vpop.f32.mrf.mxu0
        %v2058 = vadd.f32 0.0, %v2057
        %v2059 = vpop.f32.mrf.mxu0
        %v2060 = vadd.f32 0.0, %v2059
        %2061 = vmatprep.mubr.f32.mxu0 0.0
        %2062 = vmatmul.mubr.f32.gmra.mxu0 %v1522
        %v2063 = vpop.f32.mrf.mxu0
        %v2064 = vadd.f32 0.0, %v2063
        %v2065 = vpop.f32.mrf.mxu0
        %v2066 = vadd.f32 0.0, %v2065
        %2067 = vmatprep.mubr.f32.mxu0 0.0
        %2068 = vmatmul.mubr.f32.gmra.mxu0 %v1839
        %v2069 = vpop.f32.mrf.mxu0
        %v2070 = vadd.f32 0.0, %v2069
        %v2071 = vpop.f32.mrf.mxu0
        %v2072 = vadd.f32 0.0, %v2071
        %2073 = vdwg.mxu0
        %v2074 = vadd.f32 %v1757, %v1908
        %v2075 = vadd.f32 %v1758, %v1910
        %v2076 = vadd.f32 %v1759, %v1914
        %v2077 = vadd.f32 %v1760, %v1916
        %v2078 = vadd.f32 %v1761, %v1920
        %v2079 = vadd.f32 %v1762, %v1922
        %v2080 = vadd.f32 %v1763, %v1926
        %v2081 = vadd.f32 %v1764, %v1928
        %v2082 = vadd.f32 %v1765, %v1932
        %v2083 = vadd.f32 %v1766, %v1934
        %v2084 = vadd.f32 %v1767, %v1938
        %v2085 = vadd.f32 %v1768, %v1940
        %v2086 = vadd.f32 %v1769, %v1944
        %v2087 = vadd.f32 %v1770, %v1946
        %v2088 = vadd.f32 %v1771, %v1950
        %v2089 = vadd.f32 %v1772, %v1952
        %v2090 = vadd.f32 %v1773, %v1956
        %v2091 = vadd.f32 %v1774, %v1958
        %v2092 = vadd.f32 %v1775, %v1962
        %v2093 = vadd.f32 %v1776, %v1964
        %v2094 = vadd.f32 %v1777, %v1968
        %v2095 = vadd.f32 %v1778, %v1970
        %v2096 = vadd.f32 %v1779, %v1974
        %v2097 = vadd.f32 %v1780, %v1976
        %v2098 = vadd.f32 %v1781, %v1980
        %v2099 = vadd.f32 %v1782, %v1982
        %v2100 = vadd.f32 %v1783, %v1986
        %v2101 = vadd.f32 %v1784, %v1988
        %v2102 = vadd.f32 %v1785, %v1992
        %v2103 = vadd.f32 %v1786, %v1994
        %v2104 = vadd.f32 %v1787, %v1998
        %v2105 = vadd.f32 %v1788, %v2000
        %v2106 = vadd.f32 %v1789, %v2004
        %v2107 = vadd.f32 %v1790, %v2006
        %v2108 = vadd.f32 %v1791, %v2010
        %v2109 = vadd.f32 %v1792, %v2012
        %v2110 = vadd.f32 %v1793, %v2016
        %v2111 = vadd.f32 %v1794, %v2018
        %v2112 = vadd.f32 %v1795, %v2022
        %v2113 = vadd.f32 %v1796, %v2024
        %v2114 = vadd.f32 %v1797, %v2028
        %v2115 = vadd.f32 %v1798, %v2030
        %v2116 = vadd.f32 %v1799, %v2034
        %v2117 = vadd.f32 %v1800, %v2036
        %v2118 = vadd.f32 %v1801, %v2040
        %v2119 = vadd.f32 %v1802, %v2042
        %v2120 = vadd.f32 %v1803, %v2046
        %v2121 = vadd.f32 %v1804, %v2048
        %v2122 = vadd.f32 %v1805, %v2052
        %v2123 = vadd.f32 %v1806, %v2054
        %v2124 = vadd.f32 %v1807, %v2058
        %v2125 = vadd.f32 %v1808, %v2060
        %v2126 = vadd.f32 %v1809, %v2064
        %v2127 = vadd.f32 %v1810, %v2066
        %v2128 = vadd.f32 %v1811, %v2070
        %v2129 = vadd.f32 %v1812, %v2072
        %v2130 = vld [vmem:[%s2] sm:$0x3]
        %v2132 = vlaneseq
        %v2133 = vshrl.u32 %v2132, 7
        %v2134 = vsub.s32 0, %v2133
        %v2135 = vrot.slane %v2130, %v2134
        %v2136 = vlaneseq
        %v2137 = vshrl.u32 %v2136, 7
        %v2138 = vsub.s32 1, %v2137
        %v2139 = vrot.slane %v2130, %v2138
        %v2142 = vadd.f32 %v2074, %v2135
        %v2143 = vadd.f32 %v2075, %v2139
        %v2144 = vadd.f32 %v2076, %v2135
        %v2145 = vadd.f32 %v2077, %v2139
        %v2146 = vadd.f32 %v2078, %v2135
        %v2147 = vadd.f32 %v2079, %v2139
        %v2148 = vadd.f32 %v2080, %v2135
        %v2149 = vadd.f32 %v2081, %v2139
        %v2150 = vadd.f32 %v2082, %v2135
        %v2151 = vadd.f32 %v2083, %v2139
        %v2152 = vadd.f32 %v2084, %v2135
        %v2153 = vadd.f32 %v2085, %v2139
        %v2154 = vadd.f32 %v2086, %v2135
        %v2155 = vadd.f32 %v2087, %v2139
        %v2156 = vadd.f32 %v2088, %v2135
        %v2157 = vadd.f32 %v2089, %v2139
        %v2158 = vadd.f32 %v2090, %v2135
        %v2159 = vadd.f32 %v2091, %v2139
        %v2160 = vadd.f32 %v2092, %v2135
        %v2161 = vadd.f32 %v2093, %v2139
        %v2162 = vadd.f32 %v2094, %v2135
        %v2163 = vadd.f32 %v2095, %v2139
        %v2164 = vadd.f32 %v2096, %v2135
        %v2165 = vadd.f32 %v2097, %v2139
        %v2166 = vadd.f32 %v2098, %v2135
        %v2167 = vadd.f32 %v2099, %v2139
        %v2168 = vadd.f32 %v2100, %v2135
        %v2169 = vadd.f32 %v2101, %v2139
        %v2170 = vadd.f32 %v2102, %v2135
        %v2171 = vadd.f32 %v2103, %v2139
        %v2172 = vadd.f32 %v2104, %v2135
        %v2173 = vadd.f32 %v2105, %v2139
        %v2174 = vadd.f32 %v2106, %v2135
        %v2175 = vadd.f32 %v2107, %v2139
        %v2176 = vadd.f32 %v2108, %v2135
        %v2177 = vadd.f32 %v2109, %v2139
        %v2178 = vadd.f32 %v2110, %v2135
        %v2179 = vadd.f32 %v2111, %v2139
        %v2180 = vadd.f32 %v2112, %v2135
        %v2181 = vadd.f32 %v2113, %v2139
        %v2182 = vadd.f32 %v2114, %v2135
        %v2183 = vadd.f32 %v2115, %v2139
        %v2184 = vadd.f32 %v2116, %v2135
        %v2185 = vadd.f32 %v2117, %v2139
        %v2186 = vadd.f32 %v2118, %v2135
        %v2187 = vadd.f32 %v2119, %v2139
        %v2188 = vadd.f32 %v2120, %v2135
        %v2189 = vadd.f32 %v2121, %v2139
        %v2190 = vadd.f32 %v2122, %v2135
        %v2191 = vadd.f32 %v2123, %v2139
        %v2192 = vadd.f32 %v2124, %v2135
        %v2193 = vadd.f32 %v2125, %v2139
        %v2194 = vadd.f32 %v2126, %v2135
        %v2195 = vadd.f32 %v2127, %v2139
        %v2196 = vadd.f32 %v2128, %v2135
        %v2197 = vadd.f32 %v2129, %v2139
        %v2198 = vmax.f32 %v2142, 0.0
        %v2199 = vmax.f32 %v2143, 0.0
        %v2200 = vmax.f32 %v2144, 0.0
        %v2201 = vmax.f32 %v2145, 0.0
        %v2202 = vmax.f32 %v2146, 0.0
        %v2203 = vmax.f32 %v2147, 0.0
        %v2204 = vmax.f32 %v2148, 0.0
        %v2205 = vmax.f32 %v2149, 0.0
        %v2206 = vmax.f32 %v2150, 0.0
        %v2207 = vmax.f32 %v2151, 0.0
        %v2208 = vmax.f32 %v2152, 0.0
        %v2209 = vmax.f32 %v2153, 0.0
        %v2210 = vmax.f32 %v2154, 0.0
        %v2211 = vmax.f32 %v2155, 0.0
        %v2212 = vmax.f32 %v2156, 0.0
        %v2213 = vmax.f32 %v2157, 0.0
        %v2214 = vmax.f32 %v2158, 0.0
        %v2215 = vmax.f32 %v2159, 0.0
        %v2216 = vmax.f32 %v2160, 0.0
        %v2217 = vmax.f32 %v2161, 0.0
        %v2218 = vmax.f32 %v2162, 0.0
        %v2219 = vmax.f32 %v2163, 0.0
        %v2220 = vmax.f32 %v2164, 0.0
        %v2221 = vmax.f32 %v2165, 0.0
        %v2222 = vmax.f32 %v2166, 0.0
        %v2223 = vmax.f32 %v2167, 0.0
        %v2224 = vmax.f32 %v2168, 0.0
        %v2225 = vmax.f32 %v2169, 0.0
        %v2226 = vmax.f32 %v2170, 0.0
        %v2227 = vmax.f32 %v2171, 0.0
        %v2228 = vmax.f32 %v2172, 0.0
        %v2229 = vmax.f32 %v2173, 0.0
        %v2230 = vmax.f32 %v2174, 0.0
        %v2231 = vmax.f32 %v2175, 0.0
        %v2232 = vmax.f32 %v2176, 0.0
        %v2233 = vmax.f32 %v2177, 0.0
        %v2234 = vmax.f32 %v2178, 0.0
        %v2235 = vmax.f32 %v2179, 0.0
        %v2236 = vmax.f32 %v2180, 0.0
        %v2237 = vmax.f32 %v2181, 0.0
        %v2238 = vmax.f32 %v2182, 0.0
        %v2239 = vmax.f32 %v2183, 0.0
        %v2240 = vmax.f32 %v2184, 0.0
        %v2241 = vmax.f32 %v2185, 0.0
        %v2242 = vmax.f32 %v2186, 0.0
        %v2243 = vmax.f32 %v2187, 0.0
        %v2244 = vmax.f32 %v2188, 0.0
        %v2245 = vmax.f32 %v2189, 0.0
        %v2246 = vmax.f32 %v2190, 0.0
        %v2247 = vmax.f32 %v2191, 0.0
        %v2248 = vmax.f32 %v2192, 0.0
        %v2249 = vmax.f32 %v2193, 0.0
        %v2250 = vmax.f32 %v2194, 0.0
        %v2251 = vmax.f32 %v2195, 0.0
        %v2252 = vmax.f32 %v2196, 0.0
        %v2253 = vmax.f32 %v2197, 0.0
        %v2254 = vmax.f32 %v2198, %v2200
        %v2255 = vmax.f32 %v2199, %v2201
        %v2256 = vmax.f32 %v2202, %v2204
        %v2257 = vmax.f32 %v2203, %v2205
        %v2258 = vmax.f32 %v2206, %v2208
        %v2259 = vmax.f32 %v2207, %v2209
        %v2260 = vmax.f32 %v2210, %v2212
        %v2261 = vmax.f32 %v2211, %v2213
        %v2262 = vmax.f32 %v2214, %v2216
        %v2263 = vmax.f32 %v2215, %v2217
        %v2264 = vmax.f32 %v2218, %v2220
        %v2265 = vmax.f32 %v2219, %v2221
        %v2266 = vmax.f32 %v2222, %v2224
        %v2267 = vmax.f32 %v2223, %v2225
        %v2268 = vmax.f32 %v2226, %v2228
        %v2269 = vmax.f32 %v2227, %v2229
        %v2270 = vmax.f32 %v2230, %v2232
        %v2271 = vmax.f32 %v2231, %v2233
        %v2272 = vmax.f32 %v2234, %v2236
        %v2273 = vmax.f32 %v2235, %v2237
        %v2274 = vmax.f32 %v2238, %v2240
        %v2275 = vmax.f32 %v2239, %v2241
        %v2276 = vmax.f32 %v2242, %v2244
        %v2277 = vmax.f32 %v2243, %v2245
        %v2278 = vmax.f32 %v2246, %v2248
        %v2279 = vmax.f32 %v2247, %v2249
        %v2280 = vmax.f32 %v2250, %v2252
        %v2281 = vmax.f32 %v2251, %v2253
        %v2282 = vmax.f32 %v2254, %v2255
        %v2283 = vmax.f32 %v2256, %v2257
        %v2284 = vmax.f32 %v2258, %v2259
        %v2285 = vmax.f32 %v2260, %v2261
        %v2286 = vmax.f32 %v2262, %v2263
        %v2287 = vmax.f32 %v2264, %v2265
        %v2288 = vmax.f32 %v2266, %v2267
        %v2289 = vmax.f32 %v2268, %v2269
        %v2290 = vmax.f32 %v2270, %v2271
        %v2291 = vmax.f32 %v2272, %v2273
        %v2292 = vmax.f32 %v2274, %v2275
        %v2293 = vmax.f32 %v2276, %v2277
        %v2294 = vmax.f32 %v2278, %v2279
        %v2295 = vmax.f32 %v2280, %v2281
        %v2296 = vld [vmem:[%s3] sm:$0xff]
        %v2297 = vld [vmem:[%s3 + $0x8] sm:$0xff]
        %v2298 = vld [vmem:[%s3 + $0x10] sm:$0xff]
        %v2299 = vld [vmem:[%s3 + $0x18] sm:$0xff]
        %v2300 = vld [vmem:[%s3 + $0x20] sm:$0xff]
        %v2301 = vld [vmem:[%s3 + $0x28] sm:$0xff]
        %v2302 = vld [vmem:[%s3 + $0x30] sm:$0xff]
        %v2303 = vld [vmem:[%s3 + $0x38] sm:$0xff]
        %v2304 = vld [vmem:[%s3 + $0x40] sm:$0xff]
        %v2305 = vld [vmem:[%s3 + $0x48] sm:$0xff]
        %v2306 = vld [vmem:[%s3 + $0x50] sm:$0xff]
        %v2307 = vld [vmem:[%s3 + $0x58] sm:$0xff]
        %v2308 = vld [vmem:[%s3 + $0x60] sm:$0xff]
        %v2309 = vld [vmem:[%s3 + $0x68] sm:$0xff]
        %v2310 = vld [vmem:[%s3 + $0x70] sm:$0xff]
        %v2311 = vld [vmem:[%s3 + $0x78] sm:$0xff]
        %v2312 = vld [vmem:[%s3 + $0x80] sm:$0xff]
        %v2313 = vld [vmem:[%s3 + $0x88] sm:$0xff]
        %v2314 = vld [vmem:[%s3 + $0x90] sm:$0xff]
        %v2315 = vld [vmem:[%s3 + $0x98] sm:$0xff]
        %v2316 = vld [vmem:[%s3 + $0xa0] sm:$0xff]
        %v2317 = vld [vmem:[%s3 + $0xa8] sm:$0xff]
        %v2318 = vld [vmem:[%s3 + $0xb0] sm:$0xff]
        %v2319 = vld [vmem:[%s3 + $0xb8] sm:$0xff]
        %v2320 = vld [vmem:[%s3 + $0xc0] sm:$0xff]
        %v2321 = vld [vmem:[%s3 + $0xc8] sm:$0xff]
        %v2322 = vld [vmem:[%s3 + $0xd0] sm:$0xff]
        %v2323 = vld [vmem:[%s3 + $0xd8] sm:$0xff]
        %v2324 = vld [vmem:[%s3 + $0xe0] sm:$0xff]
        %v2325 = vld [vmem:[%s3 + $0xe8] sm:$0xff]
        %v2326 = vld [vmem:[%s3 + $0xf0] sm:$0xff]
        %v2327 = vld [vmem:[%s3 + $0xf8] sm:$0xff]
        %s2328 = scalar_lea.vmem %s3, 256
        %v2329 = vld [vmem:[%s2328] sm:$0xff]
        %v2330 = vld [vmem:[%s2328 + $0x8] sm:$0xff]
        %v2331 = vld [vmem:[%s2328 + $0x10] sm:$0xff]
        %v2332 = vld [vmem:[%s2328 + $0x18] sm:$0xff]
        %v2333 = vld [vmem:[%s2328 + $0x20] sm:$0xff]
        %v2334 = vld [vmem:[%s2328 + $0x28] sm:$0xff]
        %v2335 = vld [vmem:[%s2328 + $0x30] sm:$0xff]
        %v2336 = vld [vmem:[%s2328 + $0x38] sm:$0xff]
        %v2337 = vld [vmem:[%s2328 + $0x40] sm:$0xff]
        %v2338 = vld [vmem:[%s2328 + $0x48] sm:$0xff]
        %v2339 = vld [vmem:[%s2328 + $0x50] sm:$0xff]
        %v2340 = vld [vmem:[%s2328 + $0x58] sm:$0xff]
        %v2341 = vld [vmem:[%s2328 + $0x60] sm:$0xff]
        %v2342 = vld [vmem:[%s2328 + $0x68] sm:$0xff]
        %v2343 = vld [vmem:[%s2328 + $0x70] sm:$0xff]
        %v2344 = vld [vmem:[%s2328 + $0x78] sm:$0xff]
        %v2345 = vld [vmem:[%s2328 + $0x80] sm:$0xff]
        %v2346 = vld [vmem:[%s2328 + $0x88] sm:$0xff]
        %v2347 = vld [vmem:[%s2328 + $0x90] sm:$0xff]
        %v2348 = vld [vmem:[%s2328 + $0x98] sm:$0xff]
        %v2349 = vld [vmem:[%s2328 + $0xa0] sm:$0xff]
        %v2350 = vld [vmem:[%s2328 + $0xa8] sm:$0xff]
        %v2351 = vld [vmem:[%s2328 + $0xb0] sm:$0xff]
        %v2352 = vld [vmem:[%s2328 + $0xb8] sm:$0xff]
        %v2353 = vld [vmem:[%s2328 + $0xc0] sm:$0xff]
        %v2354 = vld [vmem:[%s2328 + $0xc8] sm:$0xff]
        %v2355 = vld [vmem:[%s2328 + $0xd0] sm:$0xff]
        %v2356 = vld [vmem:[%s2328 + $0xd8] sm:$0xff]
        %v2357 = vld [vmem:[%s2328 + $0xe0] sm:$0xff]
        %v2358 = vld [vmem:[%s2328 + $0xe8] sm:$0xff]
        %v2359 = vld [vmem:[%s2328 + $0xf0] sm:$0xff]
        %v2360 = vld [vmem:[%s2328 + $0xf8] sm:$0xff]
        %2361 = vmatprep.subr.mxu0 %v2360
        %2362 = vmatpush1.msra.mxu0 %v2359
        %2363 = vmatprep.subr.mxu0 %v2358
        %2364 = vmatpush1.msra.mxu0 %v2357
        %2365 = vmatprep.subr.mxu0 %v2356
        %2366 = vmatpush1.msra.mxu0 %v2355
        %2367 = vmatprep.subr.mxu0 %v2354
        %2368 = vmatpush1.msra.mxu0 %v2353
        %2369 = vmatprep.subr.mxu0 %v2352
        %2370 = vmatpush1.msra.mxu0 %v2351
        %2371 = vmatprep.subr.mxu0 %v2350
        %2372 = vmatpush1.msra.mxu0 %v2349
        %2373 = vmatprep.subr.mxu0 %v2348
        %2374 = vmatpush1.msra.mxu0 %v2347
        %2375 = vmatprep.subr.mxu0 %v2346
        %2376 = vmatpush1.msra.mxu0 %v2345
        %2377 = vmatprep.subr.mxu0 %v2344
        %2378 = vmatpush1.msra.mxu0 %v2343
        %2379 = vmatprep.subr.mxu0 %v2342
        %2380 = vmatpush1.msra.mxu0 %v2341
        %2381 = vmatprep.subr.mxu0 %v2340
        %2382 = vmatpush1.msra.mxu0 %v2339
        %2383 = vmatprep.subr.mxu0 %v2338
        %2384 = vmatpush1.msra.mxu0 %v2337
        %2385 = vmatprep.subr.mxu0 %v2336
        %2386 = vmatpush1.msra.mxu0 %v2335
        %2387 = vmatprep.subr.mxu0 %v2334
        %2388 = vmatpush1.msra.mxu0 %v2333
        %2389 = vmatprep.subr.mxu0 %v2332
        %2390 = vmatpush1.msra.mxu0 %v2331
        %2391 = vmatprep.subr.mxu0 %v2330
        %2392 = vmatpush1.msra.mxu0 %v2329
        %2393 = vmatprep.subr.mxu0 0.0
        %2394 = vmatpush2.msra.mxu0 0.0
        %2395 = vmatprep.subr.mxu0 0.0
        %2396 = vmatpush2.msra.mxu0 0.0
        %2397 = vmatprep.subr.mxu0 0.0
        %2398 = vmatpush2.msra.mxu0 0.0
        %2399 = vmatprep.subr.mxu0 0.0
        %2400 = vmatpush2.msra.mxu0 0.0
        %2401 = vmatprep.subr.mxu0 0.0
        %2402 = vmatpush2.msra.mxu0 0.0
        %2403 = vmatprep.subr.mxu0 0.0
        %2404 = vmatpush2.msra.mxu0 0.0
        %2405 = vmatprep.subr.mxu0 0.0
        %2406 = vmatpush2.msra.mxu0 0.0
        %2407 = vmatprep.subr.mxu0 0.0
        %2408 = vmatpush2.msra.mxu0 0.0
        %2409 = vmatprep.subr.mxu0 0.0
        %2410 = vmatpush2.msra.mxu0 0.0
        %2411 = vmatprep.subr.mxu0 0.0
        %2412 = vmatpush2.msra.mxu0 0.0
        %2413 = vmatprep.subr.mxu0 0.0
        %2414 = vmatpush2.msra.mxu0 0.0
        %2415 = vmatprep.subr.mxu0 0.0
        %2416 = vmatpush2.msra.mxu0 0.0
        %2417 = vmatprep.subr.mxu0 0.0
        %2418 = vmatpush2.msra.mxu0 0.0
        %2419 = vmatprep.subr.mxu0 0.0
        %2420 = vmatpush2.msra.mxu0 0.0
        %2421 = vmatprep.subr.mxu0 0.0
        %2422 = vmatpush2.msra.mxu0 0.0
        %2423 = vmatprep.subr.mxu0 0.0
        %2424 = vmatpush2.msra.mxu0 0.0
        %2425 = vmatprep.mubr.f32.mxu0 0.0
        %2426 = vmatmul.mubr.f32.gmra.mxu0 %v2283
        %v2427 = vpop.f32.mrf.mxu0
        %v2428 = vadd.f32 0.0, %v2427
        %v2429 = vpop.f32.mrf.mxu0
        %v2430 = vadd.f32 0.0, %v2429
        %2431 = vmatprep.mubr.f32.mxu0 0.0
        %2432 = vmatmul.mubr.f32.gmra.mxu0 %v2284
        %v2433 = vpop.f32.mrf.mxu0
        %v2434 = vadd.f32 0.0, %v2433
        %v2435 = vpop.f32.mrf.mxu0
        %v2436 = vadd.f32 0.0, %v2435
        %2437 = vmatprep.mubr.f32.mxu0 0.0
        %2438 = vmatmul.mubr.f32.gmra.mxu0 %v2285
        %v2439 = vpop.f32.mrf.mxu0
        %v2440 = vadd.f32 0.0, %v2439
        %v2441 = vpop.f32.mrf.mxu0
        %v2442 = vadd.f32 0.0, %v2441
        %2443 = vmatprep.mubr.f32.mxu0 0.0
        %2444 = vmatmul.mubr.f32.gmra.mxu0 %v2286
        %v2445 = vpop.f32.mrf.mxu0
        %v2446 = vadd.f32 0.0, %v2445
        %v2447 = vpop.f32.mrf.mxu0
        %v2448 = vadd.f32 0.0, %v2447
        %2449 = vmatprep.mubr.f32.mxu0 0.0
        %2450 = vmatmul.mubr.f32.gmra.mxu0 %v2287
        %v2451 = vpop.f32.mrf.mxu0
        %v2452 = vadd.f32 0.0, %v2451
        %v2453 = vpop.f32.mrf.mxu0
        %v2454 = vadd.f32 0.0, %v2453
        %2455 = vmatprep.mubr.f32.mxu0 0.0
        %2456 = vmatmul.mubr.f32.gmra.mxu0 %v2288
        %v2457 = vpop.f32.mrf.mxu0
        %v2458 = vadd.f32 0.0, %v2457
        %v2459 = vpop.f32.mrf.mxu0
        %v2460 = vadd.f32 0.0, %v2459
        %2461 = vmatprep.mubr.f32.mxu0 0.0
        %2462 = vmatmul.mubr.f32.gmra.mxu0 %v2289
        %v2463 = vpop.f32.mrf.mxu0
        %v2464 = vadd.f32 0.0, %v2463
        %v2465 = vpop.f32.mrf.mxu0
        %v2466 = vadd.f32 0.0, %v2465
        %2467 = vmatprep.mubr.f32.mxu0 0.0
        %2468 = vmatmul.mubr.f32.gmra.mxu0 %v2290
        %v2469 = vpop.f32.mrf.mxu0
        %v2470 = vadd.f32 0.0, %v2469
        %v2471 = vpop.f32.mrf.mxu0
        %v2472 = vadd.f32 0.0, %v2471
        %2473 = vmatprep.mubr.f32.mxu0 0.0
        %2474 = vmatmul.mubr.f32.gmra.mxu0 %v2291
        %v2475 = vpop.f32.mrf.mxu0
        %v2476 = vadd.f32 0.0, %v2475
        %v2477 = vpop.f32.mrf.mxu0
        %v2478 = vadd.f32 0.0, %v2477
        %2479 = vmatprep.mubr.f32.mxu0 0.0
        %2480 = vmatmul.mubr.f32.gmra.mxu0 %v2292
        %v2481 = vpop.f32.mrf.mxu0
        %v2482 = vadd.f32 0.0, %v2481
        %v2483 = vpop.f32.mrf.mxu0
        %v2484 = vadd.f32 0.0, %v2483
        %2485 = vdwg.mxu0
        %2486 = vmatprep.subr.mxu0 %v2327
        %2487 = vmatpush1.msra.mxu0 %v2326
        %2488 = vmatprep.subr.mxu0 %v2325
        %2489 = vmatpush1.msra.mxu0 %v2324
        %2490 = vmatprep.subr.mxu0 %v2323
        %2491 = vmatpush1.msra.mxu0 %v2322
        %2492 = vmatprep.subr.mxu0 %v2321
        %2493 = vmatpush1.msra.mxu0 %v2320
        %2494 = vmatprep.subr.mxu0 %v2319
        %2495 = vmatpush1.msra.mxu0 %v2318
        %2496 = vmatprep.subr.mxu0 %v2317
        %2497 = vmatpush1.msra.mxu0 %v2316
        %2498 = vmatprep.subr.mxu0 %v2315
        %2499 = vmatpush1.msra.mxu0 %v2314
        %2500 = vmatprep.subr.mxu0 %v2313
        %2501 = vmatpush1.msra.mxu0 %v2312
        %2502 = vmatprep.subr.mxu0 %v2311
        %2503 = vmatpush1.msra.mxu0 %v2310
        %2504 = vmatprep.subr.mxu0 %v2309
        %2505 = vmatpush1.msra.mxu0 %v2308
        %2506 = vmatprep.subr.mxu0 %v2307
        %2507 = vmatpush1.msra.mxu0 %v2306
        %2508 = vmatprep.subr.mxu0 %v2305
        %2509 = vmatpush1.msra.mxu0 %v2304
        %2510 = vmatprep.subr.mxu0 %v2303
        %2511 = vmatpush1.msra.mxu0 %v2302
        %2512 = vmatprep.subr.mxu0 %v2301
        %2513 = vmatpush1.msra.mxu0 %v2300
        %2514 = vmatprep.subr.mxu0 %v2299
        %2515 = vmatpush1.msra.mxu0 %v2298
        %2516 = vmatprep.subr.mxu0 %v2297
        %2517 = vmatpush1.msra.mxu0 %v2296
        %2518 = vmatprep.subr.mxu0 0.0
        %2519 = vmatpush2.msra.mxu0 0.0
        %2520 = vmatprep.subr.mxu0 0.0
        %2521 = vmatpush2.msra.mxu0 0.0
        %2522 = vmatprep.subr.mxu0 0.0
        %2523 = vmatpush2.msra.mxu0 0.0
        %2524 = vmatprep.subr.mxu0 0.0
        %2525 = vmatpush2.msra.mxu0 0.0
        %2526 = vmatprep.subr.mxu0 0.0
        %2527 = vmatpush2.msra.mxu0 0.0
        %2528 = vmatprep.subr.mxu0 0.0
        %2529 = vmatpush2.msra.mxu0 0.0
        %2530 = vmatprep.subr.mxu0 0.0
        %2531 = vmatpush2.msra.mxu0 0.0
        %2532 = vmatprep.subr.mxu0 0.0
        %2533 = vmatpush2.msra.mxu0 0.0
        %2534 = vmatprep.subr.mxu0 0.0
        %2535 = vmatpush2.msra.mxu0 0.0
        %2536 = vmatprep.subr.mxu0 0.0
        %2537 = vmatpush2.msra.mxu0 0.0
        %2538 = vmatprep.subr.mxu0 0.0
        %2539 = vmatpush2.msra.mxu0 0.0
        %2540 = vmatprep.subr.mxu0 0.0
        %2541 = vmatpush2.msra.mxu0 0.0
        %2542 = vmatprep.subr.mxu0 0.0
        %2543 = vmatpush2.msra.mxu0 0.0
        %2544 = vmatprep.subr.mxu0 0.0
        %2545 = vmatpush2.msra.mxu0 0.0
        %2546 = vmatprep.subr.mxu0 0.0
        %2547 = vmatpush2.msra.mxu0 0.0
        %2548 = vmatprep.subr.mxu0 0.0
        %2549 = vmatpush2.msra.mxu0 0.0
        %2550 = vmatprep.mubr.f32.mxu0 0.0
        %2551 = vmatmul.mubr.f32.gmra.mxu0 %v2282
        %v2552 = vpop.f32.mrf.mxu0
        %v2553 = vadd.f32 %v2428, %v2552
        %v2554 = vpop.f32.mrf.mxu0
        %v2555 = vadd.f32 %v2430, %v2554
        %2556 = vmatprep.mubr.f32.mxu0 0.0
        %2557 = vmatmul.mubr.f32.gmra.mxu0 %v2283
        %v2558 = vpop.f32.mrf.mxu0
        %v2559 = vadd.f32 %v2434, %v2558
        %v2560 = vpop.f32.mrf.mxu0
        %v2561 = vadd.f32 %v2436, %v2560
        %2562 = vmatprep.mubr.f32.mxu0 0.0
        %2563 = vmatmul.mubr.f32.gmra.mxu0 %v2284
        %v2564 = vpop.f32.mrf.mxu0
        %v2565 = vadd.f32 %v2440, %v2564
        %v2566 = vpop.f32.mrf.mxu0
        %v2567 = vadd.f32 %v2442, %v2566
        %2568 = vmatprep.mubr.f32.mxu0 0.0
        %2569 = vmatmul.mubr.f32.gmra.mxu0 %v2285
        %v2570 = vpop.f32.mrf.mxu0
        %v2571 = vadd.f32 %v2446, %v2570
        %v2572 = vpop.f32.mrf.mxu0
        %v2573 = vadd.f32 %v2448, %v2572
        %2574 = vmatprep.mubr.f32.mxu0 0.0
        %2575 = vmatmul.mubr.f32.gmra.mxu0 %v2286
        %v2576 = vpop.f32.mrf.mxu0
        %v2577 = vadd.f32 %v2452, %v2576
        %v2578 = vpop.f32.mrf.mxu0
        %v2579 = vadd.f32 %v2454, %v2578
        %2580 = vmatprep.mubr.f32.mxu0 0.0
        %2581 = vmatmul.mubr.f32.gmra.mxu0 %v2287
        %v2582 = vpop.f32.mrf.mxu0
        %v2583 = vadd.f32 %v2458, %v2582
        %v2584 = vpop.f32.mrf.mxu0
        %v2585 = vadd.f32 %v2460, %v2584
        %2586 = vmatprep.mubr.f32.mxu0 0.0
        %2587 = vmatmul.mubr.f32.gmra.mxu0 %v2288
        %v2588 = vpop.f32.mrf.mxu0
        %v2589 = vadd.f32 %v2464, %v2588
        %v2590 = vpop.f32.mrf.mxu0
        %v2591 = vadd.f32 %v2466, %v2590
        %2592 = vmatprep.mubr.f32.mxu0 0.0
        %2593 = vmatmul.mubr.f32.gmra.mxu0 %v2289
        %v2594 = vpop.f32.mrf.mxu0
        %v2595 = vadd.f32 %v2470, %v2594
        %v2596 = vpop.f32.mrf.mxu0
        %v2597 = vadd.f32 %v2472, %v2596
        %2598 = vmatprep.mubr.f32.mxu0 0.0
        %2599 = vmatmul.mubr.f32.gmra.mxu0 %v2290
        %v2600 = vpop.f32.mrf.mxu0
        %v2601 = vadd.f32 %v2476, %v2600
        %v2602 = vpop.f32.mrf.mxu0
        %v2603 = vadd.f32 %v2478, %v2602
        %2604 = vmatprep.mubr.f32.mxu0 0.0
        %2605 = vmatmul.mubr.f32.gmra.mxu0 %v2291
        %v2606 = vpop.f32.mrf.mxu0
        %v2607 = vadd.f32 %v2482, %v2606
        %v2608 = vpop.f32.mrf.mxu0
        %v2609 = vadd.f32 %v2484, %v2608
        %2610 = vdwg.mxu0
        %s2611 = scalar_lea.vmem %s3, 512
        %v2612 = vld [vmem:[%s2611] sm:$0xff]
        %v2613 = vld [vmem:[%s2611 + $0x8] sm:$0xff]
        %v2614 = vld [vmem:[%s2611 + $0x10] sm:$0xff]
        %v2615 = vld [vmem:[%s2611 + $0x18] sm:$0xff]
        %v2616 = vld [vmem:[%s2611 + $0x20] sm:$0xff]
        %v2617 = vld [vmem:[%s2611 + $0x28] sm:$0xff]
        %v2618 = vld [vmem:[%s2611 + $0x30] sm:$0xff]
        %v2619 = vld [vmem:[%s2611 + $0x38] sm:$0xff]
        %v2620 = vld [vmem:[%s2611 + $0x40] sm:$0xff]
        %v2621 = vld [vmem:[%s2611 + $0x48] sm:$0xff]
        %v2622 = vld [vmem:[%s2611 + $0x50] sm:$0xff]
        %v2623 = vld [vmem:[%s2611 + $0x58] sm:$0xff]
        %v2624 = vld [vmem:[%s2611 + $0x60] sm:$0xff]
        %v2625 = vld [vmem:[%s2611 + $0x68] sm:$0xff]
        %v2626 = vld [vmem:[%s2611 + $0x70] sm:$0xff]
        %v2627 = vld [vmem:[%s2611 + $0x78] sm:$0xff]
        %v2628 = vld [vmem:[%s2611 + $0x80] sm:$0xff]
        %v2629 = vld [vmem:[%s2611 + $0x88] sm:$0xff]
        %v2630 = vld [vmem:[%s2611 + $0x90] sm:$0xff]
        %v2631 = vld [vmem:[%s2611 + $0x98] sm:$0xff]
        %v2632 = vld [vmem:[%s2611 + $0xa0] sm:$0xff]
        %v2633 = vld [vmem:[%s2611 + $0xa8] sm:$0xff]
        %v2634 = vld [vmem:[%s2611 + $0xb0] sm:$0xff]
        %v2635 = vld [vmem:[%s2611 + $0xb8] sm:$0xff]
        %v2636 = vld [vmem:[%s2611 + $0xc0] sm:$0xff]
        %v2637 = vld [vmem:[%s2611 + $0xc8] sm:$0xff]
        %v2638 = vld [vmem:[%s2611 + $0xd0] sm:$0xff]
        %v2639 = vld [vmem:[%s2611 + $0xd8] sm:$0xff]
        %v2640 = vld [vmem:[%s2611 + $0xe0] sm:$0xff]
        %v2641 = vld [vmem:[%s2611 + $0xe8] sm:$0xff]
        %v2642 = vld [vmem:[%s2611 + $0xf0] sm:$0xff]
        %v2643 = vld [vmem:[%s2611 + $0xf8] sm:$0xff]
        %2644 = vmatprep.subr.mxu0 %v2643
        %2645 = vmatpush1.msra.mxu0 %v2642
        %2646 = vmatprep.subr.mxu0 %v2641
        %2647 = vmatpush1.msra.mxu0 %v2640
        %2648 = vmatprep.subr.mxu0 %v2639
        %2649 = vmatpush1.msra.mxu0 %v2638
        %2650 = vmatprep.subr.mxu0 %v2637
        %2651 = vmatpush1.msra.mxu0 %v2636
        %2652 = vmatprep.subr.mxu0 %v2635
        %2653 = vmatpush1.msra.mxu0 %v2634
        %2654 = vmatprep.subr.mxu0 %v2633
        %2655 = vmatpush1.msra.mxu0 %v2632
        %2656 = vmatprep.subr.mxu0 %v2631
        %2657 = vmatpush1.msra.mxu0 %v2630
        %2658 = vmatprep.subr.mxu0 %v2629
        %2659 = vmatpush1.msra.mxu0 %v2628
        %2660 = vmatprep.subr.mxu0 %v2627
        %2661 = vmatpush1.msra.mxu0 %v2626
        %2662 = vmatprep.subr.mxu0 %v2625
        %2663 = vmatpush1.msra.mxu0 %v2624
        %2664 = vmatprep.subr.mxu0 %v2623
        %2665 = vmatpush1.msra.mxu0 %v2622
        %2666 = vmatprep.subr.mxu0 %v2621
        %2667 = vmatpush1.msra.mxu0 %v2620
        %2668 = vmatprep.subr.mxu0 %v2619
        %2669 = vmatpush1.msra.mxu0 %v2618
        %2670 = vmatprep.subr.mxu0 %v2617
        %2671 = vmatpush1.msra.mxu0 %v2616
        %2672 = vmatprep.subr.mxu0 %v2615
        %2673 = vmatpush1.msra.mxu0 %v2614
        %2674 = vmatprep.subr.mxu0 %v2613
        %2675 = vmatpush1.msra.mxu0 %v2612
        %2676 = vmatprep.subr.mxu0 0.0
        %2677 = vmatpush2.msra.mxu0 0.0
        %2678 = vmatprep.subr.mxu0 0.0
        %2679 = vmatpush2.msra.mxu0 0.0
        %2680 = vmatprep.subr.mxu0 0.0
        %2681 = vmatpush2.msra.mxu0 0.0
        %2682 = vmatprep.subr.mxu0 0.0
        %2683 = vmatpush2.msra.mxu0 0.0
        %2684 = vmatprep.subr.mxu0 0.0
        %2685 = vmatpush2.msra.mxu0 0.0
        %2686 = vmatprep.subr.mxu0 0.0
        %2687 = vmatpush2.msra.mxu0 0.0
        %2688 = vmatprep.subr.mxu0 0.0
        %2689 = vmatpush2.msra.mxu0 0.0
        %2690 = vmatprep.subr.mxu0 0.0
        %2691 = vmatpush2.msra.mxu0 0.0
        %2692 = vmatprep.subr.mxu0 0.0
        %2693 = vmatpush2.msra.mxu0 0.0
        %2694 = vmatprep.subr.mxu0 0.0
        %2695 = vmatpush2.msra.mxu0 0.0
        %2696 = vmatprep.subr.mxu0 0.0
        %2697 = vmatpush2.msra.mxu0 0.0
        %2698 = vmatprep.subr.mxu0 0.0
        %2699 = vmatpush2.msra.mxu0 0.0
        %2700 = vmatprep.subr.mxu0 0.0
        %2701 = vmatpush2.msra.mxu0 0.0
        %2702 = vmatprep.subr.mxu0 0.0
        %2703 = vmatpush2.msra.mxu0 0.0
        %2704 = vmatprep.subr.mxu0 0.0
        %2705 = vmatpush2.msra.mxu0 0.0
        %2706 = vmatprep.subr.mxu0 0.0
        %2707 = vmatpush2.msra.mxu0 0.0
        %2708 = vmatprep.mubr.f32.mxu0 0.0
        %2709 = vmatmul.mubr.f32.gmra.mxu0 %v2284
        %v2710 = vpop.f32.mrf.mxu0
        %v2711 = vadd.f32 0.0, %v2710
        %v2712 = vpop.f32.mrf.mxu0
        %v2713 = vadd.f32 0.0, %v2712
        %2714 = vmatprep.mubr.f32.mxu0 0.0
        %2715 = vmatmul.mubr.f32.gmra.mxu0 %v2285
        %v2716 = vpop.f32.mrf.mxu0
        %v2717 = vadd.f32 0.0, %v2716
        %v2718 = vpop.f32.mrf.mxu0
        %v2719 = vadd.f32 0.0, %v2718
        %2720 = vmatprep.mubr.f32.mxu0 0.0
        %2721 = vmatmul.mubr.f32.gmra.mxu0 %v2286
        %v2722 = vpop.f32.mrf.mxu0
        %v2723 = vadd.f32 0.0, %v2722
        %v2724 = vpop.f32.mrf.mxu0
        %v2725 = vadd.f32 0.0, %v2724
        %2726 = vmatprep.mubr.f32.mxu0 0.0
        %2727 = vmatmul.mubr.f32.gmra.mxu0 %v2287
        %v2728 = vpop.f32.mrf.mxu0
        %v2729 = vadd.f32 0.0, %v2728
        %v2730 = vpop.f32.mrf.mxu0
        %v2731 = vadd.f32 0.0, %v2730
        %2732 = vmatprep.mubr.f32.mxu0 0.0
        %2733 = vmatmul.mubr.f32.gmra.mxu0 %v2288
        %v2734 = vpop.f32.mrf.mxu0
        %v2735 = vadd.f32 0.0, %v2734
        %v2736 = vpop.f32.mrf.mxu0
        %v2737 = vadd.f32 0.0, %v2736
        %2738 = vmatprep.mubr.f32.mxu0 0.0
        %2739 = vmatmul.mubr.f32.gmra.mxu0 %v2289
        %v2740 = vpop.f32.mrf.mxu0
        %v2741 = vadd.f32 0.0, %v2740
        %v2742 = vpop.f32.mrf.mxu0
        %v2743 = vadd.f32 0.0, %v2742
        %2744 = vmatprep.mubr.f32.mxu0 0.0
        %2745 = vmatmul.mubr.f32.gmra.mxu0 %v2290
        %v2746 = vpop.f32.mrf.mxu0
        %v2747 = vadd.f32 0.0, %v2746
        %v2748 = vpop.f32.mrf.mxu0
        %v2749 = vadd.f32 0.0, %v2748
        %2750 = vmatprep.mubr.f32.mxu0 0.0
        %2751 = vmatmul.mubr.f32.gmra.mxu0 %v2291
        %v2752 = vpop.f32.mrf.mxu0
        %v2753 = vadd.f32 0.0, %v2752
        %v2754 = vpop.f32.mrf.mxu0
        %v2755 = vadd.f32 0.0, %v2754
        %2756 = vmatprep.mubr.f32.mxu0 0.0
        %2757 = vmatmul.mubr.f32.gmra.mxu0 %v2292
        %v2758 = vpop.f32.mrf.mxu0
        %v2759 = vadd.f32 0.0, %v2758
        %v2760 = vpop.f32.mrf.mxu0
        %v2761 = vadd.f32 0.0, %v2760
        %2762 = vmatprep.mubr.f32.mxu0 0.0
        %2763 = vmatmul.mubr.f32.gmra.mxu0 %v2293
        %v2764 = vpop.f32.mrf.mxu0
        %v2765 = vadd.f32 0.0, %v2764
        %v2766 = vpop.f32.mrf.mxu0
        %v2767 = vadd.f32 0.0, %v2766
        %2768 = vdwg.mxu0
        %v2769 = vadd.f32 %v2553, %v2711
        %v2770 = vadd.f32 %v2555, %v2713
        %v2771 = vadd.f32 %v2559, %v2717
        %v2772 = vadd.f32 %v2561, %v2719
        %v2773 = vadd.f32 %v2565, %v2723
        %v2774 = vadd.f32 %v2567, %v2725
        %v2775 = vadd.f32 %v2571, %v2729
        %v2776 = vadd.f32 %v2573, %v2731
        %v2777 = vadd.f32 %v2577, %v2735
        %v2778 = vadd.f32 %v2579, %v2737
        %v2779 = vadd.f32 %v2583, %v2741
        %v2780 = vadd.f32 %v2585, %v2743
        %v2781 = vadd.f32 %v2589, %v2747
        %v2782 = vadd.f32 %v2591, %v2749
        %v2783 = vadd.f32 %v2595, %v2753
        %v2784 = vadd.f32 %v2597, %v2755
        %v2785 = vadd.f32 %v2601, %v2759
        %v2786 = vadd.f32 %v2603, %v2761
        %v2787 = vadd.f32 %v2607, %v2765
        %v2788 = vadd.f32 %v2609, %v2767
        %s2789 = scalar_lea.vmem %s3, 768
        %v2790 = vld [vmem:[%s2789] sm:$0xff]
        %v2791 = vld [vmem:[%s2789 + $0x8] sm:$0xff]
        %v2792 = vld [vmem:[%s2789 + $0x10] sm:$0xff]
        %v2793 = vld [vmem:[%s2789 + $0x18] sm:$0xff]
        %v2794 = vld [vmem:[%s2789 + $0x20] sm:$0xff]
        %v2795 = vld [vmem:[%s2789 + $0x28] sm:$0xff]
        %v2796 = vld [vmem:[%s2789 + $0x30] sm:$0xff]
        %v2797 = vld [vmem:[%s2789 + $0x38] sm:$0xff]
        %v2798 = vld [vmem:[%s2789 + $0x40] sm:$0xff]
        %v2799 = vld [vmem:[%s2789 + $0x48] sm:$0xff]
        %v2800 = vld [vmem:[%s2789 + $0x50] sm:$0xff]
        %v2801 = vld [vmem:[%s2789 + $0x58] sm:$0xff]
        %v2802 = vld [vmem:[%s2789 + $0x60] sm:$0xff]
        %v2803 = vld [vmem:[%s2789 + $0x68] sm:$0xff]
        %v2804 = vld [vmem:[%s2789 + $0x70] sm:$0xff]
        %v2805 = vld [vmem:[%s2789 + $0x78] sm:$0xff]
        %v2806 = vld [vmem:[%s2789 + $0x80] sm:$0xff]
        %v2807 = vld [vmem:[%s2789 + $0x88] sm:$0xff]
        %v2808 = vld [vmem:[%s2789 + $0x90] sm:$0xff]
        %v2809 = vld [vmem:[%s2789 + $0x98] sm:$0xff]
        %v2810 = vld [vmem:[%s2789 + $0xa0] sm:$0xff]
        %v2811 = vld [vmem:[%s2789 + $0xa8] sm:$0xff]
        %v2812 = vld [vmem:[%s2789 + $0xb0] sm:$0xff]
        %v2813 = vld [vmem:[%s2789 + $0xb8] sm:$0xff]
        %v2814 = vld [vmem:[%s2789 + $0xc0] sm:$0xff]
        %v2815 = vld [vmem:[%s2789 + $0xc8] sm:$0xff]
        %v2816 = vld [vmem:[%s2789 + $0xd0] sm:$0xff]
        %v2817 = vld [vmem:[%s2789 + $0xd8] sm:$0xff]
        %v2818 = vld [vmem:[%s2789 + $0xe0] sm:$0xff]
        %v2819 = vld [vmem:[%s2789 + $0xe8] sm:$0xff]
        %v2820 = vld [vmem:[%s2789 + $0xf0] sm:$0xff]
        %v2821 = vld [vmem:[%s2789 + $0xf8] sm:$0xff]
        %2822 = vmatprep.subr.mxu0 %v2821
        %2823 = vmatpush1.msra.mxu0 %v2820
        %2824 = vmatprep.subr.mxu0 %v2819
        %2825 = vmatpush1.msra.mxu0 %v2818
        %2826 = vmatprep.subr.mxu0 %v2817
        %2827 = vmatpush1.msra.mxu0 %v2816
        %2828 = vmatprep.subr.mxu0 %v2815
        %2829 = vmatpush1.msra.mxu0 %v2814
        %2830 = vmatprep.subr.mxu0 %v2813
        %2831 = vmatpush1.msra.mxu0 %v2812
        %2832 = vmatprep.subr.mxu0 %v2811
        %2833 = vmatpush1.msra.mxu0 %v2810
        %2834 = vmatprep.subr.mxu0 %v2809
        %2835 = vmatpush1.msra.mxu0 %v2808
        %2836 = vmatprep.subr.mxu0 %v2807
        %2837 = vmatpush1.msra.mxu0 %v2806
        %2838 = vmatprep.subr.mxu0 %v2805
        %2839 = vmatpush1.msra.mxu0 %v2804
        %2840 = vmatprep.subr.mxu0 %v2803
        %2841 = vmatpush1.msra.mxu0 %v2802
        %2842 = vmatprep.subr.mxu0 %v2801
        %2843 = vmatpush1.msra.mxu0 %v2800
        %2844 = vmatprep.subr.mxu0 %v2799
        %2845 = vmatpush1.msra.mxu0 %v2798
        %2846 = vmatprep.subr.mxu0 %v2797
        %2847 = vmatpush1.msra.mxu0 %v2796
        %2848 = vmatprep.subr.mxu0 %v2795
        %2849 = vmatpush1.msra.mxu0 %v2794
        %2850 = vmatprep.subr.mxu0 %v2793
        %2851 = vmatpush1.msra.mxu0 %v2792
        %2852 = vmatprep.subr.mxu0 %v2791
        %2853 = vmatpush1.msra.mxu0 %v2790
        %2854 = vmatprep.subr.mxu0 0.0
        %2855 = vmatpush2.msra.mxu0 0.0
        %2856 = vmatprep.subr.mxu0 0.0
        %2857 = vmatpush2.msra.mxu0 0.0
        %2858 = vmatprep.subr.mxu0 0.0
        %2859 = vmatpush2.msra.mxu0 0.0
        %2860 = vmatprep.subr.mxu0 0.0
        %2861 = vmatpush2.msra.mxu0 0.0
        %2862 = vmatprep.subr.mxu0 0.0
        %2863 = vmatpush2.msra.mxu0 0.0
        %2864 = vmatprep.subr.mxu0 0.0
        %2865 = vmatpush2.msra.mxu0 0.0
        %2866 = vmatprep.subr.mxu0 0.0
        %2867 = vmatpush2.msra.mxu0 0.0
        %2868 = vmatprep.subr.mxu0 0.0
        %2869 = vmatpush2.msra.mxu0 0.0
        %2870 = vmatprep.subr.mxu0 0.0
        %2871 = vmatpush2.msra.mxu0 0.0
        %2872 = vmatprep.subr.mxu0 0.0
        %2873 = vmatpush2.msra.mxu0 0.0
        %2874 = vmatprep.subr.mxu0 0.0
        %2875 = vmatpush2.msra.mxu0 0.0
        %2876 = vmatprep.subr.mxu0 0.0
        %2877 = vmatpush2.msra.mxu0 0.0
        %2878 = vmatprep.subr.mxu0 0.0
        %2879 = vmatpush2.msra.mxu0 0.0
        %2880 = vmatprep.subr.mxu0 0.0
        %2881 = vmatpush2.msra.mxu0 0.0
        %2882 = vmatprep.subr.mxu0 0.0
        %2883 = vmatpush2.msra.mxu0 0.0
        %2884 = vmatprep.subr.mxu0 0.0
        %2885 = vmatpush2.msra.mxu0 0.0
        %2886 = vmatprep.mubr.f32.mxu0 0.0
        %2887 = vmatmul.mubr.f32.gmra.mxu0 %v2285
        %v2888 = vpop.f32.mrf.mxu0
        %v2889 = vadd.f32 0.0, %v2888
        %v2890 = vpop.f32.mrf.mxu0
        %v2891 = vadd.f32 0.0, %v2890
        %2892 = vmatprep.mubr.f32.mxu0 0.0
        %2893 = vmatmul.mubr.f32.gmra.mxu0 %v2286
        %v2894 = vpop.f32.mrf.mxu0
        %v2895 = vadd.f32 0.0, %v2894
        %v2896 = vpop.f32.mrf.mxu0
        %v2897 = vadd.f32 0.0, %v2896
        %2898 = vmatprep.mubr.f32.mxu0 0.0
        %2899 = vmatmul.mubr.f32.gmra.mxu0 %v2287
        %v2900 = vpop.f32.mrf.mxu0
        %v2901 = vadd.f32 0.0, %v2900
        %v2902 = vpop.f32.mrf.mxu0
        %v2903 = vadd.f32 0.0, %v2902
        %2904 = vmatprep.mubr.f32.mxu0 0.0
        %2905 = vmatmul.mubr.f32.gmra.mxu0 %v2288
        %v2906 = vpop.f32.mrf.mxu0
        %v2907 = vadd.f32 0.0, %v2906
        %v2908 = vpop.f32.mrf.mxu0
        %v2909 = vadd.f32 0.0, %v2908
        %2910 = vmatprep.mubr.f32.mxu0 0.0
        %2911 = vmatmul.mubr.f32.gmra.mxu0 %v2289
        %v2912 = vpop.f32.mrf.mxu0
        %v2913 = vadd.f32 0.0, %v2912
        %v2914 = vpop.f32.mrf.mxu0
        %v2915 = vadd.f32 0.0, %v2914
        %2916 = vmatprep.mubr.f32.mxu0 0.0
        %2917 = vmatmul.mubr.f32.gmra.mxu0 %v2290
        %v2918 = vpop.f32.mrf.mxu0
        %v2919 = vadd.f32 0.0, %v2918
        %v2920 = vpop.f32.mrf.mxu0
        %v2921 = vadd.f32 0.0, %v2920
        %2922 = vmatprep.mubr.f32.mxu0 0.0
        %2923 = vmatmul.mubr.f32.gmra.mxu0 %v2291
        %v2924 = vpop.f32.mrf.mxu0
        %v2925 = vadd.f32 0.0, %v2924
        %v2926 = vpop.f32.mrf.mxu0
        %v2927 = vadd.f32 0.0, %v2926
        %2928 = vmatprep.mubr.f32.mxu0 0.0
        %2929 = vmatmul.mubr.f32.gmra.mxu0 %v2292
        %v2930 = vpop.f32.mrf.mxu0
        %v2931 = vadd.f32 0.0, %v2930
        %v2932 = vpop.f32.mrf.mxu0
        %v2933 = vadd.f32 0.0, %v2932
        %2934 = vmatprep.mubr.f32.mxu0 0.0
        %2935 = vmatmul.mubr.f32.gmra.mxu0 %v2293
        %v2936 = vpop.f32.mrf.mxu0
        %v2937 = vadd.f32 0.0, %v2936
        %v2938 = vpop.f32.mrf.mxu0
        %v2939 = vadd.f32 0.0, %v2938
        %2940 = vmatprep.mubr.f32.mxu0 0.0
        %2941 = vmatmul.mubr.f32.gmra.mxu0 %v2294
        %v2942 = vpop.f32.mrf.mxu0
        %v2943 = vadd.f32 0.0, %v2942
        %v2944 = vpop.f32.mrf.mxu0
        %v2945 = vadd.f32 0.0, %v2944
        %2946 = vdwg.mxu0
        %v2947 = vadd.f32 %v2769, %v2889
        %v2948 = vadd.f32 %v2770, %v2891
        %v2949 = vadd.f32 %v2771, %v2895
        %v2950 = vadd.f32 %v2772, %v2897
        %v2951 = vadd.f32 %v2773, %v2901
        %v2952 = vadd.f32 %v2774, %v2903
        %v2953 = vadd.f32 %v2775, %v2907
        %v2954 = vadd.f32 %v2776, %v2909
        %v2955 = vadd.f32 %v2777, %v2913
        %v2956 = vadd.f32 %v2778, %v2915
        %v2957 = vadd.f32 %v2779, %v2919
        %v2958 = vadd.f32 %v2780, %v2921
        %v2959 = vadd.f32 %v2781, %v2925
        %v2960 = vadd.f32 %v2782, %v2927
        %v2961 = vadd.f32 %v2783, %v2931
        %v2962 = vadd.f32 %v2784, %v2933
        %v2963 = vadd.f32 %v2785, %v2937
        %v2964 = vadd.f32 %v2786, %v2939
        %v2965 = vadd.f32 %v2787, %v2943
        %v2966 = vadd.f32 %v2788, %v2945
        %s2967 = scalar_lea.vmem %s3, 1024
        %v2968 = vld [vmem:[%s2967] sm:$0xff]
        %v2969 = vld [vmem:[%s2967 + $0x8] sm:$0xff]
        %v2970 = vld [vmem:[%s2967 + $0x10] sm:$0xff]
        %v2971 = vld [vmem:[%s2967 + $0x18] sm:$0xff]
        %v2972 = vld [vmem:[%s2967 + $0x20] sm:$0xff]
        %v2973 = vld [vmem:[%s2967 + $0x28] sm:$0xff]
        %v2974 = vld [vmem:[%s2967 + $0x30] sm:$0xff]
        %v2975 = vld [vmem:[%s2967 + $0x38] sm:$0xff]
        %v2976 = vld [vmem:[%s2967 + $0x40] sm:$0xff]
        %v2977 = vld [vmem:[%s2967 + $0x48] sm:$0xff]
        %v2978 = vld [vmem:[%s2967 + $0x50] sm:$0xff]
        %v2979 = vld [vmem:[%s2967 + $0x58] sm:$0xff]
        %v2980 = vld [vmem:[%s2967 + $0x60] sm:$0xff]
        %v2981 = vld [vmem:[%s2967 + $0x68] sm:$0xff]
        %v2982 = vld [vmem:[%s2967 + $0x70] sm:$0xff]
        %v2983 = vld [vmem:[%s2967 + $0x78] sm:$0xff]
        %v2984 = vld [vmem:[%s2967 + $0x80] sm:$0xff]
        %v2985 = vld [vmem:[%s2967 + $0x88] sm:$0xff]
        %v2986 = vld [vmem:[%s2967 + $0x90] sm:$0xff]
        %v2987 = vld [vmem:[%s2967 + $0x98] sm:$0xff]
        %v2988 = vld [vmem:[%s2967 + $0xa0] sm:$0xff]
        %v2989 = vld [vmem:[%s2967 + $0xa8] sm:$0xff]
        %v2990 = vld [vmem:[%s2967 + $0xb0] sm:$0xff]
        %v2991 = vld [vmem:[%s2967 + $0xb8] sm:$0xff]
        %v2992 = vld [vmem:[%s2967 + $0xc0] sm:$0xff]
        %v2993 = vld [vmem:[%s2967 + $0xc8] sm:$0xff]
        %v2994 = vld [vmem:[%s2967 + $0xd0] sm:$0xff]
        %v2995 = vld [vmem:[%s2967 + $0xd8] sm:$0xff]
        %v2996 = vld [vmem:[%s2967 + $0xe0] sm:$0xff]
        %v2997 = vld [vmem:[%s2967 + $0xe8] sm:$0xff]
        %v2998 = vld [vmem:[%s2967 + $0xf0] sm:$0xff]
        %v2999 = vld [vmem:[%s2967 + $0xf8] sm:$0xff]
        %3000 = vmatprep.subr.mxu0 %v2999
        %3001 = vmatpush1.msra.mxu0 %v2998
        %3002 = vmatprep.subr.mxu0 %v2997
        %3003 = vmatpush1.msra.mxu0 %v2996
        %3004 = vmatprep.subr.mxu0 %v2995
        %3005 = vmatpush1.msra.mxu0 %v2994
        %3006 = vmatprep.subr.mxu0 %v2993
        %3007 = vmatpush1.msra.mxu0 %v2992
        %3008 = vmatprep.subr.mxu0 %v2991
        %3009 = vmatpush1.msra.mxu0 %v2990
        %3010 = vmatprep.subr.mxu0 %v2989
        %3011 = vmatpush1.msra.mxu0 %v2988
        %3012 = vmatprep.subr.mxu0 %v2987
        %3013 = vmatpush1.msra.mxu0 %v2986
        %3014 = vmatprep.subr.mxu0 %v2985
        %3015 = vmatpush1.msra.mxu0 %v2984
        %3016 = vmatprep.subr.mxu0 %v2983
        %3017 = vmatpush1.msra.mxu0 %v2982
        %3018 = vmatprep.subr.mxu0 %v2981
        %3019 = vmatpush1.msra.mxu0 %v2980
        %3020 = vmatprep.subr.mxu0 %v2979
        %3021 = vmatpush1.msra.mxu0 %v2978
        %3022 = vmatprep.subr.mxu0 %v2977
        %3023 = vmatpush1.msra.mxu0 %v2976
        %3024 = vmatprep.subr.mxu0 %v2975
        %3025 = vmatpush1.msra.mxu0 %v2974
        %3026 = vmatprep.subr.mxu0 %v2973
        %3027 = vmatpush1.msra.mxu0 %v2972
        %3028 = vmatprep.subr.mxu0 %v2971
        %3029 = vmatpush1.msra.mxu0 %v2970
        %3030 = vmatprep.subr.mxu0 %v2969
        %3031 = vmatpush1.msra.mxu0 %v2968
        %3032 = vmatprep.subr.mxu0 0.0
        %3033 = vmatpush2.msra.mxu0 0.0
        %3034 = vmatprep.subr.mxu0 0.0
        %3035 = vmatpush2.msra.mxu0 0.0
        %3036 = vmatprep.subr.mxu0 0.0
        %3037 = vmatpush2.msra.mxu0 0.0
        %3038 = vmatprep.subr.mxu0 0.0
        %3039 = vmatpush2.msra.mxu0 0.0
        %3040 = vmatprep.subr.mxu0 0.0
        %3041 = vmatpush2.msra.mxu0 0.0
        %3042 = vmatprep.subr.mxu0 0.0
        %3043 = vmatpush2.msra.mxu0 0.0
        %3044 = vmatprep.subr.mxu0 0.0
        %3045 = vmatpush2.msra.mxu0 0.0
        %3046 = vmatprep.subr.mxu0 0.0
        %3047 = vmatpush2.msra.mxu0 0.0
        %3048 = vmatprep.subr.mxu0 0.0
        %3049 = vmatpush2.msra.mxu0 0.0
        %3050 = vmatprep.subr.mxu0 0.0
        %3051 = vmatpush2.msra.mxu0 0.0
        %3052 = vmatprep.subr.mxu0 0.0
        %3053 = vmatpush2.msra.mxu0 0.0
        %3054 = vmatprep.subr.mxu0 0.0
        %3055 = vmatpush2.msra.mxu0 0.0
        %3056 = vmatprep.subr.mxu0 0.0
        %3057 = vmatpush2.msra.mxu0 0.0
        %3058 = vmatprep.subr.mxu0 0.0
        %3059 = vmatpush2.msra.mxu0 0.0
        %3060 = vmatprep.subr.mxu0 0.0
        %3061 = vmatpush2.msra.mxu0 0.0
        %3062 = vmatprep.subr.mxu0 0.0
        %3063 = vmatpush2.msra.mxu0 0.0
        %3064 = vmatprep.mubr.f32.mxu0 0.0
        %3065 = vmatmul.mubr.f32.gmra.mxu0 %v2286
        %v3066 = vpop.f32.mrf.mxu0
        %v3067 = vadd.f32 0.0, %v3066
        %v3068 = vpop.f32.mrf.mxu0
        %v3069 = vadd.f32 0.0, %v3068
        %3070 = vmatprep.mubr.f32.mxu0 0.0
        %3071 = vmatmul.mubr.f32.gmra.mxu0 %v2287
        %v3072 = vpop.f32.mrf.mxu0
        %v3073 = vadd.f32 0.0, %v3072
        %v3074 = vpop.f32.mrf.mxu0
        %v3075 = vadd.f32 0.0, %v3074
        %3076 = vmatprep.mubr.f32.mxu0 0.0
        %3077 = vmatmul.mubr.f32.gmra.mxu0 %v2288
        %v3078 = vpop.f32.mrf.mxu0
        %v3079 = vadd.f32 0.0, %v3078
        %v3080 = vpop.f32.mrf.mxu0
        %v3081 = vadd.f32 0.0, %v3080
        %3082 = vmatprep.mubr.f32.mxu0 0.0
        %3083 = vmatmul.mubr.f32.gmra.mxu0 %v2289
        %v3084 = vpop.f32.mrf.mxu0
        %v3085 = vadd.f32 0.0, %v3084
        %v3086 = vpop.f32.mrf.mxu0
        %v3087 = vadd.f32 0.0, %v3086
        %3088 = vmatprep.mubr.f32.mxu0 0.0
        %3089 = vmatmul.mubr.f32.gmra.mxu0 %v2290
        %v3090 = vpop.f32.mrf.mxu0
        %v3091 = vadd.f32 0.0, %v3090
        %v3092 = vpop.f32.mrf.mxu0
        %v3093 = vadd.f32 0.0, %v3092
        %3094 = vmatprep.mubr.f32.mxu0 0.0
        %3095 = vmatmul.mubr.f32.gmra.mxu0 %v2291
        %v3096 = vpop.f32.mrf.mxu0
        %v3097 = vadd.f32 0.0, %v3096
        %v3098 = vpop.f32.mrf.mxu0
        %v3099 = vadd.f32 0.0, %v3098
        %3100 = vmatprep.mubr.f32.mxu0 0.0
        %3101 = vmatmul.mubr.f32.gmra.mxu0 %v2292
        %v3102 = vpop.f32.mrf.mxu0
        %v3103 = vadd.f32 0.0, %v3102
        %v3104 = vpop.f32.mrf.mxu0
        %v3105 = vadd.f32 0.0, %v3104
        %3106 = vmatprep.mubr.f32.mxu0 0.0
        %3107 = vmatmul.mubr.f32.gmra.mxu0 %v2293
        %v3108 = vpop.f32.mrf.mxu0
        %v3109 = vadd.f32 0.0, %v3108
        %v3110 = vpop.f32.mrf.mxu0
        %v3111 = vadd.f32 0.0, %v3110
        %3112 = vmatprep.mubr.f32.mxu0 0.0
        %3113 = vmatmul.mubr.f32.gmra.mxu0 %v2294
        %v3114 = vpop.f32.mrf.mxu0
        %v3115 = vadd.f32 0.0, %v3114
        %v3116 = vpop.f32.mrf.mxu0
        %v3117 = vadd.f32 0.0, %v3116
        %3118 = vmatprep.mubr.f32.mxu0 0.0
        %3119 = vmatmul.mubr.f32.gmra.mxu0 %v2295
        %v3120 = vpop.f32.mrf.mxu0
        %v3121 = vadd.f32 0.0, %v3120
        %v3122 = vpop.f32.mrf.mxu0
        %v3123 = vadd.f32 0.0, %v3122
        %3124 = vdwg.mxu0
        %v3125 = vadd.f32 %v2947, %v3067
        %v3126 = vadd.f32 %v2948, %v3069
        %v3127 = vadd.f32 %v2949, %v3073
        %v3128 = vadd.f32 %v2950, %v3075
        %v3129 = vadd.f32 %v2951, %v3079
        %v3130 = vadd.f32 %v2952, %v3081
        %v3131 = vadd.f32 %v2953, %v3085
        %v3132 = vadd.f32 %v2954, %v3087
        %v3133 = vadd.f32 %v2955, %v3091
        %v3134 = vadd.f32 %v2956, %v3093
        %v3135 = vadd.f32 %v2957, %v3097
        %v3136 = vadd.f32 %v2958, %v3099
        %v3137 = vadd.f32 %v2959, %v3103
        %v3138 = vadd.f32 %v2960, %v3105
        %v3139 = vadd.f32 %v2961, %v3109
        %v3140 = vadd.f32 %v2962, %v3111
        %v3141 = vadd.f32 %v2963, %v3115
        %v3142 = vadd.f32 %v2964, %v3117
        %v3143 = vadd.f32 %v2965, %v3121
        %v3144 = vadd.f32 %v2966, %v3123
        %v3145 = vld [vmem:[%s4] sm:$0x3]
        %v3147 = vlaneseq
        %v3148 = vshrl.u32 %v3147, 7
        %v3149 = vsub.s32 0, %v3148
        %v3150 = vrot.slane %v3145, %v3149
        %v3151 = vlaneseq
        %v3152 = vshrl.u32 %v3151, 7
        %v3153 = vsub.s32 1, %v3152
        %v3154 = vrot.slane %v3145, %v3153
        %v3157 = vadd.f32 %v3125, %v3150
        %v3158 = vadd.f32 %v3126, %v3154
        %v3159 = vadd.f32 %v3127, %v3150
        %v3160 = vadd.f32 %v3128, %v3154
        %v3161 = vadd.f32 %v3129, %v3150
        %v3162 = vadd.f32 %v3130, %v3154
        %v3163 = vadd.f32 %v3131, %v3150
        %v3164 = vadd.f32 %v3132, %v3154
        %v3165 = vadd.f32 %v3133, %v3150
        %v3166 = vadd.f32 %v3134, %v3154
        %v3167 = vadd.f32 %v3135, %v3150
        %v3168 = vadd.f32 %v3136, %v3154
        %v3169 = vadd.f32 %v3137, %v3150
        %v3170 = vadd.f32 %v3138, %v3154
        %v3171 = vadd.f32 %v3139, %v3150
        %v3172 = vadd.f32 %v3140, %v3154
        %v3173 = vadd.f32 %v3141, %v3150
        %v3174 = vadd.f32 %v3142, %v3154
        %v3175 = vadd.f32 %v3143, %v3150
        %v3176 = vadd.f32 %v3144, %v3154
        %v3177 = vmax.f32 %v3157, 0.0
        %v3178 = vmax.f32 %v3158, 0.0
        %v3179 = vmax.f32 %v3159, 0.0
        %v3180 = vmax.f32 %v3160, 0.0
        %v3181 = vmax.f32 %v3161, 0.0
        %v3182 = vmax.f32 %v3162, 0.0
        %v3183 = vmax.f32 %v3163, 0.0
        %v3184 = vmax.f32 %v3164, 0.0
        %v3185 = vmax.f32 %v3165, 0.0
        %v3186 = vmax.f32 %v3166, 0.0
        %v3187 = vmax.f32 %v3167, 0.0
        %v3188 = vmax.f32 %v3168, 0.0
        %v3189 = vmax.f32 %v3169, 0.0
        %v3190 = vmax.f32 %v3170, 0.0
        %v3191 = vmax.f32 %v3171, 0.0
        %v3192 = vmax.f32 %v3172, 0.0
        %v3193 = vmax.f32 %v3173, 0.0
        %v3194 = vmax.f32 %v3174, 0.0
        %v3195 = vmax.f32 %v3175, 0.0
        %v3196 = vmax.f32 %v3176, 0.0
        %v3197 = vmax.f32 %v3177, %v3179
        %v3198 = vmax.f32 %v3178, %v3180
        %v3199 = vmax.f32 %v3181, %v3183
        %v3200 = vmax.f32 %v3182, %v3184
        %v3201 = vmax.f32 %v3185, %v3187
        %v3202 = vmax.f32 %v3186, %v3188
        %v3203 = vmax.f32 %v3189, %v3191
        %v3204 = vmax.f32 %v3190, %v3192
        %v3205 = vmax.f32 %v3193, %v3195
        %v3206 = vmax.f32 %v3194, %v3196
        %v3207 = vmax.f32 %v3197, %v3198
        %v3208 = vmax.f32 %v3199, %v3200
        %v3209 = vmax.f32 %v3201, %v3202
        %v3210 = vmax.f32 %v3203, %v3204
        %v3211 = vmax.f32 %v3205, %v3206
        %v3212 = vld [vmem:[%s5] sm:$0xff]
        %v3213 = vld [vmem:[%s5 + $0x8] sm:$0xff]
        %v3214 = vld [vmem:[%s5 + $0x10] sm:$0xff]
        %v3215 = vld [vmem:[%s5 + $0x18] sm:$0xff]
        %v3216 = vld [vmem:[%s5 + $0x20] sm:$0xff]
        %v3217 = vld [vmem:[%s5 + $0x28] sm:$0xff]
        %v3218 = vld [vmem:[%s5 + $0x30] sm:$0xff]
        %v3219 = vld [vmem:[%s5 + $0x38] sm:$0xff]
        %v3220 = vld [vmem:[%s5 + $0x40] sm:$0xff]
        %v3221 = vld [vmem:[%s5 + $0x48] sm:$0xff]
        %v3222 = vld [vmem:[%s5 + $0x50] sm:$0xff]
        %v3223 = vld [vmem:[%s5 + $0x58] sm:$0xff]
        %v3224 = vld [vmem:[%s5 + $0x60] sm:$0xff]
        %v3225 = vld [vmem:[%s5 + $0x68] sm:$0xff]
        %v3226 = vld [vmem:[%s5 + $0x70] sm:$0xff]
        %v3227 = vld [vmem:[%s5 + $0x78] sm:$0xff]
        %v3228 = vld [vmem:[%s5 + $0x80] sm:$0xff]
        %v3229 = vld [vmem:[%s5 + $0x88] sm:$0xff]
        %v3230 = vld [vmem:[%s5 + $0x90] sm:$0xff]
        %v3231 = vld [vmem:[%s5 + $0x98] sm:$0xff]
        %v3232 = vld [vmem:[%s5 + $0xa0] sm:$0xff]
        %v3233 = vld [vmem:[%s5 + $0xa8] sm:$0xff]
        %v3234 = vld [vmem:[%s5 + $0xb0] sm:$0xff]
        %v3235 = vld [vmem:[%s5 + $0xb8] sm:$0xff]
        %v3236 = vld [vmem:[%s5 + $0xc0] sm:$0xff]
        %v3237 = vld [vmem:[%s5 + $0xc8] sm:$0xff]
        %v3238 = vld [vmem:[%s5 + $0xd0] sm:$0xff]
        %v3239 = vld [vmem:[%s5 + $0xd8] sm:$0xff]
        %v3240 = vld [vmem:[%s5 + $0xe0] sm:$0xff]
        %v3241 = vld [vmem:[%s5 + $0xe8] sm:$0xff]
        %v3242 = vld [vmem:[%s5 + $0xf0] sm:$0xff]
        %v3243 = vld [vmem:[%s5 + $0xf8] sm:$0xff]
        %v3244 = vld [vmem:[%s5 + $0x100] sm:$0xff]
        %v3245 = vld [vmem:[%s5 + $0x108] sm:$0xff]
        %v3246 = vld [vmem:[%s5 + $0x110] sm:$0xff]
        %v3247 = vld [vmem:[%s5 + $0x118] sm:$0xff]
        %v3248 = vld [vmem:[%s5 + $0x120] sm:$0xff]
        %v3249 = vld [vmem:[%s5 + $0x128] sm:$0xff]
        %v3250 = vld [vmem:[%s5 + $0x130] sm:$0xff]
        %v3251 = vld [vmem:[%s5 + $0x138] sm:$0xff]
        %v3252 = vld [vmem:[%s5 + $0x140] sm:$0xff]
        %v3253 = vld [vmem:[%s5 + $0x148] sm:$0xff]
        %v3254 = vld [vmem:[%s5 + $0x150] sm:$0xff]
        %v3255 = vld [vmem:[%s5 + $0x158] sm:$0xff]
        %v3256 = vld [vmem:[%s5 + $0x160] sm:$0xff]
        %v3257 = vld [vmem:[%s5 + $0x168] sm:$0xff]
        %v3258 = vld [vmem:[%s5 + $0x170] sm:$0xff]
        %v3259 = vld [vmem:[%s5 + $0x178] sm:$0xff]
        %v3260 = vld [vmem:[%s5 + $0x180] sm:$0xff]
        %v3261 = vld [vmem:[%s5 + $0x188] sm:$0xff]
        %v3262 = vld [vmem:[%s5 + $0x190] sm:$0xff]
        %v3263 = vld [vmem:[%s5 + $0x198] sm:$0xff]
        %v3264 = vld [vmem:[%s5 + $0x1a0] sm:$0xff]
        %v3265 = vld [vmem:[%s5 + $0x1a8] sm:$0xff]
        %v3266 = vld [vmem:[%s5 + $0x1b0] sm:$0xff]
        %v3267 = vld [vmem:[%s5 + $0x1b8] sm:$0xff]
        %v3268 = vld [vmem:[%s5 + $0x1c0] sm:$0xff]
        %v3269 = vld [vmem:[%s5 + $0x1c8] sm:$0xff]
        %v3270 = vld [vmem:[%s5 + $0x1d0] sm:$0xff]
        %v3271 = vld [vmem:[%s5 + $0x1d8] sm:$0xff]
        %v3272 = vld [vmem:[%s5 + $0x1e0] sm:$0xff]
        %v3273 = vld [vmem:[%s5 + $0x1e8] sm:$0xff]
        %v3274 = vld [vmem:[%s5 + $0x1f0] sm:$0xff]
        %v3275 = vld [vmem:[%s5 + $0x1f8] sm:$0xff]
        %v3276 = vld [vmem:[%s5 + $0x200] sm:$0xff]
        %v3277 = vld [vmem:[%s5 + $0x208] sm:$0xff]
        %v3278 = vld [vmem:[%s5 + $0x210] sm:$0xff]
        %v3279 = vld [vmem:[%s5 + $0x218] sm:$0xff]
        %v3280 = vld [vmem:[%s5 + $0x220] sm:$0xff]
        %v3281 = vld [vmem:[%s5 + $0x228] sm:$0xff]
        %v3282 = vld [vmem:[%s5 + $0x230] sm:$0xff]
        %v3283 = vld [vmem:[%s5 + $0x238] sm:$0xff]
        %v3284 = vld [vmem:[%s5 + $0x240] sm:$0xff]
        %v3285 = vld [vmem:[%s5 + $0x248] sm:$0xff]
        %v3286 = vld [vmem:[%s5 + $0x250] sm:$0xff]
        %v3287 = vld [vmem:[%s5 + $0x258] sm:$0xff]
        %v3288 = vld [vmem:[%s5 + $0x260] sm:$0xff]
        %v3289 = vld [vmem:[%s5 + $0x268] sm:$0xff]
        %v3290 = vld [vmem:[%s5 + $0x270] sm:$0xff]
        %v3291 = vld [vmem:[%s5 + $0x278] sm:$0xff]
        %v3292 = vld [vmem:[%s6] sm:$0x1]
        %v3294 = vlaneseq
        %v3295 = vshrl.u32 %v3294, 7
        %v3296 = vsub.s32 0, %v3295
        %v3297 = vrot.slane %v3292, %v3296
        %3299 = vmatprep.subr.mxu0 0.0
        %3300 = vmatpush1.msra.mxu0 %v3227
        %3301 = vmatprep.subr.mxu0 0.0
        %3302 = vmatpush1.msra.mxu0 %v3226
        %3303 = vmatprep.subr.mxu0 0.0
        %3304 = vmatpush1.msra.mxu0 %v3225
        %3305 = vmatprep.subr.mxu0 0.0
        %3306 = vmatpush1.msra.mxu0 %v3224
        %3307 = vmatprep.subr.mxu0 0.0
        %3308 = vmatpush1.msra.mxu0 %v3223
        %3309 = vmatprep.subr.mxu0 0.0
        %3310 = vmatpush1.msra.mxu0 %v3222
        %3311 = vmatprep.subr.mxu0 0.0
        %3312 = vmatpush1.msra.mxu0 %v3221
        %3313 = vmatprep.subr.mxu0 0.0
        %3314 = vmatpush1.msra.mxu0 %v3220
        %3315 = vmatprep.subr.mxu0 0.0
        %3316 = vmatpush1.msra.mxu0 %v3219
        %3317 = vmatprep.subr.mxu0 0.0
        %3318 = vmatpush1.msra.mxu0 %v3218
        %3319 = vmatprep.subr.mxu0 0.0
        %3320 = vmatpush1.msra.mxu0 %v3217
        %3321 = vmatprep.subr.mxu0 0.0
        %3322 = vmatpush1.msra.mxu0 %v3216
        %3323 = vmatprep.subr.mxu0 0.0
        %3324 = vmatpush1.msra.mxu0 %v3215
        %3325 = vmatprep.subr.mxu0 0.0
        %3326 = vmatpush1.msra.mxu0 %v3214
        %3327 = vmatprep.subr.mxu0 0.0
        %3328 = vmatpush1.msra.mxu0 %v3213
        %3329 = vmatprep.subr.mxu0 0.0
        %3330 = vmatpush1.msra.mxu0 %v3212
        %3331 = vmatprep.subr.mxu0 0.0
        %3332 = vmatpush2.msra.mxu0 %v3243
        %3333 = vmatprep.subr.mxu0 0.0
        %3334 = vmatpush2.msra.mxu0 %v3242
        %3335 = vmatprep.subr.mxu0 0.0
        %3336 = vmatpush2.msra.mxu0 %v3241
        %3337 = vmatprep.subr.mxu0 0.0
        %3338 = vmatpush2.msra.mxu0 %v3240
        %3339 = vmatprep.subr.mxu0 0.0
        %3340 = vmatpush2.msra.mxu0 %v3239
        %3341 = vmatprep.subr.mxu0 0.0
        %3342 = vmatpush2.msra.mxu0 %v3238
        %3343 = vmatprep.subr.mxu0 0.0
        %3344 = vmatpush2.msra.mxu0 %v3237
        %3345 = vmatprep.subr.mxu0 0.0
        %3346 = vmatpush2.msra.mxu0 %v3236
        %3347 = vmatprep.subr.mxu0 0.0
        %3348 = vmatpush2.msra.mxu0 %v3235
        %3349 = vmatprep.subr.mxu0 0.0
        %3350 = vmatpush2.msra.mxu0 %v3234
        %3351 = vmatprep.subr.mxu0 0.0
        %3352 = vmatpush2.msra.mxu0 %v3233
        %3353 = vmatprep.subr.mxu0 0.0
        %3354 = vmatpush2.msra.mxu0 %v3232
        %3355 = vmatprep.subr.mxu0 0.0
        %3356 = vmatpush2.msra.mxu0 %v3231
        %3357 = vmatprep.subr.mxu0 0.0
        %3358 = vmatpush2.msra.mxu0 %v3230
        %3359 = vmatprep.subr.mxu0 0.0
        %3360 = vmatpush2.msra.mxu0 %v3229
        %3361 = vmatprep.subr.mxu0 0.0
        %3362 = vmatpush2.msra.mxu0 %v3228
        %3363 = vmatprep.mubr.f32.mxu0 %v3208
        %3364 = vmatmul.mubr.f32.gmra.mxu0 %v3207
        %v3365 = vpop.f32.mrf.mxu0
        %v3366 = vadd.f32 %v3297, %v3365
        %v3367 = vpop.f32.mrf.mxu0
        %3368 = vdwg.mxu0
        %3369 = vmatprep.subr.mxu0 0.0
        %3370 = vmatpush1.msra.mxu0 %v3259
        %3371 = vmatprep.subr.mxu0 0.0
        %3372 = vmatpush1.msra.mxu0 %v3258
        %3373 = vmatprep.subr.mxu0 0.0
        %3374 = vmatpush1.msra.mxu0 %v3257
        %3375 = vmatprep.subr.mxu0 0.0
        %3376 = vmatpush1.msra.mxu0 %v3256
        %3377 = vmatprep.subr.mxu0 0.0
        %3378 = vmatpush1.msra.mxu0 %v3255
        %3379 = vmatprep.subr.mxu0 0.0
        %3380 = vmatpush1.msra.mxu0 %v3254
        %3381 = vmatprep.subr.mxu0 0.0
        %3382 = vmatpush1.msra.mxu0 %v3253
        %3383 = vmatprep.subr.mxu0 0.0
        %3384 = vmatpush1.msra.mxu0 %v3252
        %3385 = vmatprep.subr.mxu0 0.0
        %3386 = vmatpush1.msra.mxu0 %v3251
        %3387 = vmatprep.subr.mxu0 0.0
        %3388 = vmatpush1.msra.mxu0 %v3250
        %3389 = vmatprep.subr.mxu0 0.0
        %3390 = vmatpush1.msra.mxu0 %v3249
        %3391 = vmatprep.subr.mxu0 0.0
        %3392 = vmatpush1.msra.mxu0 %v3248
        %3393 = vmatprep.subr.mxu0 0.0
        %3394 = vmatpush1.msra.mxu0 %v3247
        %3395 = vmatprep.subr.mxu0 0.0
        %3396 = vmatpush1.msra.mxu0 %v3246
        %3397 = vmatprep.subr.mxu0 0.0
        %3398 = vmatpush1.msra.mxu0 %v3245
        %3399 = vmatprep.subr.mxu0 0.0
        %3400 = vmatpush1.msra.mxu0 %v3244
        %3401 = vmatprep.subr.mxu0 0.0
        %3402 = vmatpush2.msra.mxu0 %v3275
        %3403 = vmatprep.subr.mxu0 0.0
        %3404 = vmatpush2.msra.mxu0 %v3274
        %3405 = vmatprep.subr.mxu0 0.0
        %3406 = vmatpush2.msra.mxu0 %v3273
        %3407 = vmatprep.subr.mxu0 0.0
        %3408 = vmatpush2.msra.mxu0 %v3272
        %3409 = vmatprep.subr.mxu0 0.0
        %3410 = vmatpush2.msra.mxu0 %v3271
        %3411 = vmatprep.subr.mxu0 0.0
        %3412 = vmatpush2.msra.mxu0 %v3270
        %3413 = vmatprep.subr.mxu0 0.0
        %3414 = vmatpush2.msra.mxu0 %v3269
        %3415 = vmatprep.subr.mxu0 0.0
        %3416 = vmatpush2.msra.mxu0 %v3268
        %3417 = vmatprep.subr.mxu0 0.0
        %3418 = vmatpush2.msra.mxu0 %v3267
        %3419 = vmatprep.subr.mxu0 0.0
        %3420 = vmatpush2.msra.mxu0 %v3266
        %3421 = vmatprep.subr.mxu0 0.0
        %3422 = vmatpush2.msra.mxu0 %v3265
        %3423 = vmatprep.subr.mxu0 0.0
        %3424 = vmatpush2.msra.mxu0 %v3264
        %3425 = vmatprep.subr.mxu0 0.0
        %3426 = vmatpush2.msra.mxu0 %v3263
        %3427 = vmatprep.subr.mxu0 0.0
        %3428 = vmatpush2.msra.mxu0 %v3262
        %3429 = vmatprep.subr.mxu0 0.0
        %3430 = vmatpush2.msra.mxu0 %v3261
        %3431 = vmatprep.subr.mxu0 0.0
        %3432 = vmatpush2.msra.mxu0 %v3260
        %3433 = vmatprep.mubr.f32.mxu0 %v3210
        %3434 = vmatmul.mubr.f32.gmra.mxu0 %v3209
        %v3435 = vpop.f32.mrf.mxu0
        %v3436 = vadd.f32 %v3366, %v3435
        %v3437 = vpop.f32.mrf.mxu0
        %3438 = vdwg.mxu0
        %3439 = vmatprep.subr.mxu0 0.0
        %3440 = vmatpush1.msra.mxu0 %v3291
        %3441 = vmatprep.subr.mxu0 0.0
        %3442 = vmatpush1.msra.mxu0 %v3290
        %3443 = vmatprep.subr.mxu0 0.0
        %3444 = vmatpush1.msra.mxu0 %v3289
        %3445 = vmatprep.subr.mxu0 0.0
        %3446 = vmatpush1.msra.mxu0 %v3288
        %3447 = vmatprep.subr.mxu0 0.0
        %3448 = vmatpush1.msra.mxu0 %v3287
        %3449 = vmatprep.subr.mxu0 0.0
        %3450 = vmatpush1.msra.mxu0 %v3286
        %3451 = vmatprep.subr.mxu0 0.0
        %3452 = vmatpush1.msra.mxu0 %v3285
        %3453 = vmatprep.subr.mxu0 0.0
        %3454 = vmatpush1.msra.mxu0 %v3284
        %3455 = vmatprep.subr.mxu0 0.0
        %3456 = vmatpush1.msra.mxu0 %v3283
        %3457 = vmatprep.subr.mxu0 0.0
        %3458 = vmatpush1.msra.mxu0 %v3282
        %3459 = vmatprep.subr.mxu0 0.0
        %3460 = vmatpush1.msra.mxu0 %v3281
        %3461 = vmatprep.subr.mxu0 0.0
        %3462 = vmatpush1.msra.mxu0 %v3280
        %3463 = vmatprep.subr.mxu0 0.0
        %3464 = vmatpush1.msra.mxu0 %v3279
        %3465 = vmatprep.subr.mxu0 0.0
        %3466 = vmatpush1.msra.mxu0 %v3278
        %3467 = vmatprep.subr.mxu0 0.0
        %3468 = vmatpush1.msra.mxu0 %v3277
        %3469 = vmatprep.subr.mxu0 0.0
        %3470 = vmatpush1.msra.mxu0 %v3276
        %3471 = vmatprep.subr.mxu0 0.0
        %3472 = vmatpush2.msra.mxu0 0.0
        %3473 = vmatprep.subr.mxu0 0.0
        %3474 = vmatpush2.msra.mxu0 0.0
        %3475 = vmatprep.subr.mxu0 0.0
        %3476 = vmatpush2.msra.mxu0 0.0
        %3477 = vmatprep.subr.mxu0 0.0
        %3478 = vmatpush2.msra.mxu0 0.0
        %3479 = vmatprep.subr.mxu0 0.0
        %3480 = vmatpush2.msra.mxu0 0.0
        %3481 = vmatprep.subr.mxu0 0.0
        %3482 = vmatpush2.msra.mxu0 0.0
        %3483 = vmatprep.subr.mxu0 0.0
        %3484 = vmatpush2.msra.mxu0 0.0
        %3485 = vmatprep.subr.mxu0 0.0
        %3486 = vmatpush2.msra.mxu0 0.0
        %3487 = vmatprep.subr.mxu0 0.0
        %3488 = vmatpush2.msra.mxu0 0.0
        %3489 = vmatprep.subr.mxu0 0.0
        %3490 = vmatpush2.msra.mxu0 0.0
        %3491 = vmatprep.subr.mxu0 0.0
        %3492 = vmatpush2.msra.mxu0 0.0
        %3493 = vmatprep.subr.mxu0 0.0
        %3494 = vmatpush2.msra.mxu0 0.0
        %3495 = vmatprep.subr.mxu0 0.0
        %3496 = vmatpush2.msra.mxu0 0.0
        %3497 = vmatprep.subr.mxu0 0.0
        %3498 = vmatpush2.msra.mxu0 0.0
        %3499 = vmatprep.subr.mxu0 0.0
        %3500 = vmatpush2.msra.mxu0 0.0
        %3501 = vmatprep.subr.mxu0 0.0
        %3502 = vmatpush2.msra.mxu0 0.0
        %3503 = vmatprep.mubr.f32.mxu0 0.0
        %3504 = vmatmul.mubr.f32.gmra.mxu0 %v3211
        %v3505 = vpop.f32.mrf.mxu0
        %v3506 = vadd.f32 %v3436, %v3505
        %v3507 = vpop.f32.mrf.mxu0
        %3508 = vdwg.mxu0
        %v3509 = vmax.f32 %v3506, 0.0
        %v3510 = vld [vmem:[%s7] sm:$0xff]
        %v3511 = vld [vmem:[%s7 + $0x8] sm:$0xff]
        %v3512 = vld [vmem:[%s7 + $0x10] sm:$0xff]
        %v3513 = vld [vmem:[%s7 + $0x18] sm:$0xff]
        %v3514 = vld [vmem:[%s7 + $0x20] sm:$0xff]
        %v3515 = vld [vmem:[%s7 + $0x28] sm:$0xff]
        %v3516 = vld [vmem:[%s7 + $0x30] sm:$0xff]
        %v3517 = vld [vmem:[%s7 + $0x38] sm:$0xff]
        %v3518 = vld [vmem:[%s7 + $0x40] sm:$0xff]
        %v3519 = vld [vmem:[%s7 + $0x48] sm:$0xff]
        %v3520 = vld [vmem:[%s7 + $0x50] sm:$0xff]
        %v3521 = vld [vmem:[%s7 + $0x58] sm:$0xff]
        %v3522 = vld [vmem:[%s7 + $0x60] sm:$0xff]
        %v3523 = vld [vmem:[%s7 + $0x68] sm:$0xff]
        %v3524 = vld [vmem:[%s7 + $0x70] sm:$0xff]
        %v3525 = vld [vmem:[%s7 + $0x78] sm:$0xff]
        %v3526 = vld [vmem:[%s8] sm:$0x1]
        %v3528 = vlaneseq
        %v3529 = vshrl.u32 %v3528, 7
        %v3530 = vsub.s32 0, %v3529
        %v3531 = vrot.slane %v3526, %v3530
        %3533 = vmatprep.subr.mxu0 0.0
        %3534 = vmatpush1.msra.mxu0 %v3525
        %3535 = vmatprep.subr.mxu0 0.0
        %3536 = vmatpush1.msra.mxu0 %v3524
        %3537 = vmatprep.subr.mxu0 0.0
        %3538 = vmatpush1.msra.mxu0 %v3523
        %3539 = vmatprep.subr.mxu0 0.0
        %3540 = vmatpush1.msra.mxu0 %v3522
        %3541 = vmatprep.subr.mxu0 0.0
        %3542 = vmatpush1.msra.mxu0 %v3521
        %3543 = vmatprep.subr.mxu0 0.0
        %3544 = vmatpush1.msra.mxu0 %v3520
        %3545 = vmatprep.subr.mxu0 0.0
        %3546 = vmatpush1.msra.mxu0 %v3519
        %3547 = vmatprep.subr.mxu0 0.0
        %3548 = vmatpush1.msra.mxu0 %v3518
        %3549 = vmatprep.subr.mxu0 0.0
        %3550 = vmatpush1.msra.mxu0 %v3517
        %3551 = vmatprep.subr.mxu0 0.0
        %3552 = vmatpush1.msra.mxu0 %v3516
        %3553 = vmatprep.subr.mxu0 0.0
        %3554 = vmatpush1.msra.mxu0 %v3515
        %3555 = vmatprep.subr.mxu0 0.0
        %3556 = vmatpush1.msra.mxu0 %v3514
        %3557 = vmatprep.subr.mxu0 0.0
        %3558 = vmatpush1.msra.mxu0 %v3513
        %3559 = vmatprep.subr.mxu0 0.0
        %3560 = vmatpush1.msra.mxu0 %v3512
        %3561 = vmatprep.subr.mxu0 0.0
        %3562 = vmatpush1.msra.mxu0 %v3511
        %3563 = vmatprep.subr.mxu0 0.0
        %3564 = vmatpush1.msra.mxu0 %v3510
        %3565 = vmatprep.subr.mxu0 0.0
        %3566 = vmatpush2.msra.mxu0 0.0
        %3567 = vmatprep.subr.mxu0 0.0
        %3568 = vmatpush2.msra.mxu0 0.0
        %3569 = vmatprep.subr.mxu0 0.0
        %3570 = vmatpush2.msra.mxu0 0.0
        %3571 = vmatprep.subr.mxu0 0.0
        %3572 = vmatpush2.msra.mxu0 0.0
        %3573 = vmatprep.subr.mxu0 0.0
        %3574 = vmatpush2.msra.mxu0 0.0
        %3575 = vmatprep.subr.mxu0 0.0
        %3576 = vmatpush2.msra.mxu0 0.0
        %3577 = vmatprep.subr.mxu0 0.0
        %3578 = vmatpush2.msra.mxu0 0.0
        %3579 = vmatprep.subr.mxu0 0.0
        %3580 = vmatpush2.msra.mxu0 0.0
        %3581 = vmatprep.subr.mxu0 0.0
        %3582 = vmatpush2.msra.mxu0 0.0
        %3583 = vmatprep.subr.mxu0 0.0
        %3584 = vmatpush2.msra.mxu0 0.0
        %3585 = vmatprep.subr.mxu0 0.0
        %3586 = vmatpush2.msra.mxu0 0.0
        %3587 = vmatprep.subr.mxu0 0.0
        %3588 = vmatpush2.msra.mxu0 0.0
        %3589 = vmatprep.subr.mxu0 0.0
        %3590 = vmatpush2.msra.mxu0 0.0
        %3591 = vmatprep.subr.mxu0 0.0
        %3592 = vmatpush2.msra.mxu0 0.0
        %3593 = vmatprep.subr.mxu0 0.0
        %3594 = vmatpush2.msra.mxu0 0.0
        %3595 = vmatprep.subr.mxu0 0.0
        %3596 = vmatpush2.msra.mxu0 0.0
        %3597 = vmatprep.mubr.f32.mxu0 0.0
        %3598 = vmatmul.mubr.f32.gmra.mxu0 %v3509
        %v3599 = vpop.f32.mrf.mxu0
        %v3600 = vadd.f32 %v3531, %v3599
        %v3601 = vpop.f32.mrf.mxu0
        %3602 = vdwg.mxu0
        %v3603 = vmax.f32 %v3600, 0.0
        %v3604 = vld [vmem:[%s9] sm:$0xff]
        %v3605 = vld [vmem:[%s9 + $0x8] sm:$0xff]
        %v3606 = vld [vmem:[%s9 + $0x10] sm:$0xff]
        %v3607 = vld [vmem:[%s9 + $0x18] sm:$0xff]
        %v3608 = vld [vmem:[%s9 + $0x20] sm:$0xff]
        %v3609 = vld [vmem:[%s9 + $0x28] sm:$0xff]
        %v3610 = vld [vmem:[%s9 + $0x30] sm:$0xff]
        %v3611 = vld [vmem:[%s9 + $0x38] sm:$0xff]
        %v3612 = vld [vmem:[%s9 + $0x40] sm:$0xff]
        %v3613 = vld [vmem:[%s9 + $0x48] sm:$0xff]
        %v3614 = vld [vmem:[%s9 + $0x50] sm:$0xff]
        %v3615 = vld [vmem:[%s9 + $0x58] sm:$0xff]
        %v3616 = vld [vmem:[%s9 + $0x60] sm:$0xff]
        %v3617 = vld [vmem:[%s9 + $0x68] sm:$0xff]
        %v3618 = vld [vmem:[%s9 + $0x70] sm:$0xff]
        %v3619 = vld [vmem:[%s9 + $0x78] sm:$0xff]
        %v3620 = vld [vmem:[%s10] sm:$0x1]
        %v3622 = vlaneseq
        %v3623 = vshrl.u32 %v3622, 7
        %v3624 = vsub.s32 0, %v3623
        %v3625 = vrot.slane %v3620, %v3624
        %3627 = vmatprep.subr.mxu0 0.0
        %3628 = vmatpush1.msra.mxu0 %v3619
        %3629 = vmatprep.subr.mxu0 0.0
        %3630 = vmatpush1.msra.mxu0 %v3618
        %3631 = vmatprep.subr.mxu0 0.0
        %3632 = vmatpush1.msra.mxu0 %v3617
        %3633 = vmatprep.subr.mxu0 0.0
        %3634 = vmatpush1.msra.mxu0 %v3616
        %3635 = vmatprep.subr.mxu0 0.0
        %3636 = vmatpush1.msra.mxu0 %v3615
        %3637 = vmatprep.subr.mxu0 0.0
        %3638 = vmatpush1.msra.mxu0 %v3614
        %3639 = vmatprep.subr.mxu0 0.0
        %3640 = vmatpush1.msra.mxu0 %v3613
        %3641 = vmatprep.subr.mxu0 0.0
        %3642 = vmatpush1.msra.mxu0 %v3612
        %3643 = vmatprep.subr.mxu0 0.0
        %3644 = vmatpush1.msra.mxu0 %v3611
        %3645 = vmatprep.subr.mxu0 0.0
        %3646 = vmatpush1.msra.mxu0 %v3610
        %3647 = vmatprep.subr.mxu0 0.0
        %3648 = vmatpush1.msra.mxu0 %v3609
        %3649 = vmatprep.subr.mxu0 0.0
        %3650 = vmatpush1.msra.mxu0 %v3608
        %3651 = vmatprep.subr.mxu0 0.0
        %3652 = vmatpush1.msra.mxu0 %v3607
        %3653 = vmatprep.subr.mxu0 0.0
        %3654 = vmatpush1.msra.mxu0 %v3606
        %3655 = vmatprep.subr.mxu0 0.0
        %3656 = vmatpush1.msra.mxu0 %v3605
        %3657 = vmatprep.subr.mxu0 0.0
        %3658 = vmatpush1.msra.mxu0 %v3604
        %3659 = vmatprep.subr.mxu0 0.0
        %3660 = vmatpush2.msra.mxu0 0.0
        %3661 = vmatprep.subr.mxu0 0.0
        %3662 = vmatpush2.msra.mxu0 0.0
        %3663 = vmatprep.subr.mxu0 0.0
        %3664 = vmatpush2.msra.mxu0 0.0
        %3665 = vmatprep.subr.mxu0 0.0
        %3666 = vmatpush2.msra.mxu0 0.0
        %3667 = vmatprep.subr.mxu0 0.0
        %3668 = vmatpush2.msra.mxu0 0.0
        %3669 = vmatprep.subr.mxu0 0.0
        %3670 = vmatpush2.msra.mxu0 0.0
        %3671 = vmatprep.subr.mxu0 0.0
        %3672 = vmatpush2.msra.mxu0 0.0
        %3673 = vmatprep.subr.mxu0 0.0
        %3674 = vmatpush2.msra.mxu0 0.0
        %3675 = vmatprep.subr.mxu0 0.0
        %3676 = vmatpush2.msra.mxu0 0.0
        %3677 = vmatprep.subr.mxu0 0.0
        %3678 = vmatpush2.msra.mxu0 0.0
        %3679 = vmatprep.subr.mxu0 0.0
        %3680 = vmatpush2.msra.mxu0 0.0
        %3681 = vmatprep.subr.mxu0 0.0
        %3682 = vmatpush2.msra.mxu0 0.0
        %3683 = vmatprep.subr.mxu0 0.0
        %3684 = vmatpush2.msra.mxu0 0.0
        %3685 = vmatprep.subr.mxu0 0.0
        %3686 = vmatpush2.msra.mxu0 0.0
        %3687 = vmatprep.subr.mxu0 0.0
        %3688 = vmatpush2.msra.mxu0 0.0
        %3689 = vmatprep.subr.mxu0 0.0
        %3690 = vmatpush2.msra.mxu0 0.0
        %3691 = vmatprep.mubr.f32.mxu0 0.0
        %3692 = vmatmul.mubr.f32.gmra.mxu0 %v3603
        %v3693 = vpop.f32.mrf.mxu0
        %v3694 = vadd.f32 %v3625, %v3693
        %v3695 = vpop.f32.mrf.mxu0
        %3696 = vdwg.mxu0
        %3697 = vst [vmem:[%s543] sm:$0xff] %v3694
        %p3698 = scmp.lt.s32.totalorder %s22, 2
        %s3699 = scalar_select %p3698, %s22, 2
        %s3700 = smul.addr %s3699, 8
        %s3701 = scalar_lea.vmem %s11, %s3700
        // Predicated region
        $region103: #{cnn_forward.1} parent=97 // pred_check
          %p3702 = pneg %p276
        $region104: #{cnn_forward.1} parent=97 // pred_check_branch
          %3704 = sbr.rel (%p3702) target = $region106
        $region105: #{cnn_forward.1} parent=97 // pred_region
          _
        $region106: #{cnn_forward.1} parent=97 // pred_fallthru
          _
      $region98: #{cnn_forward.1} parent=5 // pred_fallthru
        _
      %p3705 = scmp.le.s32.totalorder 2, %s17
      // Predicated region
      $region107: #{cnn_forward.1} parent=5 // pred_check
        %p3706 = pneg %p3705
      $region108: #{cnn_forward.1} parent=5 // pred_check_branch
        %3708 = sbr.rel (%p3706) target = $region110
      $region109: #{cnn_forward.1} parent=5 // pred_region
        %s3709 = ssub.s32 %s17, 2
        // Predicated region
        $region111: #{cnn_forward.1} parent=109 // pred_check
          %p3710 = pneg %p282
        $region112: #{cnn_forward.1} parent=109 // pred_check_branch
          %3712 = sbr.rel (%p3710) target = $region114
        $region113: #{cnn_forward.1} parent=109 // pred_region
          %p3713 = scmp.lt.s32.totalorder %s23, 2
          %s3714 = scalar_select %p3713, %s23, 2
          %s3715 = smul.addr %s3714, 8
          %s3716 = scalar_lea.vmem %s11, %s3715
        $region114: #{cnn_forward.1} parent=109 // pred_fallthru
          _
      $region110: #{cnn_forward.1} parent=5 // pred_fallthru
        _
    $region6: #{cnn_forward.1} parent=1 // loop_footer
      %s21 = sadd.s32 1, %s17
    $region7: #{cnn_forward.1} parent=1 // loop_footer_branch
      %16 = sbr.rel target = $region3
    $region8: #{cnn_forward.1} parent=1 // loop_exit
      _

</llo_original>
